<compile_context>
chip_gen: v7x
topology: tpu7x:2x2x1
jax: 0.10.0
libtpu: 0.0.40
codegen_flags: <defaults>
</compile_context>

<pallas_src>
import jax
import jax.numpy as jnp
from jax import lax
from jax.experimental import pallas as pl
from jax.experimental.pallas import tpu as pltpu

HIDDEN = 128  # SPADE intermediate conv channels (nn.Conv2d(seg_dim, 128, 3, 1, 1))


def spade_kernel(x_ref, seg_ref, w1_ref, b1_ref, wab_ref, bab_ref, out_ref, hpad_ref):
    """One (batch n, row-tile t) step.

    x_ref:    (1, TH, W, cin)    f32   NHWC input rows of this tile
    seg_ref:  (TH+4, W+2, seg)   bf16  raw resized seg rows, +-2-row halo, +-1-col zero pad
    w1_ref:   (9, seg, 128)      bf16  conv1 weights, tap-major (tap = dy*3 + dx)
    b1_ref:   (1, 128)           f32
    wab_ref:  (3, 384, 2*cin)    bf16  fused alpha|beta weights; dy taps stacked along K per dx
    bab_ref:  (1, 2*cin)         f32   fused bias; alpha half already carries the +1
    out_ref:  (1, TH, W, cin)    f32
    hpad_ref: (TH+2, W+2, 128)   bf16  VMEM scratch: column-padded hidden rows (+-1 halo row)
    """
    _, TH, W, cin = x_ref.shape
    seg = seg_ref.shape[-1]
    HID = hpad_ref.shape[-1]
    cab = wab_ref.shape[-1]
    t = pl.program_id(1)
    n_t = pl.num_programs(1)
    R2 = (TH + 2) * W

    # ---- conv1 (3x3 seg -> 128), computed in-VMEM for TH+2 hidden rows (1-row halo) ----
    # dx = sublane slice of the column-padded seg window; dy = contiguous row slice.
    h = jnp.zeros((R2, HID), jnp.float32)
    for dx in range(3):
        slab = seg_ref[:, dx:dx + W, :].reshape((TH + 4) * W, seg)
        for dy in range(3):
            h = h + jnp.dot(slab[dy * W:(dy + TH + 2) * W, :], w1_ref[dy * 3 + dx],
                            preferred_element_type=jnp.float32)
    h = jnp.maximum(h + b1_ref[...], 0.0)

    # ---- stash hidden rows (bf16) into the column-padded scratch ----
    # Border columns are re-zeroed every step (two narrow stores); a "zero once" guard
    # would be unsafe when the parallel grid is split across TensorCores.
    zcol = jnp.zeros((TH + 2, 1, HID), hpad_ref.dtype)
    hpad_ref[:, 0:1, :] = zcol
    hpad_ref[:, W + 1:W + 2, :] = zcol
    hpad_ref[:, 1:W + 1, :] = h.reshape(TH + 2, W, HID).astype(hpad_ref.dtype)

    # Halo hidden rows outside the image are the alpha/beta conv's zero padding.
    @pl.when(t == 0)
    def _():
        hpad_ref[0:1, :, :] = jnp.zeros((1, W + 2, HID), hpad_ref.dtype)

    @pl.when(t == n_t - 1)
    def _():
        hpad_ref[TH + 1:TH + 2, :, :] = jnp.zeros((1, W + 2, HID), hpad_ref.dtype)

    # ---- fused alpha/beta conv (3x3, 128 -> 2*cin); dy taps grouped along K (K=384) ----
    acc = jnp.zeros((TH * W, cab), jnp.float32)
    for dx in range(3):
        slab = hpad_ref[:, dx:dx + W, :].reshape(R2, HID)
        kcat = jnp.concatenate([slab[dy * W:(dy + TH) * W, :] for dy in range(3)], axis=-1)
        acc = acc + jnp.dot(kcat, wab_ref[dx], preferred_element_type=jnp.float32)
    ab = acc + bab_ref[...]            # (TH*W, 2*cin); alpha half already includes the +1

    # ---- positional norm of x (over channels) + affine modulation ----
    xv = x_ref[0].reshape(TH * W, cin)
    mean = jnp.mean(xv, axis=-1, keepdims=True)
    xc = xv - mean
    nrm = jnp.sqrt(jnp.sum(xc * xc, axis=-1, keepdims=True)) + 1e-6   # matches torch: ||x||+1e-6
    xn = xc / nrm
    out = xn * ab[:, :cin] + ab[:, cin:]
    out_ref[...] = out.reshape(1, TH, W, cin).astype(out_ref.dtype)


# ---------------- generation-aware VMEM accounting / tiling ----------------
def _round_up(v, m):
    return (v + m - 1) // m * m


def _vmem_capacity_bytes():
    try:
        return int(pltpu.get_tpu_info().vmem_capacity_bytes)
    except Exception:
        return 128 * 1024 * 1024   # v5e / v6e default


def _vmem_limit_bytes():
    # ~75% of physical per-core VMEM: 48 MiB on v7x (64 MiB cores), 96 MiB on v5e/v6e.
    return int(min((_vmem_capacity_bytes() * 3) // 4, 100 * 1024 * 1024))


def _tile_vmem_bytes(th, W, seg, cin):
    """Per-step VMEM estimate: double-buffered pipeline tiles + scratch + matmul transients."""
    lane = lambda c: _round_up(c, 128)
    sub = lambda r: _round_up(r, 8)
    r2 = (th + 2) * W
    b = (th + 2) * sub(W + 2) * HIDDEN * 2                 # hpad scratch (bf16)
    b += 2 * (th + 4) * sub(W + 2) * lane(seg) * 2         # seg tile, double-buffered (bf16)
    b += 4 * th * sub(W) * lane(cin) * 4                   # x + out tiles, double-buffered (f32)
    b += r2 * HIDDEN * 4                                   # conv1 accumulator h (f32)
    b += th * W * 3 * HIDDEN * 2                           # K-grouped alpha/beta operand (bf16)
    b += th * W * lane(2 * cin) * 4                        # alpha/beta accumulator (f32)
    b += 9 * sub(seg) * HIDDEN * 2 + 9 * HIDDEN * lane(2 * cin) * 2   # weights
    return b


def _auto_tile_h(H, W, seg, cin, N):
    """Largest row tile dividing H that fits the per-generation VMEM budget (and keeps
    at least two grid steps when N == 1 so both v7x TensorCores get work)."""
    budget = int(_vmem_limit_bytes() * 0.7)
    cand_set = {H} | {th for th in (1024, 512, 256, 128, 64, 32, 16, 8, 4, 2, 1)
                      if th <= H and H % th == 0}
    cands = sorted(cand_set, reverse=True)
    fitting = [th for th in cands if _tile_vmem_bytes(th, W, seg, cin) <= budget]
    if not fitting:
        return cands[-1]
    if N == 1:
        multi = [th for th in fitting if H // th >= 2]
        if multi:
            return multi[0]
    return fitting[0]


def spade_forward(x_nchw, s_nchw, params, tile_h=None):
    """x_nchw: (N, cin, H, W); s_nchw: (N, seg_dim, Hs, Ws). Returns (N, cin, H, W)."""
    w1, b1, wa, ba, wb, bb = params
    N, cin, H, W = x_nchw.shape
    seg = s_nchw.shape[1]

    if tile_h is None or tile_h <= 0 or H % tile_h != 0:
        tile_h = _auto_tile_h(H, W, seg, cin, N)
    TH = tile_h
    T = H // TH

    # glue: bilinear resize (align_corners=False semantics), NCHW -> NHWC, bf16 EARLY
    s_r = jax.image.resize(s_nchw.astype(jnp.float32), (N, seg, H, W), method="bilinear")
    s_nhwc = jnp.transpose(s_r, (0, 2, 3, 1)).astype(jnp.bfloat16)

    # conv1 zero padding: 1 col each side; 2 rows top/bottom (1 conv pad + 1 hidden-halo row)
    s_pad = jnp.pad(s_nhwc, ((0, 0), (2, 2), (1, 1), (0, 0)))
    # overlapping (TH+4)-row windows: each tile recomputes its 1-row hidden halo locally,
    # so there is no cross-tile dependence.  Raw seg rows: ~9x less HBM than the old im2col.
    ridx = jnp.arange(T)[:, None] * TH + jnp.arange(TH + 4)[None, :]
    seg_tiles = s_pad[:, ridx].reshape(N * T * (TH + 4), W + 2, seg)

    x_nhwc = jnp.transpose(x_nchw, (0, 2, 3, 1)).astype(jnp.float32)

    # weights: conv1 tap-major bf16; alpha/beta fused with dy taps stacked along K per dx;
    # the "+1" of x*(1+a)+b is folded into the (f32) alpha bias.
    w1_bf = w1.astype(jnp.bfloat16)                                       # (9, seg, 128)
    b1f = b1.astype(jnp.float32)                                          # (1, 128)
    wab_tap = jnp.concatenate([wa, wb], axis=-1)                          # (9, 128, 2*cin)
    wab_g = jnp.stack(
        [jnp.concatenate([wab_tap[dy * 3 + dx] for dy in range(3)], axis=0)
         for dx in range(3)], axis=0).astype(jnp.bfloat16)                # (3, 384, 2*cin)
    bab = jnp.concatenate([ba + 1.0, bb], axis=-1).astype(jnp.float32)    # (1, 2*cin)

    out_nhwc = pl.pallas_call(
        spade_kernel,
        out_shape=jax.ShapeDtypeStruct((N, H, W, cin), jnp.float32),
        grid_spec=pltpu.PrefetchScalarGridSpec(
            num_scalar_prefetch=0,
            grid=(N, T),
            in_specs=[
                pl.BlockSpec((1, TH, W, cin), lambda n, t: (n, t, 0, 0)),
                pl.BlockSpec((TH + 4, W + 2, seg), lambda n, t: (n * T + t, 0, 0)),
                pl.BlockSpec((9, seg, HIDDEN), lambda n, t: (0, 0, 0)),
                pl.BlockSpec((1, HIDDEN), lambda n, t: (0, 0)),
                pl.BlockSpec((3, 3 * HIDDEN, 2 * cin), lambda n, t: (0, 0, 0)),
                pl.BlockSpec((1, 2 * cin), lambda n, t: (0, 0)),
            ],
            out_specs=pl.BlockSpec((1, TH, W, cin), lambda n, t: (n, t, 0, 0)),
            scratch_shapes=[pltpu.VMEM((TH + 2, W + 2, HIDDEN), jnp.bfloat16)],
        ),
        compiler_params=pltpu.CompilerParams(
            dimension_semantics=("parallel", "parallel"),
            vmem_limit_bytes=_vmem_limit_bytes(),
        ),
    )(x_nhwc, seg_tiles, w1_bf, b1f, wab_g, bab)

    return jnp.transpose(out_nhwc, (0, 3, 1, 2))


def init_spade_params(key, cin, seg_dim):
    """Deterministic init. Weights stored tap-major: (9, Cin, Cout); biases (1, Cout)."""
    ks = jax.random.split(key, 6)

    def conv_params(kw, kb, cin_, cout):
        fan_in = cin_ * 9
        bound = 1.0 / (fan_in ** 0.5)
        w = jax.random.uniform(kw, (9, cin_, cout), jnp.float32, -bound, bound)
        b = jax.random.uniform(kb, (1, cout), jnp.float32, -bound, bound)
        return w, b

    w1, b1 = conv_params(ks[0], ks[1], seg_dim, HIDDEN)
    wa, ba = conv_params(ks[2], ks[3], HIDDEN, cin)
    wb, bb = conv_params(ks[4], ks[5], HIDDEN, cin)
    return (w1, b1, wa, ba, wb, bb)


# ---------------- pure-JAX reference (for correctness check only) ----------------
def _to_oihw(w_tap):
    _, ci, co = w_tap.shape
    return jnp.transpose(w_tap.reshape(3, 3, ci, co), (3, 2, 0, 1))


def _conv3x3(x, w_oihw, b):
    y = lax.conv_general_dilated(x, w_oihw, window_strides=(1, 1),
                                 padding=((1, 1), (1, 1)),
                                 dimension_numbers=("NCHW", "OIHW", "NCHW"))
    return y + b.reshape(1, -1, 1, 1)


def spade_reference(x, s, params):
    w1, b1, wa, ba, wb, bb = params
    N, cin, H, W = x.shape
    seg = s.shape[1]
    s_r = jax.image.resize(s, (N, seg, H, W), method="bilinear")
    h = jax.nn.relu(_conv3x3(s_r, _to_oihw(w1), b1))
    a = _conv3x3(h, _to_oihw(wa), ba)
    b = _conv3x3(h, _to_oihw(wb), bb)
    mean = jnp.mean(x, axis=1, keepdims=True)
    xc = x - mean
    norm = jnp.sqrt(jnp.sum(xc * xc, axis=1, keepdims=True)) + 1e-6
    return (xc / norm) * (1.0 + a) + b


if __name__ == "__main__":
    key = jax.random.PRNGKey(0)
    kx, ks_, kp = jax.random.split(key, 3)

    N, cin, H, W = 2, 4, 16, 16
    seg_dim, Hs, Ws = 3, 8, 8

    x = jax.random.normal(kx, (N, cin, H, W), jnp.float32)
    s = jax.random.normal(ks_, (N, seg_dim, Hs, Ws), jnp.float32)
    params = init_spade_params(kp, cin, seg_dim)

    ref = spade_reference(x, s, params)

    # exercise both the multi-row-tile (halo recompute) path and the single-tile path
    for th in (8, None):
        out = spade_forward(x, s, params, tile_h=th)
        jax.block_until_ready(out)
        assert out.shape == (N, cin, H, W)
        # bf16 MXU operands (f32 accumulation) -> correspondingly relaxed tolerance
        assert jnp.allclose(out, ref, atol=3e-2, rtol=3e-2), "mismatch vs JAX reference"

    print("KERNEL_OK")
</pallas_src>

<mosaic_0001>
module attributes {stable_mosaic.version = 11 : i64} {
  func.func @spade_kernel(%arg0: i32, %arg1: i32, %arg2: memref<1x8x16x4xf32, #tpu.memory_space<vmem>>, %arg3: memref<12x18x3xbf16, #tpu.memory_space<vmem>>, %arg4: memref<9x3x128xbf16, #tpu.memory_space<vmem>>, %arg5: memref<1x128xf32, #tpu.memory_space<vmem>>, %arg6: memref<3x384x8xbf16, #tpu.memory_space<vmem>>, %arg7: memref<1x8xf32, #tpu.memory_space<vmem>>, %arg8: memref<1x8x16x4xf32, #tpu.memory_space<vmem>>, %arg9: memref<10x18x128xbf16, #tpu.memory_space<vmem>>) attributes {dimension_semantics = [#tpu.dimension_semantics<parallel>, #tpu.dimension_semantics<parallel>], iteration_bounds = array<i64: 2, 2>, scalar_prefetch = 0 : i64, scratch_operands = 1 : i64, tpu.core_type = #tpu.core_type<tc>, window_params = [{transform_indices = @transform_0, window_bounds = array<i64: 1, 8, 16, 4>}, {transform_indices = @transform_1, window_bounds = array<i64: 12, 18, 3>}, {pipeline_mode = #tpu.pipeline_mode<synchronous>, transform_indices = @transform_2, window_bounds = array<i64: 9, 3, 128>}, {pipeline_mode = #tpu.pipeline_mode<synchronous>, transform_indices = @transform_3, window_bounds = array<i64: 1, 128>}, {pipeline_mode = #tpu.pipeline_mode<synchronous>, transform_indices = @transform_4, window_bounds = array<i64: 3, 384, 8>}, {pipeline_mode = #tpu.pipeline_mode<synchronous>, transform_indices = @transform_5, window_bounds = array<i64: 1, 8>}, {transform_indices = @transform_6, window_bounds = array<i64: 1, 8, 16, 4>}]} {
    %cst = arith.constant 0.000000e+00 : f32
    %0 = vector.broadcast %cst : f32 to vector<160x128xf32>
    %c0 = arith.constant 0 : index
    %c0_0 = arith.constant 0 : index
    %c0_1 = arith.constant 0 : index
    %1 = vector.load %arg3[%c0, %c0_0, %c0_1] : memref<12x18x3xbf16, #tpu.memory_space<vmem>>, vector<12x16x3xbf16>
    %2 = vector.shape_cast %1 : vector<12x16x3xbf16> to vector<192x3xbf16>
    %3 = vector.extract_strided_slice %2 {offsets = [0, 0], sizes = [160, 3], strides = [1, 1]} : vector<192x3xbf16> to vector<160x3xbf16>
    %c0_2 = arith.constant 0 : index
    %c0_3 = arith.constant 0 : index
    %c0_4 = arith.constant 0 : index
    %4 = vector.load %arg4[%c0_2, %c0_3, %c0_4] : memref<9x3x128xbf16, #tpu.memory_space<vmem>>, vector<1x3x128xbf16>
    %5 = vector.shape_cast %4 : vector<1x3x128xbf16> to vector<3x128xbf16>
    %cst_5 = arith.constant dense<0.000000e+00> : vector<160x128xf32>
    %6 = tpu.matmul %3, %5, %cst_5 {dimension_numbers = #tpu.dot_dimension_numbers<[1], [0], [0], [1], [0, 0, 1, 1], [], []>} : vector<160x3xbf16>, vector<3x128xbf16>, vector<160x128xf32> -> vector<160x128xf32>
    %7 = arith.addf %0, %6 : vector<160x128xf32>
    %8 = vector.extract_strided_slice %2 {offsets = [16, 0], sizes = [160, 3], strides = [1, 1]} : vector<192x3xbf16> to vector<160x3xbf16>
    %c3 = arith.constant 3 : index
    %c0_6 = arith.constant 0 : index
    %c0_7 = arith.constant 0 : index
    %9 = vector.load %arg4[%c3, %c0_6, %c0_7] : memref<9x3x128xbf16, #tpu.memory_space<vmem>>, vector<1x3x128xbf16>
    %10 = vector.shape_cast %9 : vector<1x3x128xbf16> to vector<3x128xbf16>
    %cst_8 = arith.constant dense<0.000000e+00> : vector<160x128xf32>
    %11 = tpu.matmul %8, %10, %cst_8 {dimension_numbers = #tpu.dot_dimension_numbers<[1], [0], [0], [1], [0, 0, 1, 1], [], []>} : vector<160x3xbf16>, vector<3x128xbf16>, vector<160x128xf32> -> vector<160x128xf32>
    %12 = arith.addf %7, %11 : vector<160x128xf32>
    %13 = vector.extract_strided_slice %2 {offsets = [32, 0], sizes = [160, 3], strides = [1, 1]} : vector<192x3xbf16> to vector<160x3xbf16>
    %c6 = arith.constant 6 : index
    %c0_9 = arith.constant 0 : index
    %c0_10 = arith.constant 0 : index
    %14 = vector.load %arg4[%c6, %c0_9, %c0_10] : memref<9x3x128xbf16, #tpu.memory_space<vmem>>, vector<1x3x128xbf16>
    %15 = vector.shape_cast %14 : vector<1x3x128xbf16> to vector<3x128xbf16>
    %cst_11 = arith.constant dense<0.000000e+00> : vector<160x128xf32>
    %16 = tpu.matmul %13, %15, %cst_11 {dimension_numbers = #tpu.dot_dimension_numbers<[1], [0], [0], [1], [0, 0, 1, 1], [], []>} : vector<160x3xbf16>, vector<3x128xbf16>, vector<160x128xf32> -> vector<160x128xf32>
    %17 = arith.addf %12, %16 : vector<160x128xf32>
    %c0_12 = arith.constant 0 : index
    %c1 = arith.constant 1 : index
    %c0_13 = arith.constant 0 : index
    %18 = vector.load %arg3[%c0_12, %c1, %c0_13] : memref<12x18x3xbf16, #tpu.memory_space<vmem>>, vector<12x16x3xbf16>
    %19 = vector.shape_cast %18 : vector<12x16x3xbf16> to vector<192x3xbf16>
    %20 = vector.extract_strided_slice %19 {offsets = [0, 0], sizes = [160, 3], strides = [1, 1]} : vector<192x3xbf16> to vector<160x3xbf16>
    %c1_14 = arith.constant 1 : index
    %c0_15 = arith.constant 0 : index
    %c0_16 = arith.constant 0 : index
    %21 = vector.load %arg4[%c1_14, %c0_15, %c0_16] : memref<9x3x128xbf16, #tpu.memory_space<vmem>>, vector<1x3x128xbf16>
    %22 = vector.shape_cast %21 : vector<1x3x128xbf16> to vector<3x128xbf16>
    %cst_17 = arith.constant dense<0.000000e+00> : vector<160x128xf32>
    %23 = tpu.matmul %20, %22, %cst_17 {dimension_numbers = #tpu.dot_dimension_numbers<[1], [0], [0], [1], [0, 0, 1, 1], [], []>} : vector<160x3xbf16>, vector<3x128xbf16>, vector<160x128xf32> -> vector<160x128xf32>
    %24 = arith.addf %17, %23 : vector<160x128xf32>
    %25 = vector.extract_strided_slice %19 {offsets = [16, 0], sizes = [160, 3], strides = [1, 1]} : vector<192x3xbf16> to vector<160x3xbf16>
    %c4 = arith.constant 4 : index
    %c0_18 = arith.constant 0 : index
    %c0_19 = arith.constant 0 : index
    %26 = vector.load %arg4[%c4, %c0_18, %c0_19] : memref<9x3x128xbf16, #tpu.memory_space<vmem>>, vector<1x3x128xbf16>
    %27 = vector.shape_cast %26 : vector<1x3x128xbf16> to vector<3x128xbf16>
    %cst_20 = arith.constant dense<0.000000e+00> : vector<160x128xf32>
    %28 = tpu.matmul %25, %27, %cst_20 {dimension_numbers = #tpu.dot_dimension_numbers<[1], [0], [0], [1], [0, 0, 1, 1], [], []>} : vector<160x3xbf16>, vector<3x128xbf16>, vector<160x128xf32> -> vector<160x128xf32>
    %29 = arith.addf %24, %28 : vector<160x128xf32>
    %30 = vector.extract_strided_slice %19 {offsets = [32, 0], sizes = [160, 3], strides = [1, 1]} : vector<192x3xbf16> to vector<160x3xbf16>
    %c7 = arith.constant 7 : index
    %c0_21 = arith.constant 0 : index
    %c0_22 = arith.constant 0 : index
    %31 = vector.load %arg4[%c7, %c0_21, %c0_22] : memref<9x3x128xbf16, #tpu.memory_space<vmem>>, vector<1x3x128xbf16>
    %32 = vector.shape_cast %31 : vector<1x3x128xbf16> to vector<3x128xbf16>
    %cst_23 = arith.constant dense<0.000000e+00> : vector<160x128xf32>
    %33 = tpu.matmul %30, %32, %cst_23 {dimension_numbers = #tpu.dot_dimension_numbers<[1], [0], [0], [1], [0, 0, 1, 1], [], []>} : vector<160x3xbf16>, vector<3x128xbf16>, vector<160x128xf32> -> vector<160x128xf32>
    %34 = arith.addf %29, %33 : vector<160x128xf32>
    %c0_24 = arith.constant 0 : index
    %c2 = arith.constant 2 : index
    %c0_25 = arith.constant 0 : index
    %35 = vector.load %arg3[%c0_24, %c2, %c0_25] : memref<12x18x3xbf16, #tpu.memory_space<vmem>>, vector<12x16x3xbf16>
    %36 = vector.shape_cast %35 : vector<12x16x3xbf16> to vector<192x3xbf16>
    %37 = vector.extract_strided_slice %36 {offsets = [0, 0], sizes = [160, 3], strides = [1, 1]} : vector<192x3xbf16> to vector<160x3xbf16>
    %c2_26 = arith.constant 2 : index
    %c0_27 = arith.constant 0 : index
    %c0_28 = arith.constant 0 : index
    %38 = vector.load %arg4[%c2_26, %c0_27, %c0_28] : memref<9x3x128xbf16, #tpu.memory_space<vmem>>, vector<1x3x128xbf16>
    %39 = vector.shape_cast %38 : vector<1x3x128xbf16> to vector<3x128xbf16>
    %cst_29 = arith.constant dense<0.000000e+00> : vector<160x128xf32>
    %40 = tpu.matmul %37, %39, %cst_29 {dimension_numbers = #tpu.dot_dimension_numbers<[1], [0], [0], [1], [0, 0, 1, 1], [], []>} : vector<160x3xbf16>, vector<3x128xbf16>, vector<160x128xf32> -> vector<160x128xf32>
    %41 = arith.addf %34, %40 : vector<160x128xf32>
    %42 = vector.extract_strided_slice %36 {offsets = [16, 0], sizes = [160, 3], strides = [1, 1]} : vector<192x3xbf16> to vector<160x3xbf16>
    %c5 = arith.constant 5 : index
    %c0_30 = arith.constant 0 : index
    %c0_31 = arith.constant 0 : index
    %43 = vector.load %arg4[%c5, %c0_30, %c0_31] : memref<9x3x128xbf16, #tpu.memory_space<vmem>>, vector<1x3x128xbf16>
    %44 = vector.shape_cast %43 : vector<1x3x128xbf16> to vector<3x128xbf16>
    %cst_32 = arith.constant dense<0.000000e+00> : vector<160x128xf32>
    %45 = tpu.matmul %42, %44, %cst_32 {dimension_numbers = #tpu.dot_dimension_numbers<[1], [0], [0], [1], [0, 0, 1, 1], [], []>} : vector<160x3xbf16>, vector<3x128xbf16>, vector<160x128xf32> -> vector<160x128xf32>
    %46 = arith.addf %41, %45 : vector<160x128xf32>
    %47 = vector.extract_strided_slice %36 {offsets = [32, 0], sizes = [160, 3], strides = [1, 1]} : vector<192x3xbf16> to vector<160x3xbf16>
    %c8 = arith.constant 8 : index
    %c0_33 = arith.constant 0 : index
    %c0_34 = arith.constant 0 : index
    %48 = vector.load %arg4[%c8, %c0_33, %c0_34] : memref<9x3x128xbf16, #tpu.memory_space<vmem>>, vector<1x3x128xbf16>
    %49 = vector.shape_cast %48 : vector<1x3x128xbf16> to vector<3x128xbf16>
    %cst_35 = arith.constant dense<0.000000e+00> : vector<160x128xf32>
    %50 = tpu.matmul %47, %49, %cst_35 {dimension_numbers = #tpu.dot_dimension_numbers<[1], [0], [0], [1], [0, 0, 1, 1], [], []>} : vector<160x3xbf16>, vector<3x128xbf16>, vector<160x128xf32> -> vector<160x128xf32>
    %51 = arith.addf %46, %50 : vector<160x128xf32>
    %c0_36 = arith.constant 0 : index
    %c0_37 = arith.constant 0 : index
    %52 = vector.load %arg5[%c0_36, %c0_37] : memref<1x128xf32, #tpu.memory_space<vmem>>, vector<1x128xf32>
    %53 = vector.broadcast %52 : vector<1x128xf32> to vector<160x128xf32>
    %54 = arith.addf %51, %53 : vector<160x128xf32>
    %cst_38 = arith.constant 0.000000e+00 : f32
    %55 = vector.broadcast %cst_38 : f32 to vector<160x128xf32>
    %56 = arith.maximumf %54, %55 : vector<160x128xf32>
    %cst_39 = arith.constant 0.000000e+00 : bf16
    %57 = vector.broadcast %cst_39 : bf16 to vector<10x1x128xbf16>
    %c0_40 = arith.constant 0 : index
    %c0_41 = arith.constant 0 : index
    %c0_42 = arith.constant 0 : index
    %58 = vector.load %arg9[%c0_40, %c0_41, %c0_42] : memref<10x18x128xbf16, #tpu.memory_space<vmem>>, vector<10x1x128xbf16>
    tpu.vector_store %arg9[%c0_40, %c0_41, %c0_42], %57 {strides = array<i32>} : memref<10x18x128xbf16, #tpu.memory_space<vmem>>, vector<10x1x128xbf16>,
    %c0_43 = arith.constant 0 : index
    %c17 = arith.constant 17 : index
    %c0_44 = arith.constant 0 : index
    %59 = vector.load %arg9[%c0_43, %c17, %c0_44] : memref<10x18x128xbf16, #tpu.memory_space<vmem>>, vector<10x1x128xbf16>
    tpu.vector_store %arg9[%c0_43, %c17, %c0_44], %57 {strides = array<i32>} : memref<10x18x128xbf16, #tpu.memory_space<vmem>>, vector<10x1x128xbf16>,
    %60 = vector.shape_cast %56 : vector<160x128xf32> to vector<10x16x128xf32>
    %61 = arith.truncf %60 : vector<10x16x128xf32> to vector<10x16x128xbf16>
    %c0_45 = arith.constant 0 : index
    %c1_46 = arith.constant 1 : index
    %c0_47 = arith.constant 0 : index
    %62 = vector.load %arg9[%c0_45, %c1_46, %c0_47] : memref<10x18x128xbf16, #tpu.memory_space<vmem>>, vector<10x16x128xbf16>
    tpu.vector_store %arg9[%c0_45, %c1_46, %c0_47], %61 {strides = array<i32>} : memref<10x18x128xbf16, #tpu.memory_space<vmem>>, vector<10x16x128xbf16>,
    %c0_i32 = arith.constant 0 : i32
    %63 = arith.cmpi eq, %arg1, %c0_i32 : i32
    %64 = arith.extui %63 : i1 to i32
    %c0_i32_48 = arith.constant 0 : i32
    %65 = arith.cmpi ne, %64, %c0_i32_48 : i32
    scf.if %65 {
      %cst_86 = arith.constant 0.000000e+00 : bf16
      %126 = vector.broadcast %cst_86 : bf16 to vector<1x18x128xbf16>
      %c0_87 = arith.constant 0 : index
      %c0_88 = arith.constant 0 : index
      %c0_89 = arith.constant 0 : index
      %127 = vector.load %arg9[%c0_87, %c0_88, %c0_89] : memref<10x18x128xbf16, #tpu.memory_space<vmem>>, vector<1x18x128xbf16>
      tpu.vector_store %arg9[%c0_87, %c0_88, %c0_89], %126 {strides = array<i32>} : memref<10x18x128xbf16, #tpu.memory_space<vmem>>, vector<1x18x128xbf16>,
    } else {
    }
    %c1_i32 = arith.constant 1 : i32
    %66 = arith.cmpi eq, %arg1, %c1_i32 : i32
    %67 = arith.extui %66 : i1 to i32
    %c0_i32_49 = arith.constant 0 : i32
    %68 = arith.cmpi ne, %67, %c0_i32_49 : i32
    scf.if %68 {
      %cst_86 = arith.constant 0.000000e+00 : bf16
      %126 = vector.broadcast %cst_86 : bf16 to vector<1x18x128xbf16>
      %c9 = arith.constant 9 : index
      %c0_87 = arith.constant 0 : index
      %c0_88 = arith.constant 0 : index
      %127 = vector.load %arg9[%c9, %c0_87, %c0_88] : memref<10x18x128xbf16, #tpu.memory_space<vmem>>, vector<1x18x128xbf16>
      tpu.vector_store %arg9[%c9, %c0_87, %c0_88], %126 {strides = array<i32>} : memref<10x18x128xbf16, #tpu.memory_space<vmem>>, vector<1x18x128xbf16>,
    } else {
    }
    %cst_50 = arith.constant 0.000000e+00 : f32
    %69 = vector.broadcast %cst_50 : f32 to vector<128x8xf32>
    %c0_51 = arith.constant 0 : index
    %c0_52 = arith.constant 0 : index
    %c0_53 = arith.constant 0 : index
    %70 = vector.load %arg9[%c0_51, %c0_52, %c0_53] : memref<10x18x128xbf16, #tpu.memory_space<vmem>>, vector<10x16x128xbf16>
    %71 = vector.shape_cast %70 : vector<10x16x128xbf16> to vector<160x128xbf16>
    %72 = vector.extract_strided_slice %71 {offsets = [0, 0], sizes = [128, 128], strides = [1, 1]} : vector<160x128xbf16> to vector<128x128xbf16>
    %73 = vector.extract_strided_slice %71 {offsets = [16, 0], sizes = [128, 128], strides = [1, 1]} : vector<160x128xbf16> to vector<128x128xbf16>
    %74 = vector.extract_strided_slice %71 {offsets = [32, 0], sizes = [128, 128], strides = [1, 1]} : vector<160x128xbf16> to vector<128x128xbf16>
    %75 = tpu.concatenate %72, %73, %74 in 1 : vector<128x128xbf16>, vector<128x128xbf16>, vector<128x128xbf16> -> vector<128x384xbf16>
    %c0_54 = arith.constant 0 : index
    %c0_55 = arith.constant 0 : index
    %c0_56 = arith.constant 0 : index
    %76 = vector.load %arg6[%c0_54, %c0_55, %c0_56] : memref<3x384x8xbf16, #tpu.memory_space<vmem>>, vector<1x384x8xbf16>
    %77 = vector.shape_cast %76 : vector<1x384x8xbf16> to vector<384x8xbf16>
    %cst_57 = arith.constant dense<0.000000e+00> : vector<128x8xf32>
    %78 = tpu.matmul %75, %77, %cst_57 {dimension_numbers = #tpu.dot_dimension_numbers<[1], [0], [0], [1], [0, 0, 1, 1], [], []>} : vector<128x384xbf16>, vector<384x8xbf16>, vector<128x8xf32> -> vector<128x8xf32>
    %79 = arith.addf %69, %78 : vector<128x8xf32>
    %c0_58 = arith.constant 0 : index
    %c1_59 = arith.constant 1 : index
    %c0_60 = arith.constant 0 : index
    %80 = vector.load %arg9[%c0_58, %c1_59, %c0_60] : memref<10x18x128xbf16, #tpu.memory_space<vmem>>, vector<10x16x128xbf16>
    %81 = vector.shape_cast %80 : vector<10x16x128xbf16> to vector<160x128xbf16>
    %82 = vector.extract_strided_slice %81 {offsets = [0, 0], sizes = [128, 128], strides = [1, 1]} : vector<160x128xbf16> to vector<128x128xbf16>
    %83 = vector.extract_strided_slice %81 {offsets = [16, 0], sizes = [128, 128], strides = [1, 1]} : vector<160x128xbf16> to vector<128x128xbf16>
    %84 = vector.extract_strided_slice %81 {offsets = [32, 0], sizes = [128, 128], strides = [1, 1]} : vector<160x128xbf16> to vector<128x128xbf16>
    %85 = tpu.concatenate %82, %83, %84 in 1 : vector<128x128xbf16>, vector<128x128xbf16>, vector<128x128xbf16> -> vector<128x384xbf16>
    %c1_61 = arith.constant 1 : index
    %c0_62 = arith.constant 0 : index
    %c0_63 = arith.constant 0 : index
    %86 = vector.load %arg6[%c1_61, %c0_62, %c0_63] : memref<3x384x8xbf16, #tpu.memory_space<vmem>>, vector<1x384x8xbf16>
    %87 = vector.shape_cast %86 : vector<1x384x8xbf16> to vector<384x8xbf16>
    %cst_64 = arith.constant dense<0.000000e+00> : vector<128x8xf32>
    %88 = tpu.matmul %85, %87, %cst_64 {dimension_numbers = #tpu.dot_dimension_numbers<[1], [0], [0], [1], [0, 0, 1, 1], [], []>} : vector<128x384xbf16>, vector<384x8xbf16>, vector<128x8xf32> -> vector<128x8xf32>
    %89 = arith.addf %79, %88 : vector<128x8xf32>
    %c0_65 = arith.constant 0 : index
    %c2_66 = arith.constant 2 : index
    %c0_67 = arith.constant 0 : index
    %90 = vector.load %arg9[%c0_65, %c2_66, %c0_67] : memref<10x18x128xbf16, #tpu.memory_space<vmem>>, vector<10x16x128xbf16>
    %91 = vector.shape_cast %90 : vector<10x16x128xbf16> to vector<160x128xbf16>
    %92 = vector.extract_strided_slice %91 {offsets = [0, 0], sizes = [128, 128], strides = [1, 1]} : vector<160x128xbf16> to vector<128x128xbf16>
    %93 = vector.extract_strided_slice %91 {offsets = [16, 0], sizes = [128, 128], strides = [1, 1]} : vector<160x128xbf16> to vector<128x128xbf16>
    %94 = vector.extract_strided_slice %91 {offsets = [32, 0], sizes = [128, 128], strides = [1, 1]} : vector<160x128xbf16> to vector<128x128xbf16>
    %95 = tpu.concatenate %92, %93, %94 in 1 : vector<128x128xbf16>, vector<128x128xbf16>, vector<128x128xbf16> -> vector<128x384xbf16>
    %c2_68 = arith.constant 2 : index
    %c0_69 = arith.constant 0 : index
    %c0_70 = arith.constant 0 : index
    %96 = vector.load %arg6[%c2_68, %c0_69, %c0_70] : memref<3x384x8xbf16, #tpu.memory_space<vmem>>, vector<1x384x8xbf16>
    %97 = vector.shape_cast %96 : vector<1x384x8xbf16> to vector<384x8xbf16>
    %cst_71 = arith.constant dense<0.000000e+00> : vector<128x8xf32>
    %98 = tpu.matmul %95, %97, %cst_71 {dimension_numbers = #tpu.dot_dimension_numbers<[1], [0], [0], [1], [0, 0, 1, 1], [], []>} : vector<128x384xbf16>, vector<384x8xbf16>, vector<128x8xf32> -> vector<128x8xf32>
    %99 = arith.addf %89, %98 : vector<128x8xf32>
    %c0_72 = arith.constant 0 : index
    %c0_73 = arith.constant 0 : index
    %100 = vector.load %arg7[%c0_72, %c0_73] : memref<1x8xf32, #tpu.memory_space<vmem>>, vector<1x8xf32>
    %101 = vector.broadcast %100 : vector<1x8xf32> to vector<128x8xf32>
    %102 = arith.addf %99, %101 : vector<128x8xf32>
    %c0_74 = arith.constant 0 : index
    %c0_75 = arith.constant 0 : index
    %c0_76 = arith.constant 0 : index
    %c0_77 = arith.constant 0 : index
    %103 = vector.load %arg2[%c0_74, %c0_75, %c0_76, %c0_77] : memref<1x8x16x4xf32, #tpu.memory_space<vmem>>, vector<1x8x16x4xf32>
    %104 = vector.shape_cast %103 : vector<1x8x16x4xf32> to vector<8x16x4xf32>
    %105 = vector.shape_cast %104 : vector<8x16x4xf32> to vector<128x4xf32>
    %cst_78 = arith.constant dense<0.000000e+00> : vector<128xf32>
    %106 = vector.multi_reduction <add>, %105, %cst_78 [1] : vector<128x4xf32> to vector<128xf32>
    %107 = vector.shape_cast %106 : vector<128xf32> to vector<128x1xf32>
    %cst_79 = arith.constant 4.000000e+00 : f32
    %108 = vector.broadcast %cst_79 : f32 to vector<128x1xf32>
    %109 = arith.divf %107, %108 : vector<128x1xf32>
    %110 = vector.broadcast %109 : vector<128x1xf32> to vector<128x4xf32>
    %111 = arith.subf %105, %110 : vector<128x4xf32>
    %112 = arith.mulf %111, %111 : vector<128x4xf32>
    %cst_80 = arith.constant dense<0.000000e+00> : vector<128xf32>
    %113 = vector.multi_reduction <add>, %112, %cst_80 [1] : vector<128x4xf32> to vector<128xf32>
    %114 = vector.shape_cast %113 : vector<128xf32> to vector<128x1xf32>
    %115 = math.sqrt %114 : vector<128x1xf32>
    %cst_81 = arith.constant 9.99999997E-7 : f32
    %116 = vector.broadcast %cst_81 : f32 to vector<128x1xf32>
    %117 = arith.addf %115, %116 : vector<128x1xf32>
    %118 = vector.broadcast %117 : vector<128x1xf32> to vector<128x4xf32>
    %119 = arith.divf %111, %118 : vector<128x4xf32>
    %120 = vector.extract_strided_slice %102 {offsets = [0, 0], sizes = [128, 4], strides = [1, 1]} : vector<128x8xf32> to vector<128x4xf32>
    %121 = arith.mulf %119, %120 : vector<128x4xf32>
    %122 = vector.extract_strided_slice %102 {offsets = [0, 4], sizes = [128, 4], strides = [1, 1]} : vector<128x8xf32> to vector<128x4xf32>
    %123 = arith.addf %121, %122 : vector<128x4xf32>
    %124 = vector.shape_cast %123 : vector<128x4xf32> to vector<1x8x16x4xf32>
    %c0_82 = arith.constant 0 : index
    %c0_83 = arith.constant 0 : index
    %c0_84 = arith.constant 0 : index
    %c0_85 = arith.constant 0 : index
    %125 = vector.load %arg8[%c0_82, %c0_83, %c0_84, %c0_85] : memref<1x8x16x4xf32, #tpu.memory_space<vmem>>, vector<1x8x16x4xf32>
    tpu.vector_store %arg8[%c0_82, %c0_83, %c0_84, %c0_85], %124 {strides = array<i32>} : memref<1x8x16x4xf32, #tpu.memory_space<vmem>>, vector<1x8x16x4xf32>,
    return
  }
  func.func @transform_0(%arg0: i32, %arg1: i32) -> (i32, i32, i32, i32) {
    %c0_i32 = arith.constant 0 : i32
    %c0_i32_0 = arith.constant 0 : i32
    %c0_i32_1 = arith.constant 0 : i32
    return %arg0, %arg1, %c0_i32, %c0_i32_0 : i32, i32, i32, i32
  }
  func.func @transform_1(%arg0: i32, %arg1: i32) -> (i32, i32, i32) {
    %c2_i32 = arith.constant 2 : i32
    %0 = arith.muli %arg0, %c2_i32 : i32
    %1 = arith.addi %0, %arg1 : i32
    %c0_i32 = arith.constant 0 : i32
    %c0_i32_0 = arith.constant 0 : i32
    %c0_i32_1 = arith.constant 0 : i32
    return %1, %c0_i32, %c0_i32_0 : i32, i32, i32
  }
  func.func @transform_2(%arg0: i32, %arg1: i32) -> (i32, i32, i32) {
    %c0_i32 = arith.constant 0 : i32
    %c0_i32_0 = arith.constant 0 : i32
    %c0_i32_1 = arith.constant 0 : i32
    %c0_i32_2 = arith.constant 0 : i32
    return %c0_i32, %c0_i32_0, %c0_i32_1 : i32, i32, i32
  }
  func.func @transform_3(%arg0: i32, %arg1: i32) -> (i32, i32) {
    %c0_i32 = arith.constant 0 : i32
    %c0_i32_0 = arith.constant 0 : i32
    %c0_i32_1 = arith.constant 0 : i32
    return %c0_i32, %c0_i32_0 : i32, i32
  }
  func.func @transform_4(%arg0: i32, %arg1: i32) -> (i32, i32, i32) {
    %c0_i32 = arith.constant 0 : i32
    %c0_i32_0 = arith.constant 0 : i32
    %c0_i32_1 = arith.constant 0 : i32
    %c0_i32_2 = arith.constant 0 : i32
    return %c0_i32, %c0_i32_0, %c0_i32_1 : i32, i32, i32
  }
  func.func @transform_5(%arg0: i32, %arg1: i32) -> (i32, i32) {
    %c0_i32 = arith.constant 0 : i32
    %c0_i32_0 = arith.constant 0 : i32
    %c0_i32_1 = arith.constant 0 : i32
    return %c0_i32, %c0_i32_0 : i32, i32
  }
  func.func @transform_6(%arg0: i32, %arg1: i32) -> (i32, i32, i32, i32) {
    %c0_i32 = arith.constant 0 : i32
    %c0_i32_0 = arith.constant 0 : i32
    %c0_i32_1 = arith.constant 0 : i32
    return %arg0, %arg1, %c0_i32, %c0_i32_0 : i32, i32, i32, i32
  }
}

</mosaic_0001>

<llo_original>
// kernel: tpu_custom_call.1
$region0: #{tpu_custom_call.1}
  #allocation0 [shape = 'u32[]', space=smem, size = 0x4, offset = 0x4, fixed_abs, tag = 'smem constant byte address 0x4 - core index']
  #allocation1 [shape = 'u32[144,128]{1,0:T(1,128)}', space=vmem, size = 0x12000, scoped, tag = 'internal scratch']
  #allocation2 [shape = 'bf16[10,18,128]{2,1,0:T(8,128)(2,1)}', space=vmem, size = 0xf000, scoped, tag = 'scratch operand']
  %s0 = inlined_call_operand.hbm [shape: f32[2,16,16,4], index: 0, kind: input, shape index: {}]
  %s1 = inlined_call_operand.hbm [shape: bf16[48,18,3], index: 1, kind: input, shape index: {}]
  %s2 = inlined_call_operand.hbm [shape: bf16[9,3,128], index: 2, kind: input, shape index: {}]
  %s3 = inlined_call_operand.hbm [shape: f32[1,128], index: 3, kind: input, shape index: {}]
  %s4 = inlined_call_operand.hbm [shape: bf16[3,384,8], index: 4, kind: input, shape index: {}]
  %s5 = inlined_call_operand.hbm [shape: f32[1,8], index: 5, kind: input, shape index: {}]
  %s6 = inlined_call_operand.hbm [shape: f32[2,16,16,4], index: 6, kind: output, shape index: {}]
  %s7 = sld [smem:[#allocation0]]
  $region89: #{tpu_custom_call.1} parent=0
    _
  %s9 = ssub.s32 1, %s7
  %s10 = scalar_select 0, %s9, %s7
  $region1: #{tpu_custom_call.1} parent=0
    #allocation3 [shape = 'u8[131072]{0}', space=vmem, size = 0x20000, scoped, tag = 'input window, operand 0']
    #allocation4 [shape = 's32[2]{0}', space=sflag, size = 0x8, scoped, tag = 'scoped memory for tpu_custom_call.1']
    #allocation5 [shape = 's32[2]{0}', space=sflag, size = 0x8, scoped, tag = 'scoped memory for tpu_custom_call.1']
    #allocation6 [shape = 'u8[147456]{0}', space=vmem, size = 0x24000, scoped, tag = 'input window, operand 1']
    #allocation7 [shape = 's32[2]{0}', space=sflag, size = 0x8, scoped, tag = 'scoped memory for tpu_custom_call.1']
    #allocation8 [shape = 'u8[9216]{0}', space=vmem, size = 0x2400, scoped, tag = 'input window, operand 2, single buffered']
    #allocation9 [shape = 'u8[512]{0}', space=vmem, size = 0x400, scoped, tag = 'input window, operand 3, single buffered']
    #allocation10 [shape = 's32[1]{0}', space=sflag, size = 0x4, scoped, tag = 'scoped memory for tpu_custom_call.1']
    #allocation11 [shape = 'u8[294912]{0}', space=vmem, size = 0x48000, scoped, tag = 'input window, operand 4, single buffered']
    #allocation12 [shape = 'u8[512]{0}', space=vmem, size = 0x400, scoped, tag = 'input window, operand 5, single buffered']
    #allocation13 [shape = 's32[1]{0}', space=sflag, size = 0x4, scoped, tag = 'scoped memory for tpu_custom_call.1']
    #allocation14 [shape = 'u8[131072]{0}', space=vmem, size = 0x20000, scoped, tag = 'output window, operand 0']
    %11 = vsyncpa [#allocation4], 0
    %s12 = scalar_lea.sflag [#allocation4], 1
    %13 = vsyncpa %s12, 0
    %14 = vsyncpa [#allocation7], 0
    %s15 = scalar_lea.sflag [#allocation7], 1
    %16 = vsyncpa %s15, 0
    %17 = vsyncpa [#allocation10], 0
    %18 = vsyncpa [#allocation13], 0
    %19 = vsyncpa [#allocation5], 0
    %s20 = scalar_lea.sflag [#allocation5], 1
    %21 = vsyncpa %s20, 0
    loop: start=0, step=1, limit=6
    $region2: #{tpu_custom_call.1} parent=1 // loop_pre_header
      _
    $region3: #{tpu_custom_call.1} parent=1 // loop_header
      %s23 = sphi 0, %s27
      %p24 = scmp.ge.s32.totalorder %s23, 6
      %s30 = sphi 0, %s42
      %s31 = sphi 0, %s38
      %s32 = sphi 0, %s30
      %s33 = sphi 0, %s31
      %s34 = sphi 0, %s32
      %s35 = sphi 0, %s33
      %s47 = sphi 0, %s49
      %s50 = sphi 0, %s47
      %s51 = sphi 0, %s50
      %s67 = sphi 0, %s51
      %s77 = sphi 0, %s79
      %s80 = sphi 0, %s77
      %s81 = sphi 0, %s80
      %s97 = sphi 0, %s81
      %s101 = sphi 0, %s101
      %s103 = sphi 0, %s101
      %s104 = sphi 0, %s103
      %s118 = sphi 0, %s104
      %s122 = sphi 0, %s122
      %s124 = sphi 0, %s122
      %s125 = sphi 0, %s124
      %s139 = sphi 0, %s125
      %s143 = sphi 0, %s143
      %s145 = sphi 0, %s143
      %s146 = sphi 0, %s145
      %s160 = sphi 0, %s146
      %s164 = sphi 0, %s164
      %s166 = sphi 0, %s164
      %s167 = sphi 0, %s166
      %s181 = sphi 0, %s167
      %s189 = sphi 0, %s191
      %s192 = sphi 0, %s189
      %s193 = sphi 0, %s192
      %s209 = sphi 0, %s193
    $region4: #{tpu_custom_call.1} parent=1 // loop_header_branch
      %26 = sbr.rel (%p24) target = $region8
    $region5: #{tpu_custom_call.1} parent=1 // loop_body
      %s28 = ssub.s32 %s23, 1
      %s29 = ssub.s32 %s23, 2
      %s36 = sadd.s32 1, %s31
      %p37 = scmp.ge.s32.totalorder %s36, 2
      %s38 = scalar_select %p37, 0, %s36
      %s39 = sadd.s32 1, %s30
      %s40 = scalar_select %p37, %s39, %s30
      %p41 = scmp.ge.s32.totalorder %s40, 2
      %s42 = scalar_select %p41, 0, %s40
      %s43 = ssub.s32 %s30, %s42
      %s44 = ssub.s32 %s31, %s38
      %s45 = sor.u32 %s43, %s44
      %p46 = scmp.eq.s32.totalorder %s45, 0
      %s48 = sadd.s32 %s47, 1
      %s49 = scalar_select %p46, %s47, %s48
      %p52 = pneg %p46
      %p53 = scmp.eq.s32.totalorder %s23, 3
      %p54 = por %p52, %p53
      %p55 = scmp.ne.s32.totalorder %s47, %s50
      %p56 = scmp.eq.s32.totalorder %s23, 0
      %p57 = por %p55, %p56
      %p58 = scmp.ne.s32.totalorder %s47, %s50
      %p59 = scmp.eq.s32.totalorder %s28, 3
      %p60 = por %p58, %p59
      %p61 = scmp.ne.s32.totalorder %s50, %s51
      %p62 = scmp.eq.s32.totalorder %s28, 0
      %p63 = por %p61, %p62
      %p64 = scmp.ne.s32.totalorder %s50, %s51
      %p65 = scmp.eq.s32.totalorder %s29, 3
      %p66 = por %p64, %p65
      %p68 = scmp.ne.s32.totalorder %s51, %s67
      %p69 = scmp.eq.s32.totalorder %s29, 0
      %p70 = por %p68, %p69
      %s71 = smul.u32 %s30, 2
      %s72 = sadd.s32 %s71, %s31
      %s73 = smul.u32 %s42, 2
      %s74 = sadd.s32 %s73, %s38
      %s75 = ssub.s32 %s72, %s74
      %p76 = scmp.eq.s32.totalorder %s75, 0
      %s78 = sadd.s32 %s77, 1
      %s79 = scalar_select %p76, %s77, %s78
      %p82 = pneg %p76
      %p83 = scmp.eq.s32.totalorder %s23, 3
      %p84 = por %p82, %p83
      %p85 = scmp.ne.s32.totalorder %s77, %s80
      %p86 = scmp.eq.s32.totalorder %s23, 0
      %p87 = por %p85, %p86
      %p88 = scmp.ne.s32.totalorder %s77, %s80
      %p89 = scmp.eq.s32.totalorder %s28, 3
      %p90 = por %p88, %p89
      %p91 = scmp.ne.s32.totalorder %s80, %s81
      %p92 = scmp.eq.s32.totalorder %s28, 0
      %p93 = por %p91, %p92
      %p94 = scmp.ne.s32.totalorder %s80, %s81
      %p95 = scmp.eq.s32.totalorder %s29, 3
      %p96 = por %p94, %p95
      %p98 = scmp.ne.s32.totalorder %s81, %s97
      %p99 = scmp.eq.s32.totalorder %s29, 0
      %p100 = por %p98, %p99
      %s102 = sadd.s32 %s101, 1
      %p105 = scmp.eq.s32.totalorder %s23, 3
      %p106 = scmp.ne.s32.totalorder %s101, %s103
      %p107 = scmp.eq.s32.totalorder %s23, 0
      %p108 = por %p106, %p107
      %p109 = scmp.ne.s32.totalorder %s101, %s103
      %p110 = scmp.eq.s32.totalorder %s28, 3
      %p111 = por %p109, %p110
      %p112 = scmp.ne.s32.totalorder %s103, %s104
      %p113 = scmp.eq.s32.totalorder %s28, 0
      %p114 = por %p112, %p113
      %p115 = scmp.ne.s32.totalorder %s103, %s104
      %p116 = scmp.eq.s32.totalorder %s29, 3
      %p117 = por %p115, %p116
      %p119 = scmp.ne.s32.totalorder %s104, %s118
      %p120 = scmp.eq.s32.totalorder %s29, 0
      %p121 = por %p119, %p120
      %s123 = sadd.s32 %s122, 1
      %p126 = scmp.eq.s32.totalorder %s23, 3
      %p127 = scmp.ne.s32.totalorder %s122, %s124
      %p128 = scmp.eq.s32.totalorder %s23, 0
      %p129 = por %p127, %p128
      %p130 = scmp.ne.s32.totalorder %s122, %s124
      %p131 = scmp.eq.s32.totalorder %s28, 3
      %p132 = por %p130, %p131
      %p133 = scmp.ne.s32.totalorder %s124, %s125
      %p134 = scmp.eq.s32.totalorder %s28, 0
      %p135 = por %p133, %p134
      %p136 = scmp.ne.s32.totalorder %s124, %s125
      %p137 = scmp.eq.s32.totalorder %s29, 3
      %p138 = por %p136, %p137
      %p140 = scmp.ne.s32.totalorder %s125, %s139
      %p141 = scmp.eq.s32.totalorder %s29, 0
      %p142 = por %p140, %p141
      %s144 = sadd.s32 %s143, 1
      %p147 = scmp.eq.s32.totalorder %s23, 3
      %p148 = scmp.ne.s32.totalorder %s143, %s145
      %p149 = scmp.eq.s32.totalorder %s23, 0
      %p150 = por %p148, %p149
      %p151 = scmp.ne.s32.totalorder %s143, %s145
      %p152 = scmp.eq.s32.totalorder %s28, 3
      %p153 = por %p151, %p152
      %p154 = scmp.ne.s32.totalorder %s145, %s146
      %p155 = scmp.eq.s32.totalorder %s28, 0
      %p156 = por %p154, %p155
      %p157 = scmp.ne.s32.totalorder %s145, %s146
      %p158 = scmp.eq.s32.totalorder %s29, 3
      %p159 = por %p157, %p158
      %p161 = scmp.ne.s32.totalorder %s146, %s160
      %p162 = scmp.eq.s32.totalorder %s29, 0
      %p163 = por %p161, %p162
      %s165 = sadd.s32 %s164, 1
      %p168 = scmp.eq.s32.totalorder %s23, 3
      %p169 = scmp.ne.s32.totalorder %s164, %s166
      %p170 = scmp.eq.s32.totalorder %s23, 0
      %p171 = por %p169, %p170
      %p172 = scmp.ne.s32.totalorder %s164, %s166
      %p173 = scmp.eq.s32.totalorder %s28, 3
      %p174 = por %p172, %p173
      %p175 = scmp.ne.s32.totalorder %s166, %s167
      %p176 = scmp.eq.s32.totalorder %s28, 0
      %p177 = por %p175, %p176
      %p178 = scmp.ne.s32.totalorder %s166, %s167
      %p179 = scmp.eq.s32.totalorder %s29, 3
      %p180 = por %p178, %p179
      %p182 = scmp.ne.s32.totalorder %s167, %s181
      %p183 = scmp.eq.s32.totalorder %s29, 0
      %p184 = por %p182, %p183
      %s185 = ssub.s32 %s30, %s42
      %s186 = ssub.s32 %s31, %s38
      %s187 = sor.u32 %s185, %s186
      %p188 = scmp.eq.s32.totalorder %s187, 0
      %s190 = sadd.s32 %s189, 1
      %s191 = scalar_select %p188, %s189, %s190
      %p194 = pneg %p188
      %p195 = scmp.eq.s32.totalorder %s23, 3
      %p196 = por %p194, %p195
      %p197 = scmp.ne.s32.totalorder %s189, %s192
      %p198 = scmp.eq.s32.totalorder %s23, 0
      %p199 = por %p197, %p198
      %p200 = scmp.ne.s32.totalorder %s189, %s192
      %p201 = scmp.eq.s32.totalorder %s28, 3
      %p202 = por %p200, %p201
      %p203 = scmp.ne.s32.totalorder %s192, %s193
      %p204 = scmp.eq.s32.totalorder %s28, 0
      %p205 = por %p203, %p204
      %p206 = scmp.ne.s32.totalorder %s192, %s193
      %p207 = scmp.eq.s32.totalorder %s29, 3
      %p208 = por %p206, %p207
      %p210 = scmp.ne.s32.totalorder %s193, %s209
      %p211 = scmp.eq.s32.totalorder %s29, 0
      %p212 = por %p210, %p211
      %p213 = scmp.le.s32.totalorder 1, %s23
      %p214 = scmp.lt.s32.totalorder %s23, 5
      %p215 = pnand %p213, %p214
      %p216 = pneg %p215
      // Predicated region
      $region9: #{tpu_custom_call.1} parent=5 // pred_check
        _
      $region10: #{tpu_custom_call.1} parent=5 // pred_check_branch
        %218 = sbr.rel (%p215) target = $region12
      $region11: #{tpu_custom_call.1} parent=5 // pred_region
        %s219 = ssub.s32 %s23, 1
        // Predicated region
        $region13: #{tpu_custom_call.1} parent=11 // pred_check
          %p220 = pneg %p114
        $region14: #{tpu_custom_call.1} parent=11 // pred_check_branch
          %222 = sbr.rel (%p220) target = $region16
        $region15: #{tpu_custom_call.1} parent=11 // pred_region
          %s224 = ssub.s32 288, 288
          %225 = vsyncadd [#allocation7], %s224
          %s226 = sshll.u32 [#allocation8], 4
          %s227 = int_to_ptr.vmem [resolvable:$true] %s226
          %232 = dma.hbm_to_vmem [thread:$0]  %s2, 288, %s227, [#allocation7], 32, 32, 2
        $region16: #{tpu_custom_call.1} parent=11 // pred_fallthru
          _
        // Predicated region
        $region17: #{tpu_custom_call.1} parent=11 // pred_check
          %p233 = pneg %p135
        $region18: #{tpu_custom_call.1} parent=11 // pred_check_branch
          %235 = sbr.rel (%p233) target = $region20
        $region19: #{tpu_custom_call.1} parent=11 // pred_region
          %s237 = ssub.s32 16, 16
          %238 = vsyncadd [#allocation10], %s237
          %s240 = sshll.u32 [#allocation9], 4
          %s241 = int_to_ptr.vmem [resolvable:$true] %s240
          %243 = dma.hbm_to_vmem [thread:$0]  %s3, 16, %s241, [#allocation10]
        $region20: #{tpu_custom_call.1} parent=11 // pred_fallthru
          _
        // Predicated region
        $region21: #{tpu_custom_call.1} parent=11 // pred_check
          %p244 = pneg %p156
        $region22: #{tpu_custom_call.1} parent=11 // pred_check_branch
          %246 = sbr.rel (%p244) target = $region24
        $region23: #{tpu_custom_call.1} parent=11 // pred_region
          %s248 = ssub.s32 9216, 9216
          %249 = vsyncadd [#allocation10], %s248
          %s250 = sshll.u32 [#allocation11], 4
          %s251 = int_to_ptr.vmem [resolvable:$true] %s250
          %256 = dma.hbm_to_vmem [thread:$0]  %s4, 9216, %s251, [#allocation10], 64, 64, 4
        $region24: #{tpu_custom_call.1} parent=11 // pred_fallthru
          _
        // Predicated region
        $region25: #{tpu_custom_call.1} parent=11 // pred_check
          %p257 = pneg %p177
        $region26: #{tpu_custom_call.1} parent=11 // pred_check_branch
          %259 = sbr.rel (%p257) target = $region28
        $region27: #{tpu_custom_call.1} parent=11 // pred_region
          %s261 = ssub.s32 16, 16
          %262 = vsyncadd [#allocation13], %s261
          %s264 = sshll.u32 [#allocation12], 4
          %s265 = int_to_ptr.vmem [resolvable:$true] %s264
          %267 = dma.hbm_to_vmem [thread:$0]  %s5, 16, %s265, [#allocation13]
        $region28: #{tpu_custom_call.1} parent=11 // pred_fallthru
          _
      $region12: #{tpu_custom_call.1} parent=5 // pred_fallthru
        _
      %p268 = scmp.lt.s32.totalorder %s23, 4
      // Predicated region
      $region29: #{tpu_custom_call.1} parent=5 // pred_check
        %p269 = pneg %p268
      $region30: #{tpu_custom_call.1} parent=5 // pred_check_branch
        %271 = sbr.rel (%p269) target = $region32
      $region31: #{tpu_custom_call.1} parent=5 // pred_region
        // Predicated region
        $region33: #{tpu_custom_call.1} parent=31 // pred_check
          %p272 = pneg %p57
        $region34: #{tpu_custom_call.1} parent=31 // pred_check_branch
          %274 = sbr.rel (%p272) target = $region36
        $region35: #{tpu_custom_call.1} parent=31 // pred_region
          %s275 = sand.u32 %s47, 1
          %s276 = scalar_lea.sflag [#allocation4], %s275
          %s277 = sand.u32 %s47, 1
          %s278 = smul.addr %s277, 128
          %s279 = scalar_lea.vmem [#allocation3], %s278
          %s280 = smul.u32 8, %s31
          %s282 = ssub.s32 2048, 2048
          %283 = vsyncadd %s276, %s282
          %s284 = smul.addr %s280, 2
          %s285 = smul.addr %s30, 32
          %s286 = sadd.s32 %s284, %s285
          %s287 = smul.addr %s286, 128
          %s288 = scalar_lea.hbm %s0, %s287
          %s289 = sshll.u32 %s279, 4
          %s290 = int_to_ptr.vmem [resolvable:$true] %s289
          %295 = dma.hbm_to_vmem [thread:$0]  %s288, 2048, %s290, %s276, 128, 128, 8
        $region36: #{tpu_custom_call.1} parent=31 // pred_fallthru
          _
        // Predicated region
        $region37: #{tpu_custom_call.1} parent=31 // pred_check
          %p296 = pneg %p87
        $region38: #{tpu_custom_call.1} parent=31 // pred_check_branch
          %298 = sbr.rel (%p296) target = $region40
        $region39: #{tpu_custom_call.1} parent=31 // pred_region
          %s299 = sand.u32 %s23, 1
          %s300 = scalar_lea.sflag [#allocation7], %s299
          %s301 = sand.u32 %s77, 1
          %s302 = smul.addr %s301, 144
          %s303 = scalar_lea.vmem [#allocation6], %s302
          %s304 = smul.u32 %s30, 2
          %s305 = sadd.s32 %s304, %s31
          %s306 = smul.u32 12, %s305
          %s308 = ssub.s32 2304, 2304
          %309 = vsyncadd %s300, %s308
          %s310 = smul.addr %s306, 3
          %s311 = smul.addr %s310, 64
          %s312 = scalar_lea.hbm %s1, %s311
          %s313 = sshll.u32 %s303, 4
          %s314 = int_to_ptr.vmem [resolvable:$true] %s313
          %319 = dma.hbm_to_vmem [thread:$0]  %s312, 2304, %s314, %s300, 64, 64, 4
        $region40: #{tpu_custom_call.1} parent=31 // pred_fallthru
          _
      $region32: #{tpu_custom_call.1} parent=5 // pred_fallthru
        _
      %p320 = scmp.le.s32.totalorder 1, %s23
      %p321 = scmp.lt.s32.totalorder %s23, 5
      %p322 = pnand %p320, %p321
      %p323 = pneg %p322
      // Predicated region
      $region41: #{tpu_custom_call.1} parent=5 // pred_check
        _
      $region42: #{tpu_custom_call.1} parent=5 // pred_check_branch
        %325 = sbr.rel (%p322) target = $region44
      $region43: #{tpu_custom_call.1} parent=5 // pred_region
        %s326 = ssub.s32 %s23, 1
        %s327 = sand.u32 %s50, 1
        %s328 = scalar_lea.sflag [#allocation4], %s327
        %s329 = sand.u32 %s50, 1
        %s330 = smul.addr %s329, 128
        %s331 = scalar_lea.vmem [#allocation3], %s330
        // Predicated region
        $region45: #{tpu_custom_call.1} parent=43 // pred_check
          %p332 = pneg %p63
        $region46: #{tpu_custom_call.1} parent=43 // pred_check_branch
          %334 = sbr.rel (%p332) target = $region48
        $region47: #{tpu_custom_call.1} parent=43 // pred_region
          %335 = dma.done %s328, 2048
        $region48: #{tpu_custom_call.1} parent=43 // pred_fallthru
          _
        %s336 = sand.u32 %s28, 1
        %s337 = scalar_lea.sflag [#allocation7], %s336
        %s338 = sand.u32 %s80, 1
        %s339 = smul.addr %s338, 144
        %s340 = scalar_lea.vmem [#allocation6], %s339
        // Predicated region
        $region49: #{tpu_custom_call.1} parent=43 // pred_check
          %p341 = pneg %p93
        $region50: #{tpu_custom_call.1} parent=43 // pred_check_branch
          %343 = sbr.rel (%p341) target = $region52
        $region51: #{tpu_custom_call.1} parent=43 // pred_region
          %344 = dma.done %s337, 2304
        $region52: #{tpu_custom_call.1} parent=43 // pred_fallthru
          _
        // Predicated region
        $region53: #{tpu_custom_call.1} parent=43 // pred_check
          %p345 = pneg %p114
        $region54: #{tpu_custom_call.1} parent=43 // pred_check_branch
          %347 = sbr.rel (%p345) target = $region56
        $region55: #{tpu_custom_call.1} parent=43 // pred_region
          %348 = dma.done [#allocation7], 288
        $region56: #{tpu_custom_call.1} parent=43 // pred_fallthru
          _
        // Predicated region
        $region57: #{tpu_custom_call.1} parent=43 // pred_check
          %p349 = pneg %p135
        $region58: #{tpu_custom_call.1} parent=43 // pred_check_branch
          %351 = sbr.rel (%p349) target = $region60
        $region59: #{tpu_custom_call.1} parent=43 // pred_region
          %352 = dma.done [#allocation10], 16
        $region60: #{tpu_custom_call.1} parent=43 // pred_fallthru
          _
        // Predicated region
        $region61: #{tpu_custom_call.1} parent=43 // pred_check
          %p353 = pneg %p156
        $region62: #{tpu_custom_call.1} parent=43 // pred_check_branch
          %355 = sbr.rel (%p353) target = $region64
        $region63: #{tpu_custom_call.1} parent=43 // pred_region
          %356 = dma.done [#allocation10], 9216
        $region64: #{tpu_custom_call.1} parent=43 // pred_fallthru
          _
        // Predicated region
        $region65: #{tpu_custom_call.1} parent=43 // pred_check
          %p357 = pneg %p177
        $region66: #{tpu_custom_call.1} parent=43 // pred_check_branch
          %359 = sbr.rel (%p357) target = $region68
        $region67: #{tpu_custom_call.1} parent=43 // pred_region
          %360 = dma.done [#allocation13], 16
        $region68: #{tpu_custom_call.1} parent=43 // pred_fallthru
          _
        %s361 = sand.u32 %s50, 1
        %s362 = scalar_lea.sflag [#allocation4], %s361
        %s363 = sand.u32 %s50, 1
        %s364 = smul.addr %s363, 128
        %s365 = scalar_lea.vmem [#allocation3], %s364
        %p366 = pneg %p63
        %p367 = pneg %p60
        %s368 = sand.u32 %s28, 1
        %s369 = scalar_lea.sflag [#allocation7], %s368
        %s370 = sand.u32 %s80, 1
        %s371 = smul.addr %s370, 144
        %s372 = scalar_lea.vmem [#allocation6], %s371
        %p373 = pneg %p93
        %p374 = pneg %p90
        %p375 = pneg %p114
        %p376 = pneg %p111
        %p377 = pneg %p135
        %p378 = pneg %p132
        %p379 = pneg %p156
        %p380 = pneg %p153
        %p381 = pneg %p177
        %p382 = pneg %p174
        %p383 = pneg %p205
        %p384 = pneg %p202
        %s385 = sand.u32 %s192, 1
        %s386 = scalar_lea.sflag [#allocation5], %s385
        %s387 = sand.u32 %s192, 1
        %s388 = smul.addr %s387, 128
        %s389 = scalar_lea.vmem [#allocation14], %s388
        %s390 = smul.u32 8, %s33
        %s391 = smul.u32 %s32, 2
        %s392 = sadd.s32 %s391, %s33
        %s393 = smul.u32 12, %s392
        %s394 = smul.u32 8, %s33
        %v396 = vld [vmem:[%s340] sm:$0xf]
        %v397 = vld [vmem:[%s340 + $0x4] sm:$0xf]
        %v398 = vld [vmem:[%s340 + $0xc] sm:$0xf]
        %v399 = vld [vmem:[%s340 + $0x10] sm:$0xf]
        %v400 = vld [vmem:[%s340 + $0x18] sm:$0xf]
        %v401 = vld [vmem:[%s340 + $0x1c] sm:$0xf]
        %v402 = vld [vmem:[%s340 + $0x24] sm:$0xf]
        %v403 = vld [vmem:[%s340 + $0x28] sm:$0xf]
        %v404 = vld [vmem:[%s340 + $0x30] sm:$0xf]
        %v405 = vld [vmem:[%s340 + $0x34] sm:$0xf]
        %v406 = vld [vmem:[%s340 + $0x3c] sm:$0xf]
        %v407 = vld [vmem:[%s340 + $0x40] sm:$0xf]
        %v408 = vld [vmem:[%s340 + $0x48] sm:$0xf]
        %v409 = vld [vmem:[%s340 + $0x4c] sm:$0xf]
        %v410 = vld [vmem:[%s340 + $0x54] sm:$0xf]
        %v411 = vld [vmem:[%s340 + $0x58] sm:$0xf]
        %v412 = vld [vmem:[%s340 + $0x60] sm:$0xf]
        %v413 = vld [vmem:[%s340 + $0x64] sm:$0xf]
        %v414 = vld [vmem:[%s340 + $0x6c] sm:$0xf]
        %v415 = vld [vmem:[%s340 + $0x70] sm:$0xf]
        %v416 = vld [vmem:[%s340 + $0x78] sm:$0xf]
        %v417 = vld [vmem:[%s340 + $0x7c] sm:$0xf]
        %v418 = vld [vmem:[%s340 + $0x84] sm:$0xf]
        %v419 = vld [vmem:[%s340 + $0x88] sm:$0xf]
        %v420 = vld [vmem:[#allocation8] sm:$0x3]
        %s421 = scalar_lea.vmem [#allocation8], 6
        %v422 = vld [vmem:[%s421] sm:$0x3]
        %v443 = vunpack.c.l.b16 %v398
        %v444 = vunpack.c.l.b16 %v399
        %v445 = vunpack.c.l.b16 %v400
        %v446 = vunpack.c.l.b16 %v401
        %v447 = vunpack.c.l.b16 %v402
        %v448 = vunpack.c.l.b16 %v403
        %v449 = vunpack.c.l.b16 %v404
        %v450 = vunpack.c.l.b16 %v405
        %v451 = vunpack.c.l.b16 %v406
        %v452 = vunpack.c.l.b16 %v407
        %v453 = vunpack.c.l.b16 %v408
        %v454 = vunpack.c.l.b16 %v409
        %v455 = vunpack.c.l.b16 %v410
        %v456 = vunpack.c.l.b16 %v411
        %v457 = vunpack.c.l.b16 %v412
        %v458 = vunpack.c.l.b16 %v413
        %v459 = vunpack.c.l.b16 %v414
        %v460 = vunpack.c.l.b16 %v415
        %v461 = vunpack.c.l.b16 %v416
        %v462 = vunpack.c.l.b16 %v417
        %v463 = vpack.c.b16 %v444, %v443
        %v464 = vpack.c.b16 %v446, %v445
        %v465 = vpack.c.b16 %v448, %v447
        %v466 = vpack.c.b16 %v450, %v449
        %v467 = vpack.c.b16 %v452, %v451
        %v468 = vpack.c.b16 %v454, %v453
        %v469 = vpack.c.b16 %v456, %v455
        %v470 = vpack.c.b16 %v458, %v457
        %v471 = vpack.c.b16 %v460, %v459
        %v472 = vpack.c.b16 %v462, %v461
        %vm473 = vcmask 23552
        %v475 = vsel %vm473, %v463, 0
        %v478 = vsel %vm473, %v464, 0
        %v481 = vsel %vm473, %v465, 0
        %v484 = vsel %vm473, %v466, 0
        %v487 = vsel %vm473, %v467, 0
        %v490 = vsel %vm473, %v468, 0
        %v493 = vsel %vm473, %v469, 0
        %v496 = vsel %vm473, %v470, 0
        %v499 = vsel %vm473, %v471, 0
        %v502 = vsel %vm473, %v472, 0
        %vm504 = vcmask 1040384
        %vm505 = vcmask 1041408
        %v506 = vsel %vm504, 4294967295, 65535
        %v507 = vsel %vm505, %v506, 0
        %v509 = vand.u32 %v422, %v507
        %511 = vmatprep.subr.bf16.mxu0 0
        %512 = vmatpush1.bf16.msra.mxu0 %v509
        %513 = vmatprep.subr.bf16.mxu0 0
        %514 = vmatpush1.bf16.msra.mxu0 0
        %515 = vmatprep.subr.bf16.mxu0 0
        %516 = vmatpush1.bf16.msra.mxu0 0
        %517 = vmatprep.subr.bf16.mxu0 0
        %518 = vmatpush1.bf16.msra.mxu0 0
        %519 = vmatprep.subr.bf16.mxu0 0
        %520 = vmatpush1.bf16.msra.mxu0 0
        %521 = vmatprep.subr.bf16.mxu0 0
        %522 = vmatpush1.bf16.msra.mxu0 0
        %523 = vmatprep.subr.bf16.mxu0 0
        %524 = vmatpush1.bf16.msra.mxu0 0
        %525 = vmatprep.subr.bf16.mxu0 0
        %526 = vmatpush1.bf16.msra.mxu0 0
        %527 = vmatprep.subr.bf16.mxu0 0
        %528 = vmatpush1.bf16.msra.mxu0 0
        %529 = vmatprep.subr.bf16.mxu0 0
        %530 = vmatpush1.bf16.msra.mxu0 0
        %531 = vmatprep.subr.bf16.mxu0 0
        %532 = vmatpush1.bf16.msra.mxu0 0
        %533 = vmatprep.subr.bf16.mxu0 0
        %534 = vmatpush1.bf16.msra.mxu0 0
        %535 = vmatprep.subr.bf16.mxu0 0
        %536 = vmatpush1.bf16.msra.mxu0 0
        %537 = vmatprep.subr.bf16.mxu0 0
        %538 = vmatpush1.bf16.msra.mxu0 0
        %539 = vmatprep.subr.bf16.mxu0 0
        %540 = vmatpush1.bf16.msra.mxu0 0
        %541 = vmatprep.subr.bf16.mxu0 0
        %542 = vmatpush1.bf16.msra.mxu0 0
        %543 = vmatprep.mubr.bf16.mxu0 0
        %544 = vmatmul.mubr.bf16.gmra.mrb[0].mxu0 %v475
        %v545 = vpop.f32.mrb[0].mxu0
        %v546 = vadd.f32 0.0, %v545
        %v547 = vpop.f32.mrb[0].mxu0
        %v548 = vpop.f32.mrb[0].mxu0
        %v549 = vadd.f32 0.0, %v548
        %v550 = vpop.f32.mrb[0].mxu0
        %551 = vmatprep.mubr.bf16.mxu0 0
        %552 = vmatmul.mubr.bf16.gmra.mrb[0].mxu0 %v478
        %v553 = vpop.f32.mrb[0].mxu0
        %v554 = vadd.f32 0.0, %v553
        %v555 = vpop.f32.mrb[0].mxu0
        %v556 = vpop.f32.mrb[0].mxu0
        %v557 = vadd.f32 0.0, %v556
        %v558 = vpop.f32.mrb[0].mxu0
        %559 = vmatprep.mubr.bf16.mxu0 0
        %560 = vmatmul.mubr.bf16.gmra.mrb[0].mxu0 %v481
        %v561 = vpop.f32.mrb[0].mxu0
        %v562 = vadd.f32 0.0, %v561
        %v563 = vpop.f32.mrb[0].mxu0
        %v564 = vpop.f32.mrb[0].mxu0
        %v565 = vadd.f32 0.0, %v564
        %v566 = vpop.f32.mrb[0].mxu0
        %567 = vmatprep.mubr.bf16.mxu0 0
        %568 = vmatmul.mubr.bf16.gmra.mrb[0].mxu0 %v484
        %v569 = vpop.f32.mrb[0].mxu0
        %v570 = vadd.f32 0.0, %v569
        %v571 = vpop.f32.mrb[0].mxu0
        %v572 = vpop.f32.mrb[0].mxu0
        %v573 = vadd.f32 0.0, %v572
        %v574 = vpop.f32.mrb[0].mxu0
        %575 = vmatprep.mubr.bf16.mxu0 0
        %576 = vmatmul.mubr.bf16.gmra.mrb[0].mxu0 %v487
        %v577 = vpop.f32.mrb[0].mxu0
        %v578 = vadd.f32 0.0, %v577
        %v579 = vpop.f32.mrb[0].mxu0
        %v580 = vpop.f32.mrb[0].mxu0
        %v581 = vadd.f32 0.0, %v580
        %v582 = vpop.f32.mrb[0].mxu0
        %583 = vmatprep.mubr.bf16.mxu0 0
        %584 = vmatmul.mubr.bf16.gmra.mrb[0].mxu0 %v490
        %v585 = vpop.f32.mrb[0].mxu0
        %v586 = vadd.f32 0.0, %v585
        %v587 = vpop.f32.mrb[0].mxu0
        %v588 = vpop.f32.mrb[0].mxu0
        %v589 = vadd.f32 0.0, %v588
        %v590 = vpop.f32.mrb[0].mxu0
        %591 = vmatprep.mubr.bf16.mxu0 0
        %592 = vmatmul.mubr.bf16.gmra.mrb[0].mxu0 %v493
        %v593 = vpop.f32.mrb[0].mxu0
        %v594 = vadd.f32 0.0, %v593
        %v595 = vpop.f32.mrb[0].mxu0
        %v596 = vpop.f32.mrb[0].mxu0
        %v597 = vadd.f32 0.0, %v596
        %v598 = vpop.f32.mrb[0].mxu0
        %599 = vmatprep.mubr.bf16.mxu0 0
        %600 = vmatmul.mubr.bf16.gmra.mrb[0].mxu0 %v496
        %v601 = vpop.f32.mrb[0].mxu0
        %v602 = vadd.f32 0.0, %v601
        %v603 = vpop.f32.mrb[0].mxu0
        %v604 = vpop.f32.mrb[0].mxu0
        %v605 = vadd.f32 0.0, %v604
        %v606 = vpop.f32.mrb[0].mxu0
        %607 = vmatprep.mubr.bf16.mxu0 0
        %608 = vmatmul.mubr.bf16.gmra.mrb[0].mxu0 %v499
        %v609 = vpop.f32.mrb[0].mxu0
        %v610 = vadd.f32 0.0, %v609
        %v611 = vpop.f32.mrb[0].mxu0
        %v612 = vpop.f32.mrb[0].mxu0
        %v613 = vadd.f32 0.0, %v612
        %v614 = vpop.f32.mrb[0].mxu0
        %615 = vmatprep.mubr.bf16.mxu0 0
        %616 = vmatmul.mubr.bf16.gmra.mrb[0].mxu0 %v502
        %v617 = vpop.f32.mrb[0].mxu0
        %v618 = vadd.f32 0.0, %v617
        %v619 = vpop.f32.mrb[0].mxu0
        %v620 = vpop.f32.mrb[0].mxu0
        %v621 = vadd.f32 0.0, %v620
        %v622 = vpop.f32.mrb[0].mxu0
        %623 = vdwg.mxu0
        %v626 = vunpack.c.l.b16 %v396
        %v627 = vunpack.c.l.b16 %v397
        %v628 = vpack.c.b16 %v627, %v626
        %v630 = vsel %vm473, %v628, 0
        %v633 = vand.u32 %v420, %v507
        %635 = vmatprep.subr.bf16.mxu0 0
        %636 = vmatpush1.bf16.msra.mxu0 %v633
        %637 = vmatprep.subr.bf16.mxu0 0
        %638 = vmatpush1.bf16.msra.mxu0 0
        %639 = vmatprep.subr.bf16.mxu0 0
        %640 = vmatpush1.bf16.msra.mxu0 0
        %641 = vmatprep.subr.bf16.mxu0 0
        %642 = vmatpush1.bf16.msra.mxu0 0
        %643 = vmatprep.subr.bf16.mxu0 0
        %644 = vmatpush1.bf16.msra.mxu0 0
        %645 = vmatprep.subr.bf16.mxu0 0
        %646 = vmatpush1.bf16.msra.mxu0 0
        %647 = vmatprep.subr.bf16.mxu0 0
        %648 = vmatpush1.bf16.msra.mxu0 0
        %649 = vmatprep.subr.bf16.mxu0 0
        %650 = vmatpush1.bf16.msra.mxu0 0
        %651 = vmatprep.subr.bf16.mxu0 0
        %652 = vmatpush1.bf16.msra.mxu0 0
        %653 = vmatprep.subr.bf16.mxu0 0
        %654 = vmatpush1.bf16.msra.mxu0 0
        %655 = vmatprep.subr.bf16.mxu0 0
        %656 = vmatpush1.bf16.msra.mxu0 0
        %657 = vmatprep.subr.bf16.mxu0 0
        %658 = vmatpush1.bf16.msra.mxu0 0
        %659 = vmatprep.subr.bf16.mxu0 0
        %660 = vmatpush1.bf16.msra.mxu0 0
        %661 = vmatprep.subr.bf16.mxu0 0
        %662 = vmatpush1.bf16.msra.mxu0 0
        %663 = vmatprep.subr.bf16.mxu0 0
        %664 = vmatpush1.bf16.msra.mxu0 0
        %665 = vmatprep.subr.bf16.mxu0 0
        %666 = vmatpush1.bf16.msra.mxu0 0
        %667 = vmatprep.mubr.bf16.mxu0 0
        %668 = vmatmul.mubr.bf16.gmra.mrb[0].mxu0 %v630
        %v669 = vpop.f32.mrb[0].mxu0
        %v670 = vadd.f32 %v546, %v669
        %v671 = vpop.f32.mrb[0].mxu0
        %v672 = vpop.f32.mrb[0].mxu0
        %v673 = vadd.f32 %v549, %v672
        %v674 = vpop.f32.mrb[0].mxu0
        %675 = vmatprep.mubr.bf16.mxu0 0
        %676 = vmatmul.mubr.bf16.gmra.mrb[0].mxu0 %v475
        %v677 = vpop.f32.mrb[0].mxu0
        %v678 = vadd.f32 %v554, %v677
        %v679 = vpop.f32.mrb[0].mxu0
        %v680 = vpop.f32.mrb[0].mxu0
        %v681 = vadd.f32 %v557, %v680
        %v682 = vpop.f32.mrb[0].mxu0
        %683 = vmatprep.mubr.bf16.mxu0 0
        %684 = vmatmul.mubr.bf16.gmra.mrb[0].mxu0 %v478
        %v685 = vpop.f32.mrb[0].mxu0
        %v686 = vadd.f32 %v562, %v685
        %v687 = vpop.f32.mrb[0].mxu0
        %v688 = vpop.f32.mrb[0].mxu0
        %v689 = vadd.f32 %v565, %v688
        %v690 = vpop.f32.mrb[0].mxu0
        %691 = vmatprep.mubr.bf16.mxu0 0
        %692 = vmatmul.mubr.bf16.gmra.mrb[0].mxu0 %v481
        %v693 = vpop.f32.mrb[0].mxu0
        %v694 = vadd.f32 %v570, %v693
        %v695 = vpop.f32.mrb[0].mxu0
        %v696 = vpop.f32.mrb[0].mxu0
        %v697 = vadd.f32 %v573, %v696
        %v698 = vpop.f32.mrb[0].mxu0
        %699 = vmatprep.mubr.bf16.mxu0 0
        %700 = vmatmul.mubr.bf16.gmra.mrb[0].mxu0 %v484
        %v701 = vpop.f32.mrb[0].mxu0
        %v702 = vadd.f32 %v578, %v701
        %v703 = vpop.f32.mrb[0].mxu0
        %v704 = vpop.f32.mrb[0].mxu0
        %v705 = vadd.f32 %v581, %v704
        %v706 = vpop.f32.mrb[0].mxu0
        %707 = vmatprep.mubr.bf16.mxu0 0
        %708 = vmatmul.mubr.bf16.gmra.mrb[0].mxu0 %v487
        %v709 = vpop.f32.mrb[0].mxu0
        %v710 = vadd.f32 %v586, %v709
        %v711 = vpop.f32.mrb[0].mxu0
        %v712 = vpop.f32.mrb[0].mxu0
        %v713 = vadd.f32 %v589, %v712
        %v714 = vpop.f32.mrb[0].mxu0
        %715 = vmatprep.mubr.bf16.mxu0 0
        %716 = vmatmul.mubr.bf16.gmra.mrb[0].mxu0 %v490
        %v717 = vpop.f32.mrb[0].mxu0
        %v718 = vadd.f32 %v594, %v717
        %v719 = vpop.f32.mrb[0].mxu0
        %v720 = vpop.f32.mrb[0].mxu0
        %v721 = vadd.f32 %v597, %v720
        %v722 = vpop.f32.mrb[0].mxu0
        %723 = vmatprep.mubr.bf16.mxu0 0
        %724 = vmatmul.mubr.bf16.gmra.mrb[0].mxu0 %v493
        %v725 = vpop.f32.mrb[0].mxu0
        %v726 = vadd.f32 %v602, %v725
        %v727 = vpop.f32.mrb[0].mxu0
        %v728 = vpop.f32.mrb[0].mxu0
        %v729 = vadd.f32 %v605, %v728
        %v730 = vpop.f32.mrb[0].mxu0
        %731 = vmatprep.mubr.bf16.mxu0 0
        %732 = vmatmul.mubr.bf16.gmra.mrb[0].mxu0 %v496
        %v733 = vpop.f32.mrb[0].mxu0
        %v734 = vadd.f32 %v610, %v733
        %v735 = vpop.f32.mrb[0].mxu0
        %v736 = vpop.f32.mrb[0].mxu0
        %v737 = vadd.f32 %v613, %v736
        %v738 = vpop.f32.mrb[0].mxu0
        %739 = vmatprep.mubr.bf16.mxu0 0
        %740 = vmatmul.mubr.bf16.gmra.mrb[0].mxu0 %v499
        %v741 = vpop.f32.mrb[0].mxu0
        %v742 = vadd.f32 %v618, %v741
        %v743 = vpop.f32.mrb[0].mxu0
        %v744 = vpop.f32.mrb[0].mxu0
        %v745 = vadd.f32 %v621, %v744
        %v746 = vpop.f32.mrb[0].mxu0
        %747 = vdwg.mxu0
        %s748 = scalar_lea.vmem [#allocation8], 12
        %v749 = vld [vmem:[%s748] sm:$0x3]
        %v752 = vunpack.c.l.b16 %v418
        %v753 = vunpack.c.l.b16 %v419
        %v754 = vpack.c.b16 %v753, %v752
        %v756 = vsel %vm473, %v754, 0
        %v759 = vand.u32 %v749, %v507
        %761 = vmatprep.subr.bf16.mxu0 0
        %762 = vmatpush1.bf16.msra.mxu0 %v759
        %763 = vmatprep.subr.bf16.mxu0 0
        %764 = vmatpush1.bf16.msra.mxu0 0
        %765 = vmatprep.subr.bf16.mxu0 0
        %766 = vmatpush1.bf16.msra.mxu0 0
        %767 = vmatprep.subr.bf16.mxu0 0
        %768 = vmatpush1.bf16.msra.mxu0 0
        %769 = vmatprep.subr.bf16.mxu0 0
        %770 = vmatpush1.bf16.msra.mxu0 0
        %771 = vmatprep.subr.bf16.mxu0 0
        %772 = vmatpush1.bf16.msra.mxu0 0
        %773 = vmatprep.subr.bf16.mxu0 0
        %774 = vmatpush1.bf16.msra.mxu0 0
        %775 = vmatprep.subr.bf16.mxu0 0
        %776 = vmatpush1.bf16.msra.mxu0 0
        %777 = vmatprep.subr.bf16.mxu0 0
        %778 = vmatpush1.bf16.msra.mxu0 0
        %779 = vmatprep.subr.bf16.mxu0 0
        %780 = vmatpush1.bf16.msra.mxu0 0
        %781 = vmatprep.subr.bf16.mxu0 0
        %782 = vmatpush1.bf16.msra.mxu0 0
        %783 = vmatprep.subr.bf16.mxu0 0
        %784 = vmatpush1.bf16.msra.mxu0 0
        %785 = vmatprep.subr.bf16.mxu0 0
        %786 = vmatpush1.bf16.msra.mxu0 0
        %787 = vmatprep.subr.bf16.mxu0 0
        %788 = vmatpush1.bf16.msra.mxu0 0
        %789 = vmatprep.subr.bf16.mxu0 0
        %790 = vmatpush1.bf16.msra.mxu0 0
        %791 = vmatprep.subr.bf16.mxu0 0
        %792 = vmatpush1.bf16.msra.mxu0 0
        %793 = vmatprep.mubr.bf16.mxu0 0
        %794 = vmatmul.mubr.bf16.gmra.mrb[0].mxu0 %v478
        %v795 = vpop.f32.mrb[0].mxu0
        %v796 = vadd.f32 0.0, %v795
        %v797 = vpop.f32.mrb[0].mxu0
        %v798 = vpop.f32.mrb[0].mxu0
        %v799 = vadd.f32 0.0, %v798
        %v800 = vpop.f32.mrb[0].mxu0
        %801 = vmatprep.mubr.bf16.mxu0 0
        %802 = vmatmul.mubr.bf16.gmra.mrb[0].mxu0 %v481
        %v803 = vpop.f32.mrb[0].mxu0
        %v804 = vadd.f32 0.0, %v803
        %v805 = vpop.f32.mrb[0].mxu0
        %v806 = vpop.f32.mrb[0].mxu0
        %v807 = vadd.f32 0.0, %v806
        %v808 = vpop.f32.mrb[0].mxu0
        %809 = vmatprep.mubr.bf16.mxu0 0
        %810 = vmatmul.mubr.bf16.gmra.mrb[0].mxu0 %v484
        %v811 = vpop.f32.mrb[0].mxu0
        %v812 = vadd.f32 0.0, %v811
        %v813 = vpop.f32.mrb[0].mxu0
        %v814 = vpop.f32.mrb[0].mxu0
        %v815 = vadd.f32 0.0, %v814
        %v816 = vpop.f32.mrb[0].mxu0
        %817 = vmatprep.mubr.bf16.mxu0 0
        %818 = vmatmul.mubr.bf16.gmra.mrb[0].mxu0 %v487
        %v819 = vpop.f32.mrb[0].mxu0
        %v820 = vadd.f32 0.0, %v819
        %v821 = vpop.f32.mrb[0].mxu0
        %v822 = vpop.f32.mrb[0].mxu0
        %v823 = vadd.f32 0.0, %v822
        %v824 = vpop.f32.mrb[0].mxu0
        %825 = vmatprep.mubr.bf16.mxu0 0
        %826 = vmatmul.mubr.bf16.gmra.mrb[0].mxu0 %v490
        %v827 = vpop.f32.mrb[0].mxu0
        %v828 = vadd.f32 0.0, %v827
        %v829 = vpop.f32.mrb[0].mxu0
        %v830 = vpop.f32.mrb[0].mxu0
        %v831 = vadd.f32 0.0, %v830
        %v832 = vpop.f32.mrb[0].mxu0
        %833 = vmatprep.mubr.bf16.mxu0 0
        %834 = vmatmul.mubr.bf16.gmra.mrb[0].mxu0 %v493
        %v835 = vpop.f32.mrb[0].mxu0
        %v836 = vadd.f32 0.0, %v835
        %v837 = vpop.f32.mrb[0].mxu0
        %v838 = vpop.f32.mrb[0].mxu0
        %v839 = vadd.f32 0.0, %v838
        %v840 = vpop.f32.mrb[0].mxu0
        %841 = vmatprep.mubr.bf16.mxu0 0
        %842 = vmatmul.mubr.bf16.gmra.mrb[0].mxu0 %v496
        %v843 = vpop.f32.mrb[0].mxu0
        %v844 = vadd.f32 0.0, %v843
        %v845 = vpop.f32.mrb[0].mxu0
        %v846 = vpop.f32.mrb[0].mxu0
        %v847 = vadd.f32 0.0, %v846
        %v848 = vpop.f32.mrb[0].mxu0
        %849 = vmatprep.mubr.bf16.mxu0 0
        %850 = vmatmul.mubr.bf16.gmra.mrb[0].mxu0 %v499
        %v851 = vpop.f32.mrb[0].mxu0
        %v852 = vadd.f32 0.0, %v851
        %v853 = vpop.f32.mrb[0].mxu0
        %v854 = vpop.f32.mrb[0].mxu0
        %v855 = vadd.f32 0.0, %v854
        %v856 = vpop.f32.mrb[0].mxu0
        %857 = vmatprep.mubr.bf16.mxu0 0
        %858 = vmatmul.mubr.bf16.gmra.mrb[0].mxu0 %v502
        %v859 = vpop.f32.mrb[0].mxu0
        %v860 = vadd.f32 0.0, %v859
        %v861 = vpop.f32.mrb[0].mxu0
        %v862 = vpop.f32.mrb[0].mxu0
        %v863 = vadd.f32 0.0, %v862
        %v864 = vpop.f32.mrb[0].mxu0
        %865 = vmatprep.mubr.bf16.mxu0 0
        %866 = vmatmul.mubr.bf16.gmra.mrb[0].mxu0 %v756
        %v867 = vpop.f32.mrb[0].mxu0
        %v868 = vadd.f32 0.0, %v867
        %v869 = vpop.f32.mrb[0].mxu0
        %v870 = vpop.f32.mrb[0].mxu0
        %v871 = vadd.f32 0.0, %v870
        %v872 = vpop.f32.mrb[0].mxu0
        %873 = vdwg.mxu0
        %v874 = vadd.f32 %v670, %v796
        %v875 = vadd.f32 %v673, %v799
        %v876 = vadd.f32 %v678, %v804
        %v877 = vadd.f32 %v681, %v807
        %v878 = vadd.f32 %v686, %v812
        %v879 = vadd.f32 %v689, %v815
        %v880 = vadd.f32 %v694, %v820
        %v881 = vadd.f32 %v697, %v823
        %v882 = vadd.f32 %v702, %v828
        %v883 = vadd.f32 %v705, %v831
        %v884 = vadd.f32 %v710, %v836
        %v885 = vadd.f32 %v713, %v839
        %v886 = vadd.f32 %v718, %v844
        %v887 = vadd.f32 %v721, %v847
        %v888 = vadd.f32 %v726, %v852
        %v889 = vadd.f32 %v729, %v855
        %v890 = vadd.f32 %v734, %v860
        %v891 = vadd.f32 %v737, %v863
        %v892 = vadd.f32 %v742, %v868
        %v893 = vadd.f32 %v745, %v871
        %v894 = vld [vmem:[%s340] sm:$0xf]
        %v895 = vld [vmem:[%s340 + $0x4] sm:$0xf]
        %v896 = vld [vmem:[%s340 + $0x8] sm:$0x1]
        %v897 = vld [vmem:[%s340 + $0xc] sm:$0xf]
        %v898 = vld [vmem:[%s340 + $0x10] sm:$0xf]
        %v899 = vld [vmem:[%s340 + $0x14] sm:$0x1]
        %v900 = vld [vmem:[%s340 + $0x18] sm:$0xf]
        %v901 = vld [vmem:[%s340 + $0x1c] sm:$0xf]
        %v902 = vld [vmem:[%s340 + $0x20] sm:$0x1]
        %v903 = vld [vmem:[%s340 + $0x24] sm:$0xf]
        %v904 = vld [vmem:[%s340 + $0x28] sm:$0xf]
        %v905 = vld [vmem:[%s340 + $0x2c] sm:$0x1]
        %v906 = vld [vmem:[%s340 + $0x30] sm:$0xf]
        %v907 = vld [vmem:[%s340 + $0x34] sm:$0xf]
        %v908 = vld [vmem:[%s340 + $0x38] sm:$0x1]
        %v909 = vld [vmem:[%s340 + $0x3c] sm:$0xf]
        %v910 = vld [vmem:[%s340 + $0x40] sm:$0xf]
        %v911 = vld [vmem:[%s340 + $0x44] sm:$0x1]
        %v912 = vld [vmem:[%s340 + $0x48] sm:$0xf]
        %v913 = vld [vmem:[%s340 + $0x4c] sm:$0xf]
        %v914 = vld [vmem:[%s340 + $0x50] sm:$0x1]
        %v915 = vld [vmem:[%s340 + $0x54] sm:$0xf]
        %v916 = vld [vmem:[%s340 + $0x58] sm:$0xf]
        %v917 = vld [vmem:[%s340 + $0x5c] sm:$0x1]
        %v918 = vld [vmem:[%s340 + $0x60] sm:$0xf]
        %v919 = vld [vmem:[%s340 + $0x64] sm:$0xf]
        %v920 = vld [vmem:[%s340 + $0x68] sm:$0x1]
        %v921 = vld [vmem:[%s340 + $0x6c] sm:$0xf]
        %v922 = vld [vmem:[%s340 + $0x70] sm:$0xf]
        %v923 = vld [vmem:[%s340 + $0x74] sm:$0x1]
        %v924 = vld [vmem:[%s340 + $0x78] sm:$0xf]
        %v925 = vld [vmem:[%s340 + $0x7c] sm:$0xf]
        %v926 = vld [vmem:[%s340 + $0x80] sm:$0x1]
        %v927 = vld [vmem:[%s340 + $0x84] sm:$0xf]
        %v928 = vld [vmem:[%s340 + $0x88] sm:$0xf]
        %v929 = vld [vmem:[%s340 + $0x8c] sm:$0x1]
        %vm930 = vsmask.f32 3328
        %vm931 = vsmask.f32 7440
        %vm932 = vmor %vm930, %vm931
        %v934 = vshrl.u32 %v894, 16
        %v936 = vrot.slane %v934, 4
        %v937 = vshll.u32 %v894, 16
        %v939 = vrot.slane %v937, 5
        %v940 = vor.u32 %v936, %v939
        %v941 = vrot.slane %v940, 4
        %v943 = vshll.u32 %v895, 16
        %v945 = vrot.slane %v943, 5
        %v946 = vsel %vm932, %v941, %v945
        %v947 = vshrl.u32 %v895, 16
        %v949 = vrot.slane %v947, 4
        %v950 = vor.u32 %v949, %v945
        %v951 = vrot.slane %v950, 4
        %v953 = vshll.u32 %v896, 16
        %v955 = vrot.slane %v953, 5
        %v956 = vsel %vm932, %v951, %v955
        %v958 = vshrl.u32 %v897, 16
        %v960 = vrot.slane %v958, 4
        %v961 = vshll.u32 %v897, 16
        %v963 = vrot.slane %v961, 5
        %v964 = vor.u32 %v960, %v963
        %v965 = vrot.slane %v964, 4
        %v967 = vshll.u32 %v898, 16
        %v969 = vrot.slane %v967, 5
        %v970 = vsel %vm932, %v965, %v969
        %v971 = vshrl.u32 %v898, 16
        %v973 = vrot.slane %v971, 4
        %v974 = vor.u32 %v973, %v969
        %v975 = vrot.slane %v974, 4
        %v977 = vshll.u32 %v899, 16
        %v979 = vrot.slane %v977, 5
        %v980 = vsel %vm932, %v975, %v979
        %v982 = vshrl.u32 %v900, 16
        %v984 = vrot.slane %v982, 4
        %v985 = vshll.u32 %v900, 16
        %v987 = vrot.slane %v985, 5
        %v988 = vor.u32 %v984, %v987
        %v989 = vrot.slane %v988, 4
        %v991 = vshll.u32 %v901, 16
        %v993 = vrot.slane %v991, 5
        %v994 = vsel %vm932, %v989, %v993
        %v995 = vshrl.u32 %v901, 16
        %v997 = vrot.slane %v995, 4
        %v998 = vor.u32 %v997, %v993
        %v999 = vrot.slane %v998, 4
        %v1001 = vshll.u32 %v902, 16
        %v1003 = vrot.slane %v1001, 5
        %v1004 = vsel %vm932, %v999, %v1003
        %v1006 = vshrl.u32 %v903, 16
        %v1008 = vrot.slane %v1006, 4
        %v1009 = vshll.u32 %v903, 16
        %v1011 = vrot.slane %v1009, 5
        %v1012 = vor.u32 %v1008, %v1011
        %v1013 = vrot.slane %v1012, 4
        %v1015 = vshll.u32 %v904, 16
        %v1017 = vrot.slane %v1015, 5
        %v1018 = vsel %vm932, %v1013, %v1017
        %v1019 = vshrl.u32 %v904, 16
        %v1021 = vrot.slane %v1019, 4
        %v1022 = vor.u32 %v1021, %v1017
        %v1023 = vrot.slane %v1022, 4
        %v1025 = vshll.u32 %v905, 16
        %v1027 = vrot.slane %v1025, 5
        %v1028 = vsel %vm932, %v1023, %v1027
        %v1030 = vshrl.u32 %v906, 16
        %v1032 = vrot.slane %v1030, 4
        %v1033 = vshll.u32 %v906, 16
        %v1035 = vrot.slane %v1033, 5
        %v1036 = vor.u32 %v1032, %v1035
        %v1037 = vrot.slane %v1036, 4
        %v1039 = vshll.u32 %v907, 16
        %v1041 = vrot.slane %v1039, 5
        %v1042 = vsel %vm932, %v1037, %v1041
        %v1043 = vshrl.u32 %v907, 16
        %v1045 = vrot.slane %v1043, 4
        %v1046 = vor.u32 %v1045, %v1041
        %v1047 = vrot.slane %v1046, 4
        %v1049 = vshll.u32 %v908, 16
        %v1051 = vrot.slane %v1049, 5
        %v1052 = vsel %vm932, %v1047, %v1051
        %v1054 = vshrl.u32 %v909, 16
        %v1056 = vrot.slane %v1054, 4
        %v1057 = vshll.u32 %v909, 16
        %v1059 = vrot.slane %v1057, 5
        %v1060 = vor.u32 %v1056, %v1059
        %v1061 = vrot.slane %v1060, 4
        %v1063 = vshll.u32 %v910, 16
        %v1065 = vrot.slane %v1063, 5
        %v1066 = vsel %vm932, %v1061, %v1065
        %v1067 = vshrl.u32 %v910, 16
        %v1069 = vrot.slane %v1067, 4
        %v1070 = vor.u32 %v1069, %v1065
        %v1071 = vrot.slane %v1070, 4
        %v1073 = vshll.u32 %v911, 16
        %v1075 = vrot.slane %v1073, 5
        %v1076 = vsel %vm932, %v1071, %v1075
        %v1078 = vshrl.u32 %v912, 16
        %v1080 = vrot.slane %v1078, 4
        %v1081 = vshll.u32 %v912, 16
        %v1083 = vrot.slane %v1081, 5
        %v1084 = vor.u32 %v1080, %v1083
        %v1085 = vrot.slane %v1084, 4
        %v1087 = vshll.u32 %v913, 16
        %v1089 = vrot.slane %v1087, 5
        %v1090 = vsel %vm932, %v1085, %v1089
        %v1091 = vshrl.u32 %v913, 16
        %v1093 = vrot.slane %v1091, 4
        %v1094 = vor.u32 %v1093, %v1089
        %v1095 = vrot.slane %v1094, 4
        %v1097 = vshll.u32 %v914, 16
        %v1099 = vrot.slane %v1097, 5
        %v1100 = vsel %vm932, %v1095, %v1099
        %v1102 = vshrl.u32 %v915, 16
        %v1104 = vrot.slane %v1102, 4
        %v1105 = vshll.u32 %v915, 16
        %v1107 = vrot.slane %v1105, 5
        %v1108 = vor.u32 %v1104, %v1107
        %v1109 = vrot.slane %v1108, 4
        %v1111 = vshll.u32 %v916, 16
        %v1113 = vrot.slane %v1111, 5
        %v1114 = vsel %vm932, %v1109, %v1113
        %v1115 = vshrl.u32 %v916, 16
        %v1117 = vrot.slane %v1115, 4
        %v1118 = vor.u32 %v1117, %v1113
        %v1119 = vrot.slane %v1118, 4
        %v1121 = vshll.u32 %v917, 16
        %v1123 = vrot.slane %v1121, 5
        %v1124 = vsel %vm932, %v1119, %v1123
        %v1126 = vshrl.u32 %v918, 16
        %v1128 = vrot.slane %v1126, 4
        %v1129 = vshll.u32 %v918, 16
        %v1131 = vrot.slane %v1129, 5
        %v1132 = vor.u32 %v1128, %v1131
        %v1133 = vrot.slane %v1132, 4
        %v1135 = vshll.u32 %v919, 16
        %v1137 = vrot.slane %v1135, 5
        %v1138 = vsel %vm932, %v1133, %v1137
        %v1139 = vshrl.u32 %v919, 16
        %v1141 = vrot.slane %v1139, 4
        %v1142 = vor.u32 %v1141, %v1137
        %v1143 = vrot.slane %v1142, 4
        %v1145 = vshll.u32 %v920, 16
        %v1147 = vrot.slane %v1145, 5
        %v1148 = vsel %vm932, %v1143, %v1147
        %v1150 = vshrl.u32 %v921, 16
        %v1152 = vrot.slane %v1150, 4
        %v1153 = vshll.u32 %v921, 16
        %v1155 = vrot.slane %v1153, 5
        %v1156 = vor.u32 %v1152, %v1155
        %v1157 = vrot.slane %v1156, 4
        %v1159 = vshll.u32 %v922, 16
        %v1161 = vrot.slane %v1159, 5
        %v1162 = vsel %vm932, %v1157, %v1161
        %v1163 = vshrl.u32 %v922, 16
        %v1165 = vrot.slane %v1163, 4
        %v1166 = vor.u32 %v1165, %v1161
        %v1167 = vrot.slane %v1166, 4
        %v1169 = vshll.u32 %v923, 16
        %v1171 = vrot.slane %v1169, 5
        %v1172 = vsel %vm932, %v1167, %v1171
        %v1174 = vshrl.u32 %v924, 16
        %v1176 = vrot.slane %v1174, 4
        %v1177 = vshll.u32 %v924, 16
        %v1179 = vrot.slane %v1177, 5
        %v1180 = vor.u32 %v1176, %v1179
        %v1181 = vrot.slane %v1180, 4
        %v1183 = vshll.u32 %v925, 16
        %v1185 = vrot.slane %v1183, 5
        %v1186 = vsel %vm932, %v1181, %v1185
        %v1187 = vshrl.u32 %v925, 16
        %v1189 = vrot.slane %v1187, 4
        %v1190 = vor.u32 %v1189, %v1185
        %v1191 = vrot.slane %v1190, 4
        %v1193 = vshll.u32 %v926, 16
        %v1195 = vrot.slane %v1193, 5
        %v1196 = vsel %vm932, %v1191, %v1195
        %v1198 = vshrl.u32 %v927, 16
        %v1200 = vrot.slane %v1198, 4
        %v1201 = vshll.u32 %v927, 16
        %v1203 = vrot.slane %v1201, 5
        %v1204 = vor.u32 %v1200, %v1203
        %v1205 = vrot.slane %v1204, 4
        %v1207 = vshll.u32 %v928, 16
        %v1209 = vrot.slane %v1207, 5
        %v1210 = vsel %vm932, %v1205, %v1209
        %v1211 = vshrl.u32 %v928, 16
        %v1213 = vrot.slane %v1211, 4
        %v1214 = vor.u32 %v1213, %v1209
        %v1215 = vrot.slane %v1214, 4
        %v1217 = vshll.u32 %v929, 16
        %v1219 = vrot.slane %v1217, 5
        %v1220 = vsel %vm932, %v1215, %v1219
        %s1221 = scalar_lea.vmem [#allocation8], 2
        %v1222 = vld [vmem:[%s1221] sm:$0x3]
        %v1223 = vunpack.c.l.b16 %v946
        %v1224 = vunpack.c.l.b16 %v956
        %v1225 = vunpack.c.l.b16 %v970
        %v1226 = vunpack.c.l.b16 %v980
        %v1227 = vunpack.c.l.b16 %v994
        %v1228 = vunpack.c.l.b16 %v1004
        %v1229 = vunpack.c.l.b16 %v1018
        %v1230 = vunpack.c.l.b16 %v1028
        %v1231 = vunpack.c.l.b16 %v1042
        %v1232 = vunpack.c.l.b16 %v1052
        %v1233 = vunpack.c.l.b16 %v1066
        %v1234 = vunpack.c.l.b16 %v1076
        %v1235 = vunpack.c.l.b16 %v1090
        %v1236 = vunpack.c.l.b16 %v1100
        %v1237 = vunpack.c.l.b16 %v1114
        %v1238 = vunpack.c.l.b16 %v1124
        %v1239 = vunpack.c.l.b16 %v1138
        %v1240 = vunpack.c.l.b16 %v1148
        %v1241 = vunpack.c.l.b16 %v1162
        %v1242 = vunpack.c.l.b16 %v1172
        %v1243 = vpack.c.b16 %v1224, %v1223
        %v1244 = vpack.c.b16 %v1226, %v1225
        %v1245 = vpack.c.b16 %v1228, %v1227
        %v1246 = vpack.c.b16 %v1230, %v1229
        %v1247 = vpack.c.b16 %v1232, %v1231
        %v1248 = vpack.c.b16 %v1234, %v1233
        %v1249 = vpack.c.b16 %v1236, %v1235
        %v1250 = vpack.c.b16 %v1238, %v1237
        %v1251 = vpack.c.b16 %v1240, %v1239
        %v1252 = vpack.c.b16 %v1242, %v1241
        %v1254 = vsel %vm473, %v1243, 0
        %v1257 = vsel %vm473, %v1244, 0
        %v1260 = vsel %vm473, %v1245, 0
        %v1263 = vsel %vm473, %v1246, 0
        %v1266 = vsel %vm473, %v1247, 0
        %v1269 = vsel %vm473, %v1248, 0
        %v1272 = vsel %vm473, %v1249, 0
        %v1275 = vsel %vm473, %v1250, 0
        %v1278 = vsel %vm473, %v1251, 0
        %v1281 = vsel %vm473, %v1252, 0
        %v1284 = vand.u32 %v1222, %v507
        %1286 = vmatprep.subr.bf16.mxu0 0
        %1287 = vmatpush1.bf16.msra.mxu0 %v1284
        %1288 = vmatprep.subr.bf16.mxu0 0
        %1289 = vmatpush1.bf16.msra.mxu0 0
        %1290 = vmatprep.subr.bf16.mxu0 0
        %1291 = vmatpush1.bf16.msra.mxu0 0
        %1292 = vmatprep.subr.bf16.mxu0 0
        %1293 = vmatpush1.bf16.msra.mxu0 0
        %1294 = vmatprep.subr.bf16.mxu0 0
        %1295 = vmatpush1.bf16.msra.mxu0 0
        %1296 = vmatprep.subr.bf16.mxu0 0
        %1297 = vmatpush1.bf16.msra.mxu0 0
        %1298 = vmatprep.subr.bf16.mxu0 0
        %1299 = vmatpush1.bf16.msra.mxu0 0
        %1300 = vmatprep.subr.bf16.mxu0 0
        %1301 = vmatpush1.bf16.msra.mxu0 0
        %1302 = vmatprep.subr.bf16.mxu0 0
        %1303 = vmatpush1.bf16.msra.mxu0 0
        %1304 = vmatprep.subr.bf16.mxu0 0
        %1305 = vmatpush1.bf16.msra.mxu0 0
        %1306 = vmatprep.subr.bf16.mxu0 0
        %1307 = vmatpush1.bf16.msra.mxu0 0
        %1308 = vmatprep.subr.bf16.mxu0 0
        %1309 = vmatpush1.bf16.msra.mxu0 0
        %1310 = vmatprep.subr.bf16.mxu0 0
        %1311 = vmatpush1.bf16.msra.mxu0 0
        %1312 = vmatprep.subr.bf16.mxu0 0
        %1313 = vmatpush1.bf16.msra.mxu0 0
        %1314 = vmatprep.subr.bf16.mxu0 0
        %1315 = vmatpush1.bf16.msra.mxu0 0
        %1316 = vmatprep.subr.bf16.mxu0 0
        %1317 = vmatpush1.bf16.msra.mxu0 0
        %1318 = vmatprep.mubr.bf16.mxu0 0
        %1319 = vmatmul.mubr.bf16.gmra.mrb[0].mxu0 %v1254
        %v1320 = vpop.f32.mrb[0].mxu0
        %v1321 = vadd.f32 0.0, %v1320
        %v1322 = vpop.f32.mrb[0].mxu0
        %v1323 = vpop.f32.mrb[0].mxu0
        %v1324 = vadd.f32 0.0, %v1323
        %v1325 = vpop.f32.mrb[0].mxu0
        %1326 = vmatprep.mubr.bf16.mxu0 0
        %1327 = vmatmul.mubr.bf16.gmra.mrb[0].mxu0 %v1257
        %v1328 = vpop.f32.mrb[0].mxu0
        %v1329 = vadd.f32 0.0, %v1328
        %v1330 = vpop.f32.mrb[0].mxu0
        %v1331 = vpop.f32.mrb[0].mxu0
        %v1332 = vadd.f32 0.0, %v1331
        %v1333 = vpop.f32.mrb[0].mxu0
        %1334 = vmatprep.mubr.bf16.mxu0 0
        %1335 = vmatmul.mubr.bf16.gmra.mrb[0].mxu0 %v1260
        %v1336 = vpop.f32.mrb[0].mxu0
        %v1337 = vadd.f32 0.0, %v1336
        %v1338 = vpop.f32.mrb[0].mxu0
        %v1339 = vpop.f32.mrb[0].mxu0
        %v1340 = vadd.f32 0.0, %v1339
        %v1341 = vpop.f32.mrb[0].mxu0
        %1342 = vmatprep.mubr.bf16.mxu0 0
        %1343 = vmatmul.mubr.bf16.gmra.mrb[0].mxu0 %v1263
        %v1344 = vpop.f32.mrb[0].mxu0
        %v1345 = vadd.f32 0.0, %v1344
        %v1346 = vpop.f32.mrb[0].mxu0
        %v1347 = vpop.f32.mrb[0].mxu0
        %v1348 = vadd.f32 0.0, %v1347
        %v1349 = vpop.f32.mrb[0].mxu0
        %1350 = vmatprep.mubr.bf16.mxu0 0
        %1351 = vmatmul.mubr.bf16.gmra.mrb[0].mxu0 %v1266
        %v1352 = vpop.f32.mrb[0].mxu0
        %v1353 = vadd.f32 0.0, %v1352
        %v1354 = vpop.f32.mrb[0].mxu0
        %v1355 = vpop.f32.mrb[0].mxu0
        %v1356 = vadd.f32 0.0, %v1355
        %v1357 = vpop.f32.mrb[0].mxu0
        %1358 = vmatprep.mubr.bf16.mxu0 0
        %1359 = vmatmul.mubr.bf16.gmra.mrb[0].mxu0 %v1269
        %v1360 = vpop.f32.mrb[0].mxu0
        %v1361 = vadd.f32 0.0, %v1360
        %v1362 = vpop.f32.mrb[0].mxu0
        %v1363 = vpop.f32.mrb[0].mxu0
        %v1364 = vadd.f32 0.0, %v1363
        %v1365 = vpop.f32.mrb[0].mxu0
        %1366 = vmatprep.mubr.bf16.mxu0 0
        %1367 = vmatmul.mubr.bf16.gmra.mrb[0].mxu0 %v1272
        %v1368 = vpop.f32.mrb[0].mxu0
        %v1369 = vadd.f32 0.0, %v1368
        %v1370 = vpop.f32.mrb[0].mxu0
        %v1371 = vpop.f32.mrb[0].mxu0
        %v1372 = vadd.f32 0.0, %v1371
        %v1373 = vpop.f32.mrb[0].mxu0
        %1374 = vmatprep.mubr.bf16.mxu0 0
        %1375 = vmatmul.mubr.bf16.gmra.mrb[0].mxu0 %v1275
        %v1376 = vpop.f32.mrb[0].mxu0
        %v1377 = vadd.f32 0.0, %v1376
        %v1378 = vpop.f32.mrb[0].mxu0
        %v1379 = vpop.f32.mrb[0].mxu0
        %v1380 = vadd.f32 0.0, %v1379
        %v1381 = vpop.f32.mrb[0].mxu0
        %1382 = vmatprep.mubr.bf16.mxu0 0
        %1383 = vmatmul.mubr.bf16.gmra.mrb[0].mxu0 %v1278
        %v1384 = vpop.f32.mrb[0].mxu0
        %v1385 = vadd.f32 0.0, %v1384
        %v1386 = vpop.f32.mrb[0].mxu0
        %v1387 = vpop.f32.mrb[0].mxu0
        %v1388 = vadd.f32 0.0, %v1387
        %v1389 = vpop.f32.mrb[0].mxu0
        %1390 = vmatprep.mubr.bf16.mxu0 0
        %1391 = vmatmul.mubr.bf16.gmra.mrb[0].mxu0 %v1281
        %v1392 = vpop.f32.mrb[0].mxu0
        %v1393 = vadd.f32 0.0, %v1392
        %v1394 = vpop.f32.mrb[0].mxu0
        %v1395 = vpop.f32.mrb[0].mxu0
        %v1396 = vadd.f32 0.0, %v1395
        %v1397 = vpop.f32.mrb[0].mxu0
        %1398 = vdwg.mxu0
        %v1399 = vadd.f32 %v874, %v1321
        %v1400 = vadd.f32 %v875, %v1324
        %v1401 = vadd.f32 %v876, %v1329
        %v1402 = vadd.f32 %v877, %v1332
        %v1403 = vadd.f32 %v878, %v1337
        %v1404 = vadd.f32 %v879, %v1340
        %v1405 = vadd.f32 %v880, %v1345
        %v1406 = vadd.f32 %v881, %v1348
        %v1407 = vadd.f32 %v882, %v1353
        %v1408 = vadd.f32 %v883, %v1356
        %v1409 = vadd.f32 %v884, %v1361
        %v1410 = vadd.f32 %v885, %v1364
        %v1411 = vadd.f32 %v886, %v1369
        %v1412 = vadd.f32 %v887, %v1372
        %v1413 = vadd.f32 %v888, %v1377
        %v1414 = vadd.f32 %v889, %v1380
        %v1415 = vadd.f32 %v890, %v1385
        %v1416 = vadd.f32 %v891, %v1388
        %v1417 = vadd.f32 %v892, %v1393
        %v1418 = vadd.f32 %v893, %v1396
        %s1419 = scalar_lea.vmem [#allocation8], 8
        %v1420 = vld [vmem:[%s1419] sm:$0x3]
        %v1421 = vunpack.c.l.b16 %v1186
        %v1422 = vunpack.c.l.b16 %v1196
        %v1423 = vpack.c.b16 %v1422, %v1421
        %v1425 = vsel %vm473, %v1423, 0
        %v1428 = vand.u32 %v1420, %v507
        %1430 = vmatprep.subr.bf16.mxu0 0
        %1431 = vmatpush1.bf16.msra.mxu0 %v1428
        %1432 = vmatprep.subr.bf16.mxu0 0
        %1433 = vmatpush1.bf16.msra.mxu0 0
        %1434 = vmatprep.subr.bf16.mxu0 0
        %1435 = vmatpush1.bf16.msra.mxu0 0
        %1436 = vmatprep.subr.bf16.mxu0 0
        %1437 = vmatpush1.bf16.msra.mxu0 0
        %1438 = vmatprep.subr.bf16.mxu0 0
        %1439 = vmatpush1.bf16.msra.mxu0 0
        %1440 = vmatprep.subr.bf16.mxu0 0
        %1441 = vmatpush1.bf16.msra.mxu0 0
        %1442 = vmatprep.subr.bf16.mxu0 0
        %1443 = vmatpush1.bf16.msra.mxu0 0
        %1444 = vmatprep.subr.bf16.mxu0 0
        %1445 = vmatpush1.bf16.msra.mxu0 0
        %1446 = vmatprep.subr.bf16.mxu0 0
        %1447 = vmatpush1.bf16.msra.mxu0 0
        %1448 = vmatprep.subr.bf16.mxu0 0
        %1449 = vmatpush1.bf16.msra.mxu0 0
        %1450 = vmatprep.subr.bf16.mxu0 0
        %1451 = vmatpush1.bf16.msra.mxu0 0
        %1452 = vmatprep.subr.bf16.mxu0 0
        %1453 = vmatpush1.bf16.msra.mxu0 0
        %1454 = vmatprep.subr.bf16.mxu0 0
        %1455 = vmatpush1.bf16.msra.mxu0 0
        %1456 = vmatprep.subr.bf16.mxu0 0
        %1457 = vmatpush1.bf16.msra.mxu0 0
        %1458 = vmatprep.subr.bf16.mxu0 0
        %1459 = vmatpush1.bf16.msra.mxu0 0
        %1460 = vmatprep.subr.bf16.mxu0 0
        %1461 = vmatpush1.bf16.msra.mxu0 0
        %1462 = vmatprep.mubr.bf16.mxu0 0
        %1463 = vmatmul.mubr.bf16.gmra.mrb[0].mxu0 %v1257
        %v1464 = vpop.f32.mrb[0].mxu0
        %v1465 = vadd.f32 0.0, %v1464
        %v1466 = vpop.f32.mrb[0].mxu0
        %v1467 = vpop.f32.mrb[0].mxu0
        %v1468 = vadd.f32 0.0, %v1467
        %v1469 = vpop.f32.mrb[0].mxu0
        %1470 = vmatprep.mubr.bf16.mxu0 0
        %1471 = vmatmul.mubr.bf16.gmra.mrb[0].mxu0 %v1260
        %v1472 = vpop.f32.mrb[0].mxu0
        %v1473 = vadd.f32 0.0, %v1472
        %v1474 = vpop.f32.mrb[0].mxu0
        %v1475 = vpop.f32.mrb[0].mxu0
        %v1476 = vadd.f32 0.0, %v1475
        %v1477 = vpop.f32.mrb[0].mxu0
        %1478 = vmatprep.mubr.bf16.mxu0 0
        %1479 = vmatmul.mubr.bf16.gmra.mrb[0].mxu0 %v1263
        %v1480 = vpop.f32.mrb[0].mxu0
        %v1481 = vadd.f32 0.0, %v1480
        %v1482 = vpop.f32.mrb[0].mxu0
        %v1483 = vpop.f32.mrb[0].mxu0
        %v1484 = vadd.f32 0.0, %v1483
        %v1485 = vpop.f32.mrb[0].mxu0
        %1486 = vmatprep.mubr.bf16.mxu0 0
        %1487 = vmatmul.mubr.bf16.gmra.mrb[0].mxu0 %v1266
        %v1488 = vpop.f32.mrb[0].mxu0
        %v1489 = vadd.f32 0.0, %v1488
        %v1490 = vpop.f32.mrb[0].mxu0
        %v1491 = vpop.f32.mrb[0].mxu0
        %v1492 = vadd.f32 0.0, %v1491
        %v1493 = vpop.f32.mrb[0].mxu0
        %1494 = vmatprep.mubr.bf16.mxu0 0
        %1495 = vmatmul.mubr.bf16.gmra.mrb[0].mxu0 %v1269
        %v1496 = vpop.f32.mrb[0].mxu0
        %v1497 = vadd.f32 0.0, %v1496
        %v1498 = vpop.f32.mrb[0].mxu0
        %v1499 = vpop.f32.mrb[0].mxu0
        %v1500 = vadd.f32 0.0, %v1499
        %v1501 = vpop.f32.mrb[0].mxu0
        %1502 = vmatprep.mubr.bf16.mxu0 0
        %1503 = vmatmul.mubr.bf16.gmra.mrb[0].mxu0 %v1272
        %v1504 = vpop.f32.mrb[0].mxu0
        %v1505 = vadd.f32 0.0, %v1504
        %v1506 = vpop.f32.mrb[0].mxu0
        %v1507 = vpop.f32.mrb[0].mxu0
        %v1508 = vadd.f32 0.0, %v1507
        %v1509 = vpop.f32.mrb[0].mxu0
        %1510 = vmatprep.mubr.bf16.mxu0 0
        %1511 = vmatmul.mubr.bf16.gmra.mrb[0].mxu0 %v1275
        %v1512 = vpop.f32.mrb[0].mxu0
        %v1513 = vadd.f32 0.0, %v1512
        %v1514 = vpop.f32.mrb[0].mxu0
        %v1515 = vpop.f32.mrb[0].mxu0
        %v1516 = vadd.f32 0.0, %v1515
        %v1517 = vpop.f32.mrb[0].mxu0
        %1518 = vmatprep.mubr.bf16.mxu0 0
        %1519 = vmatmul.mubr.bf16.gmra.mrb[0].mxu0 %v1278
        %v1520 = vpop.f32.mrb[0].mxu0
        %v1521 = vadd.f32 0.0, %v1520
        %v1522 = vpop.f32.mrb[0].mxu0
        %v1523 = vpop.f32.mrb[0].mxu0
        %v1524 = vadd.f32 0.0, %v1523
        %v1525 = vpop.f32.mrb[0].mxu0
        %1526 = vmatprep.mubr.bf16.mxu0 0
        %1527 = vmatmul.mubr.bf16.gmra.mrb[0].mxu0 %v1281
        %v1528 = vpop.f32.mrb[0].mxu0
        %v1529 = vadd.f32 0.0, %v1528
        %v1530 = vpop.f32.mrb[0].mxu0
        %v1531 = vpop.f32.mrb[0].mxu0
        %v1532 = vadd.f32 0.0, %v1531
        %v1533 = vpop.f32.mrb[0].mxu0
        %1534 = vmatprep.mubr.bf16.mxu0 0
        %1535 = vmatmul.mubr.bf16.gmra.mrb[0].mxu0 %v1425
        %v1536 = vpop.f32.mrb[0].mxu0
        %v1537 = vadd.f32 0.0, %v1536
        %v1538 = vpop.f32.mrb[0].mxu0
        %v1539 = vpop.f32.mrb[0].mxu0
        %v1540 = vadd.f32 0.0, %v1539
        %v1541 = vpop.f32.mrb[0].mxu0
        %1542 = vdwg.mxu0
        %v1543 = vadd.f32 %v1399, %v1465
        %v1544 = vadd.f32 %v1400, %v1468
        %v1545 = vadd.f32 %v1401, %v1473
        %v1546 = vadd.f32 %v1402, %v1476
        %v1547 = vadd.f32 %v1403, %v1481
        %v1548 = vadd.f32 %v1404, %v1484
        %v1549 = vadd.f32 %v1405, %v1489
        %v1550 = vadd.f32 %v1406, %v1492
        %v1551 = vadd.f32 %v1407, %v1497
        %v1552 = vadd.f32 %v1408, %v1500
        %v1553 = vadd.f32 %v1409, %v1505
        %v1554 = vadd.f32 %v1410, %v1508
        %v1555 = vadd.f32 %v1411, %v1513
        %v1556 = vadd.f32 %v1412, %v1516
        %v1557 = vadd.f32 %v1413, %v1521
        %v1558 = vadd.f32 %v1414, %v1524
        %v1559 = vadd.f32 %v1415, %v1529
        %v1560 = vadd.f32 %v1416, %v1532
        %v1561 = vadd.f32 %v1417, %v1537
        %v1562 = vadd.f32 %v1418, %v1540
        %s1563 = scalar_lea.vmem [#allocation8], 14
        %v1564 = vld [vmem:[%s1563] sm:$0x3]
        %v1565 = vunpack.c.l.b16 %v1210
        %v1566 = vunpack.c.l.b16 %v1220
        %v1567 = vpack.c.b16 %v1566, %v1565
        %v1569 = vsel %vm473, %v1567, 0
        %v1572 = vand.u32 %v1564, %v507
        %1574 = vmatprep.subr.bf16.mxu0 0
        %1575 = vmatpush1.bf16.msra.mxu0 %v1572
        %1576 = vmatprep.subr.bf16.mxu0 0
        %1577 = vmatpush1.bf16.msra.mxu0 0
        %1578 = vmatprep.subr.bf16.mxu0 0
        %1579 = vmatpush1.bf16.msra.mxu0 0
        %1580 = vmatprep.subr.bf16.mxu0 0
        %1581 = vmatpush1.bf16.msra.mxu0 0
        %1582 = vmatprep.subr.bf16.mxu0 0
        %1583 = vmatpush1.bf16.msra.mxu0 0
        %1584 = vmatprep.subr.bf16.mxu0 0
        %1585 = vmatpush1.bf16.msra.mxu0 0
        %1586 = vmatprep.subr.bf16.mxu0 0
        %1587 = vmatpush1.bf16.msra.mxu0 0
        %1588 = vmatprep.subr.bf16.mxu0 0
        %1589 = vmatpush1.bf16.msra.mxu0 0
        %1590 = vmatprep.subr.bf16.mxu0 0
        %1591 = vmatpush1.bf16.msra.mxu0 0
        %1592 = vmatprep.subr.bf16.mxu0 0
        %1593 = vmatpush1.bf16.msra.mxu0 0
        %1594 = vmatprep.subr.bf16.mxu0 0
        %1595 = vmatpush1.bf16.msra.mxu0 0
        %1596 = vmatprep.subr.bf16.mxu0 0
        %1597 = vmatpush1.bf16.msra.mxu0 0
        %1598 = vmatprep.subr.bf16.mxu0 0
        %1599 = vmatpush1.bf16.msra.mxu0 0
        %1600 = vmatprep.subr.bf16.mxu0 0
        %1601 = vmatpush1.bf16.msra.mxu0 0
        %1602 = vmatprep.subr.bf16.mxu0 0
        %1603 = vmatpush1.bf16.msra.mxu0 0
        %1604 = vmatprep.subr.bf16.mxu0 0
        %1605 = vmatpush1.bf16.msra.mxu0 0
        %1606 = vmatprep.mubr.bf16.mxu0 0
        %1607 = vmatmul.mubr.bf16.gmra.mrb[0].mxu0 %v1260
        %v1608 = vpop.f32.mrb[0].mxu0
        %v1609 = vadd.f32 0.0, %v1608
        %v1610 = vpop.f32.mrb[0].mxu0
        %v1611 = vpop.f32.mrb[0].mxu0
        %v1612 = vadd.f32 0.0, %v1611
        %v1613 = vpop.f32.mrb[0].mxu0
        %1614 = vmatprep.mubr.bf16.mxu0 0
        %1615 = vmatmul.mubr.bf16.gmra.mrb[0].mxu0 %v1263
        %v1616 = vpop.f32.mrb[0].mxu0
        %v1617 = vadd.f32 0.0, %v1616
        %v1618 = vpop.f32.mrb[0].mxu0
        %v1619 = vpop.f32.mrb[0].mxu0
        %v1620 = vadd.f32 0.0, %v1619
        %v1621 = vpop.f32.mrb[0].mxu0
        %1622 = vmatprep.mubr.bf16.mxu0 0
        %1623 = vmatmul.mubr.bf16.gmra.mrb[0].mxu0 %v1266
        %v1624 = vpop.f32.mrb[0].mxu0
        %v1625 = vadd.f32 0.0, %v1624
        %v1626 = vpop.f32.mrb[0].mxu0
        %v1627 = vpop.f32.mrb[0].mxu0
        %v1628 = vadd.f32 0.0, %v1627
        %v1629 = vpop.f32.mrb[0].mxu0
        %1630 = vmatprep.mubr.bf16.mxu0 0
        %1631 = vmatmul.mubr.bf16.gmra.mrb[0].mxu0 %v1269
        %v1632 = vpop.f32.mrb[0].mxu0
        %v1633 = vadd.f32 0.0, %v1632
        %v1634 = vpop.f32.mrb[0].mxu0
        %v1635 = vpop.f32.mrb[0].mxu0
        %v1636 = vadd.f32 0.0, %v1635
        %v1637 = vpop.f32.mrb[0].mxu0
        %1638 = vmatprep.mubr.bf16.mxu0 0
        %1639 = vmatmul.mubr.bf16.gmra.mrb[0].mxu0 %v1272
        %v1640 = vpop.f32.mrb[0].mxu0
        %v1641 = vadd.f32 0.0, %v1640
        %v1642 = vpop.f32.mrb[0].mxu0
        %v1643 = vpop.f32.mrb[0].mxu0
        %v1644 = vadd.f32 0.0, %v1643
        %v1645 = vpop.f32.mrb[0].mxu0
        %1646 = vmatprep.mubr.bf16.mxu0 0
        %1647 = vmatmul.mubr.bf16.gmra.mrb[0].mxu0 %v1275
        %v1648 = vpop.f32.mrb[0].mxu0
        %v1649 = vadd.f32 0.0, %v1648
        %v1650 = vpop.f32.mrb[0].mxu0
        %v1651 = vpop.f32.mrb[0].mxu0
        %v1652 = vadd.f32 0.0, %v1651
        %v1653 = vpop.f32.mrb[0].mxu0
        %1654 = vmatprep.mubr.bf16.mxu0 0
        %1655 = vmatmul.mubr.bf16.gmra.mrb[0].mxu0 %v1278
        %v1656 = vpop.f32.mrb[0].mxu0
        %v1657 = vadd.f32 0.0, %v1656
        %v1658 = vpop.f32.mrb[0].mxu0
        %v1659 = vpop.f32.mrb[0].mxu0
        %v1660 = vadd.f32 0.0, %v1659
        %v1661 = vpop.f32.mrb[0].mxu0
        %1662 = vmatprep.mubr.bf16.mxu0 0
        %1663 = vmatmul.mubr.bf16.gmra.mrb[0].mxu0 %v1281
        %v1664 = vpop.f32.mrb[0].mxu0
        %v1665 = vadd.f32 0.0, %v1664
        %v1666 = vpop.f32.mrb[0].mxu0
        %v1667 = vpop.f32.mrb[0].mxu0
        %v1668 = vadd.f32 0.0, %v1667
        %v1669 = vpop.f32.mrb[0].mxu0
        %1670 = vmatprep.mubr.bf16.mxu0 0
        %1671 = vmatmul.mubr.bf16.gmra.mrb[0].mxu0 %v1425
        %v1672 = vpop.f32.mrb[0].mxu0
        %v1673 = vadd.f32 0.0, %v1672
        %v1674 = vpop.f32.mrb[0].mxu0
        %v1675 = vpop.f32.mrb[0].mxu0
        %v1676 = vadd.f32 0.0, %v1675
        %v1677 = vpop.f32.mrb[0].mxu0
        %1678 = vmatprep.mubr.bf16.mxu0 0
        %1679 = vmatmul.mubr.bf16.gmra.mrb[0].mxu0 %v1569
        %v1680 = vpop.f32.mrb[0].mxu0
        %v1681 = vadd.f32 0.0, %v1680
        %v1682 = vpop.f32.mrb[0].mxu0
        %v1683 = vpop.f32.mrb[0].mxu0
        %v1684 = vadd.f32 0.0, %v1683
        %v1685 = vpop.f32.mrb[0].mxu0
        %1686 = vdwg.mxu0
        %v1687 = vadd.f32 %v1543, %v1609
        %v1688 = vadd.f32 %v1544, %v1612
        %v1689 = vadd.f32 %v1545, %v1617
        %v1690 = vadd.f32 %v1546, %v1620
        %v1691 = vadd.f32 %v1547, %v1625
        %v1692 = vadd.f32 %v1548, %v1628
        %v1693 = vadd.f32 %v1549, %v1633
        %v1694 = vadd.f32 %v1550, %v1636
        %v1695 = vadd.f32 %v1551, %v1641
        %v1696 = vadd.f32 %v1552, %v1644
        %v1697 = vadd.f32 %v1553, %v1649
        %v1698 = vadd.f32 %v1554, %v1652
        %v1699 = vadd.f32 %v1555, %v1657
        %v1700 = vadd.f32 %v1556, %v1660
        %v1701 = vadd.f32 %v1557, %v1665
        %v1702 = vadd.f32 %v1558, %v1668
        %v1703 = vadd.f32 %v1559, %v1673
        %v1704 = vadd.f32 %v1560, %v1676
        %v1705 = vadd.f32 %v1561, %v1681
        %v1706 = vadd.f32 %v1562, %v1684
        %v1707 = vld [vmem:[%s340] sm:$0xe]
        %v1708 = vld [vmem:[%s340 + $0xc] sm:$0xe]
        %v1709 = vld [vmem:[%s340 + $0x18] sm:$0xe]
        %v1710 = vld [vmem:[%s340 + $0x24] sm:$0xe]
        %v1711 = vld [vmem:[%s340 + $0x30] sm:$0xe]
        %v1712 = vld [vmem:[%s340 + $0x3c] sm:$0xe]
        %v1713 = vld [vmem:[%s340 + $0x48] sm:$0xe]
        %v1714 = vld [vmem:[%s340 + $0x54] sm:$0xe]
        %v1715 = vld [vmem:[%s340 + $0x60] sm:$0xe]
        %v1716 = vld [vmem:[%s340 + $0x6c] sm:$0xe]
        %v1717 = vld [vmem:[%s340 + $0x78] sm:$0xe]
        %v1718 = vld [vmem:[%s340 + $0x84] sm:$0xe]
        %vm1755 = vcmask 1042432
        %vm1756 = vcmask 1046532
        %vm1757 = vmor %vm1755, %vm1756
        %v1758 = vrot.slane %v1707, 5
        %v1759 = vrot.slane %v1758, 4
        %v1760 = vrot.slane %v895, 5
        %v1761 = vsel %vm1757, %v1759, %v1760
        %v1762 = vrot.slane %v1760, 4
        %v1763 = vrot.slane %v896, 5
        %v1764 = vsel %vm1757, %v1762, %v1763
        %v1765 = vrot.slane %v1708, 5
        %v1766 = vrot.slane %v1765, 4
        %v1767 = vrot.slane %v898, 5
        %v1768 = vsel %vm1757, %v1766, %v1767
        %v1769 = vrot.slane %v1767, 4
        %v1770 = vrot.slane %v899, 5
        %v1771 = vsel %vm1757, %v1769, %v1770
        %v1772 = vrot.slane %v1709, 5
        %v1773 = vrot.slane %v1772, 4
        %v1774 = vrot.slane %v901, 5
        %v1775 = vsel %vm1757, %v1773, %v1774
        %v1776 = vrot.slane %v1774, 4
        %v1777 = vrot.slane %v902, 5
        %v1778 = vsel %vm1757, %v1776, %v1777
        %v1779 = vrot.slane %v1710, 5
        %v1780 = vrot.slane %v1779, 4
        %v1781 = vrot.slane %v904, 5
        %v1782 = vsel %vm1757, %v1780, %v1781
        %v1783 = vrot.slane %v1781, 4
        %v1784 = vrot.slane %v905, 5
        %v1785 = vsel %vm1757, %v1783, %v1784
        %v1786 = vrot.slane %v1711, 5
        %v1787 = vrot.slane %v1786, 4
        %v1788 = vrot.slane %v907, 5
        %v1789 = vsel %vm1757, %v1787, %v1788
        %v1790 = vrot.slane %v1788, 4
        %v1791 = vrot.slane %v908, 5
        %v1792 = vsel %vm1757, %v1790, %v1791
        %v1793 = vrot.slane %v1712, 5
        %v1794 = vrot.slane %v1793, 4
        %v1795 = vrot.slane %v910, 5
        %v1796 = vsel %vm1757, %v1794, %v1795
        %v1797 = vrot.slane %v1795, 4
        %v1798 = vrot.slane %v911, 5
        %v1799 = vsel %vm1757, %v1797, %v1798
        %v1800 = vrot.slane %v1713, 5
        %v1801 = vrot.slane %v1800, 4
        %v1802 = vrot.slane %v913, 5
        %v1803 = vsel %vm1757, %v1801, %v1802
        %v1804 = vrot.slane %v1802, 4
        %v1805 = vrot.slane %v914, 5
        %v1806 = vsel %vm1757, %v1804, %v1805
        %v1807 = vrot.slane %v1714, 5
        %v1808 = vrot.slane %v1807, 4
        %v1809 = vrot.slane %v916, 5
        %v1810 = vsel %vm1757, %v1808, %v1809
        %v1811 = vrot.slane %v1809, 4
        %v1812 = vrot.slane %v917, 5
        %v1813 = vsel %vm1757, %v1811, %v1812
        %v1814 = vrot.slane %v1715, 5
        %v1815 = vrot.slane %v1814, 4
        %v1816 = vrot.slane %v919, 5
        %v1817 = vsel %vm1757, %v1815, %v1816
        %v1818 = vrot.slane %v1816, 4
        %v1819 = vrot.slane %v920, 5
        %v1820 = vsel %vm1757, %v1818, %v1819
        %v1821 = vrot.slane %v1716, 5
        %v1822 = vrot.slane %v1821, 4
        %v1823 = vrot.slane %v922, 5
        %v1824 = vsel %vm1757, %v1822, %v1823
        %v1825 = vrot.slane %v1823, 4
        %v1826 = vrot.slane %v923, 5
        %v1827 = vsel %vm1757, %v1825, %v1826
        %v1828 = vrot.slane %v1717, 5
        %v1829 = vrot.slane %v1828, 4
        %v1830 = vrot.slane %v925, 5
        %v1831 = vsel %vm1757, %v1829, %v1830
        %v1832 = vrot.slane %v1830, 4
        %v1833 = vrot.slane %v926, 5
        %v1834 = vsel %vm1757, %v1832, %v1833
        %v1835 = vrot.slane %v1718, 5
        %v1836 = vrot.slane %v1835, 4
        %v1837 = vrot.slane %v928, 5
        %v1838 = vsel %vm1757, %v1836, %v1837
        %v1839 = vrot.slane %v1837, 4
        %v1840 = vrot.slane %v929, 5
        %v1841 = vsel %vm1757, %v1839, %v1840
        %s1842 = scalar_lea.vmem [#allocation8], 4
        %v1843 = vld [vmem:[%s1842] sm:$0x3]
        %v1844 = vunpack.c.l.b16 %v1761
        %v1845 = vunpack.c.l.b16 %v1764
        %v1846 = vunpack.c.l.b16 %v1768
        %v1847 = vunpack.c.l.b16 %v1771
        %v1848 = vunpack.c.l.b16 %v1775
        %v1849 = vunpack.c.l.b16 %v1778
        %v1850 = vunpack.c.l.b16 %v1782
        %v1851 = vunpack.c.l.b16 %v1785
        %v1852 = vunpack.c.l.b16 %v1789
        %v1853 = vunpack.c.l.b16 %v1792
        %v1854 = vunpack.c.l.b16 %v1796
        %v1855 = vunpack.c.l.b16 %v1799
        %v1856 = vunpack.c.l.b16 %v1803
        %v1857 = vunpack.c.l.b16 %v1806
        %v1858 = vunpack.c.l.b16 %v1810
        %v1859 = vunpack.c.l.b16 %v1813
        %v1860 = vunpack.c.l.b16 %v1817
        %v1861 = vunpack.c.l.b16 %v1820
        %v1862 = vunpack.c.l.b16 %v1824
        %v1863 = vunpack.c.l.b16 %v1827
        %v1864 = vpack.c.b16 %v1845, %v1844
        %v1865 = vpack.c.b16 %v1847, %v1846
        %v1866 = vpack.c.b16 %v1849, %v1848
        %v1867 = vpack.c.b16 %v1851, %v1850
        %v1868 = vpack.c.b16 %v1853, %v1852
        %v1869 = vpack.c.b16 %v1855, %v1854
        %v1870 = vpack.c.b16 %v1857, %v1856
        %v1871 = vpack.c.b16 %v1859, %v1858
        %v1872 = vpack.c.b16 %v1861, %v1860
        %v1873 = vpack.c.b16 %v1863, %v1862
        %v1875 = vsel %vm473, %v1864, 0
        %v1878 = vsel %vm473, %v1865, 0
        %v1881 = vsel %vm473, %v1866, 0
        %v1884 = vsel %vm473, %v1867, 0
        %v1887 = vsel %vm473, %v1868, 0
        %v1890 = vsel %vm473, %v1869, 0
        %v1893 = vsel %vm473, %v1870, 0
        %v1896 = vsel %vm473, %v1871, 0
        %v1899 = vsel %vm473, %v1872, 0
        %v1902 = vsel %vm473, %v1873, 0
        %v1905 = vand.u32 %v1843, %v507
        %1907 = vmatprep.subr.bf16.mxu0 0
        %1908 = vmatpush1.bf16.msra.mxu0 %v1905
        %1909 = vmatprep.subr.bf16.mxu0 0
        %1910 = vmatpush1.bf16.msra.mxu0 0
        %1911 = vmatprep.subr.bf16.mxu0 0
        %1912 = vmatpush1.bf16.msra.mxu0 0
        %1913 = vmatprep.subr.bf16.mxu0 0
        %1914 = vmatpush1.bf16.msra.mxu0 0
        %1915 = vmatprep.subr.bf16.mxu0 0
        %1916 = vmatpush1.bf16.msra.mxu0 0
        %1917 = vmatprep.subr.bf16.mxu0 0
        %1918 = vmatpush1.bf16.msra.mxu0 0
        %1919 = vmatprep.subr.bf16.mxu0 0
        %1920 = vmatpush1.bf16.msra.mxu0 0
        %1921 = vmatprep.subr.bf16.mxu0 0
        %1922 = vmatpush1.bf16.msra.mxu0 0
        %1923 = vmatprep.subr.bf16.mxu0 0
        %1924 = vmatpush1.bf16.msra.mxu0 0
        %1925 = vmatprep.subr.bf16.mxu0 0
        %1926 = vmatpush1.bf16.msra.mxu0 0
        %1927 = vmatprep.subr.bf16.mxu0 0
        %1928 = vmatpush1.bf16.msra.mxu0 0
        %1929 = vmatprep.subr.bf16.mxu0 0
        %1930 = vmatpush1.bf16.msra.mxu0 0
        %1931 = vmatprep.subr.bf16.mxu0 0
        %1932 = vmatpush1.bf16.msra.mxu0 0
        %1933 = vmatprep.subr.bf16.mxu0 0
        %1934 = vmatpush1.bf16.msra.mxu0 0
        %1935 = vmatprep.subr.bf16.mxu0 0
        %1936 = vmatpush1.bf16.msra.mxu0 0
        %1937 = vmatprep.subr.bf16.mxu0 0
        %1938 = vmatpush1.bf16.msra.mxu0 0
        %1939 = vmatprep.mubr.bf16.mxu0 0
        %1940 = vmatmul.mubr.bf16.gmra.mrb[0].mxu0 %v1875
        %v1941 = vpop.f32.mrb[0].mxu0
        %v1942 = vadd.f32 0.0, %v1941
        %v1943 = vpop.f32.mrb[0].mxu0
        %v1944 = vpop.f32.mrb[0].mxu0
        %v1945 = vadd.f32 0.0, %v1944
        %v1946 = vpop.f32.mrb[0].mxu0
        %1947 = vmatprep.mubr.bf16.mxu0 0
        %1948 = vmatmul.mubr.bf16.gmra.mrb[0].mxu0 %v1878
        %v1949 = vpop.f32.mrb[0].mxu0
        %v1950 = vadd.f32 0.0, %v1949
        %v1951 = vpop.f32.mrb[0].mxu0
        %v1952 = vpop.f32.mrb[0].mxu0
        %v1953 = vadd.f32 0.0, %v1952
        %v1954 = vpop.f32.mrb[0].mxu0
        %1955 = vmatprep.mubr.bf16.mxu0 0
        %1956 = vmatmul.mubr.bf16.gmra.mrb[0].mxu0 %v1881
        %v1957 = vpop.f32.mrb[0].mxu0
        %v1958 = vadd.f32 0.0, %v1957
        %v1959 = vpop.f32.mrb[0].mxu0
        %v1960 = vpop.f32.mrb[0].mxu0
        %v1961 = vadd.f32 0.0, %v1960
        %v1962 = vpop.f32.mrb[0].mxu0
        %1963 = vmatprep.mubr.bf16.mxu0 0
        %1964 = vmatmul.mubr.bf16.gmra.mrb[0].mxu0 %v1884
        %v1965 = vpop.f32.mrb[0].mxu0
        %v1966 = vadd.f32 0.0, %v1965
        %v1967 = vpop.f32.mrb[0].mxu0
        %v1968 = vpop.f32.mrb[0].mxu0
        %v1969 = vadd.f32 0.0, %v1968
        %v1970 = vpop.f32.mrb[0].mxu0
        %1971 = vmatprep.mubr.bf16.mxu0 0
        %1972 = vmatmul.mubr.bf16.gmra.mrb[0].mxu0 %v1887
        %v1973 = vpop.f32.mrb[0].mxu0
        %v1974 = vadd.f32 0.0, %v1973
        %v1975 = vpop.f32.mrb[0].mxu0
        %v1976 = vpop.f32.mrb[0].mxu0
        %v1977 = vadd.f32 0.0, %v1976
        %v1978 = vpop.f32.mrb[0].mxu0
        %1979 = vmatprep.mubr.bf16.mxu0 0
        %1980 = vmatmul.mubr.bf16.gmra.mrb[0].mxu0 %v1890
        %v1981 = vpop.f32.mrb[0].mxu0
        %v1982 = vadd.f32 0.0, %v1981
        %v1983 = vpop.f32.mrb[0].mxu0
        %v1984 = vpop.f32.mrb[0].mxu0
        %v1985 = vadd.f32 0.0, %v1984
        %v1986 = vpop.f32.mrb[0].mxu0
        %1987 = vmatprep.mubr.bf16.mxu0 0
        %1988 = vmatmul.mubr.bf16.gmra.mrb[0].mxu0 %v1893
        %v1989 = vpop.f32.mrb[0].mxu0
        %v1990 = vadd.f32 0.0, %v1989
        %v1991 = vpop.f32.mrb[0].mxu0
        %v1992 = vpop.f32.mrb[0].mxu0
        %v1993 = vadd.f32 0.0, %v1992
        %v1994 = vpop.f32.mrb[0].mxu0
        %1995 = vmatprep.mubr.bf16.mxu0 0
        %1996 = vmatmul.mubr.bf16.gmra.mrb[0].mxu0 %v1896
        %v1997 = vpop.f32.mrb[0].mxu0
        %v1998 = vadd.f32 0.0, %v1997
        %v1999 = vpop.f32.mrb[0].mxu0
        %v2000 = vpop.f32.mrb[0].mxu0
        %v2001 = vadd.f32 0.0, %v2000
        %v2002 = vpop.f32.mrb[0].mxu0
        %2003 = vmatprep.mubr.bf16.mxu0 0
        %2004 = vmatmul.mubr.bf16.gmra.mrb[0].mxu0 %v1899
        %v2005 = vpop.f32.mrb[0].mxu0
        %v2006 = vadd.f32 0.0, %v2005
        %v2007 = vpop.f32.mrb[0].mxu0
        %v2008 = vpop.f32.mrb[0].mxu0
        %v2009 = vadd.f32 0.0, %v2008
        %v2010 = vpop.f32.mrb[0].mxu0
        %2011 = vmatprep.mubr.bf16.mxu0 0
        %2012 = vmatmul.mubr.bf16.gmra.mrb[0].mxu0 %v1902
        %v2013 = vpop.f32.mrb[0].mxu0
        %v2014 = vadd.f32 0.0, %v2013
        %v2015 = vpop.f32.mrb[0].mxu0
        %v2016 = vpop.f32.mrb[0].mxu0
        %v2017 = vadd.f32 0.0, %v2016
        %v2018 = vpop.f32.mrb[0].mxu0
        %2019 = vdwg.mxu0
        %v2020 = vadd.f32 %v1687, %v1942
        %v2021 = vadd.f32 %v1688, %v1945
        %v2022 = vadd.f32 %v1689, %v1950
        %v2023 = vadd.f32 %v1690, %v1953
        %v2024 = vadd.f32 %v1691, %v1958
        %v2025 = vadd.f32 %v1692, %v1961
        %v2026 = vadd.f32 %v1693, %v1966
        %v2027 = vadd.f32 %v1694, %v1969
        %v2028 = vadd.f32 %v1695, %v1974
        %v2029 = vadd.f32 %v1696, %v1977
        %v2030 = vadd.f32 %v1697, %v1982
        %v2031 = vadd.f32 %v1698, %v1985
        %v2032 = vadd.f32 %v1699, %v1990
        %v2033 = vadd.f32 %v1700, %v1993
        %v2034 = vadd.f32 %v1701, %v1998
        %v2035 = vadd.f32 %v1702, %v2001
        %v2036 = vadd.f32 %v1703, %v2006
        %v2037 = vadd.f32 %v1704, %v2009
        %v2038 = vadd.f32 %v1705, %v2014
        %v2039 = vadd.f32 %v1706, %v2017
        %s2040 = scalar_lea.vmem [#allocation8], 10
        %v2041 = vld [vmem:[%s2040] sm:$0x3]
        %v2042 = vunpack.c.l.b16 %v1831
        %v2043 = vunpack.c.l.b16 %v1834
        %v2044 = vpack.c.b16 %v2043, %v2042
        %v2046 = vsel %vm473, %v2044, 0
        %v2049 = vand.u32 %v2041, %v507
        %2051 = vmatprep.subr.bf16.mxu0 0
        %2052 = vmatpush1.bf16.msra.mxu0 %v2049
        %2053 = vmatprep.subr.bf16.mxu0 0
        %2054 = vmatpush1.bf16.msra.mxu0 0
        %2055 = vmatprep.subr.bf16.mxu0 0
        %2056 = vmatpush1.bf16.msra.mxu0 0
        %2057 = vmatprep.subr.bf16.mxu0 0
        %2058 = vmatpush1.bf16.msra.mxu0 0
        %2059 = vmatprep.subr.bf16.mxu0 0
        %2060 = vmatpush1.bf16.msra.mxu0 0
        %2061 = vmatprep.subr.bf16.mxu0 0
        %2062 = vmatpush1.bf16.msra.mxu0 0
        %2063 = vmatprep.subr.bf16.mxu0 0
        %2064 = vmatpush1.bf16.msra.mxu0 0
        %2065 = vmatprep.subr.bf16.mxu0 0
        %2066 = vmatpush1.bf16.msra.mxu0 0
        %2067 = vmatprep.subr.bf16.mxu0 0
        %2068 = vmatpush1.bf16.msra.mxu0 0
        %2069 = vmatprep.subr.bf16.mxu0 0
        %2070 = vmatpush1.bf16.msra.mxu0 0
        %2071 = vmatprep.subr.bf16.mxu0 0
        %2072 = vmatpush1.bf16.msra.mxu0 0
        %2073 = vmatprep.subr.bf16.mxu0 0
        %2074 = vmatpush1.bf16.msra.mxu0 0
        %2075 = vmatprep.subr.bf16.mxu0 0
        %2076 = vmatpush1.bf16.msra.mxu0 0
        %2077 = vmatprep.subr.bf16.mxu0 0
        %2078 = vmatpush1.bf16.msra.mxu0 0
        %2079 = vmatprep.subr.bf16.mxu0 0
        %2080 = vmatpush1.bf16.msra.mxu0 0
        %2081 = vmatprep.subr.bf16.mxu0 0
        %2082 = vmatpush1.bf16.msra.mxu0 0
        %2083 = vmatprep.mubr.bf16.mxu0 0
        %2084 = vmatmul.mubr.bf16.gmra.mrb[0].mxu0 %v1878
        %v2085 = vpop.f32.mrb[0].mxu0
        %v2086 = vadd.f32 0.0, %v2085
        %v2087 = vpop.f32.mrb[0].mxu0
        %v2088 = vpop.f32.mrb[0].mxu0
        %v2089 = vadd.f32 0.0, %v2088
        %v2090 = vpop.f32.mrb[0].mxu0
        %2091 = vmatprep.mubr.bf16.mxu0 0
        %2092 = vmatmul.mubr.bf16.gmra.mrb[0].mxu0 %v1881
        %v2093 = vpop.f32.mrb[0].mxu0
        %v2094 = vadd.f32 0.0, %v2093
        %v2095 = vpop.f32.mrb[0].mxu0
        %v2096 = vpop.f32.mrb[0].mxu0
        %v2097 = vadd.f32 0.0, %v2096
        %v2098 = vpop.f32.mrb[0].mxu0
        %2099 = vmatprep.mubr.bf16.mxu0 0
        %2100 = vmatmul.mubr.bf16.gmra.mrb[0].mxu0 %v1884
        %v2101 = vpop.f32.mrb[0].mxu0
        %v2102 = vadd.f32 0.0, %v2101
        %v2103 = vpop.f32.mrb[0].mxu0
        %v2104 = vpop.f32.mrb[0].mxu0
        %v2105 = vadd.f32 0.0, %v2104
        %v2106 = vpop.f32.mrb[0].mxu0
        %2107 = vmatprep.mubr.bf16.mxu0 0
        %2108 = vmatmul.mubr.bf16.gmra.mrb[0].mxu0 %v1887
        %v2109 = vpop.f32.mrb[0].mxu0
        %v2110 = vadd.f32 0.0, %v2109
        %v2111 = vpop.f32.mrb[0].mxu0
        %v2112 = vpop.f32.mrb[0].mxu0
        %v2113 = vadd.f32 0.0, %v2112
        %v2114 = vpop.f32.mrb[0].mxu0
        %2115 = vmatprep.mubr.bf16.mxu0 0
        %2116 = vmatmul.mubr.bf16.gmra.mrb[0].mxu0 %v1890
        %v2117 = vpop.f32.mrb[0].mxu0
        %v2118 = vadd.f32 0.0, %v2117
        %v2119 = vpop.f32.mrb[0].mxu0
        %v2120 = vpop.f32.mrb[0].mxu0
        %v2121 = vadd.f32 0.0, %v2120
        %v2122 = vpop.f32.mrb[0].mxu0
        %2123 = vmatprep.mubr.bf16.mxu0 0
        %2124 = vmatmul.mubr.bf16.gmra.mrb[0].mxu0 %v1893
        %v2125 = vpop.f32.mrb[0].mxu0
        %v2126 = vadd.f32 0.0, %v2125
        %v2127 = vpop.f32.mrb[0].mxu0
        %v2128 = vpop.f32.mrb[0].mxu0
        %v2129 = vadd.f32 0.0, %v2128
        %v2130 = vpop.f32.mrb[0].mxu0
        %2131 = vmatprep.mubr.bf16.mxu0 0
        %2132 = vmatmul.mubr.bf16.gmra.mrb[0].mxu0 %v1896
        %v2133 = vpop.f32.mrb[0].mxu0
        %v2134 = vadd.f32 0.0, %v2133
        %v2135 = vpop.f32.mrb[0].mxu0
        %v2136 = vpop.f32.mrb[0].mxu0
        %v2137 = vadd.f32 0.0, %v2136
        %v2138 = vpop.f32.mrb[0].mxu0
        %2139 = vmatprep.mubr.bf16.mxu0 0
        %2140 = vmatmul.mubr.bf16.gmra.mrb[0].mxu0 %v1899
        %v2141 = vpop.f32.mrb[0].mxu0
        %v2142 = vadd.f32 0.0, %v2141
        %v2143 = vpop.f32.mrb[0].mxu0
        %v2144 = vpop.f32.mrb[0].mxu0
        %v2145 = vadd.f32 0.0, %v2144
        %v2146 = vpop.f32.mrb[0].mxu0
        %2147 = vmatprep.mubr.bf16.mxu0 0
        %2148 = vmatmul.mubr.bf16.gmra.mrb[0].mxu0 %v1902
        %v2149 = vpop.f32.mrb[0].mxu0
        %v2150 = vadd.f32 0.0, %v2149
        %v2151 = vpop.f32.mrb[0].mxu0
        %v2152 = vpop.f32.mrb[0].mxu0
        %v2153 = vadd.f32 0.0, %v2152
        %v2154 = vpop.f32.mrb[0].mxu0
        %2155 = vmatprep.mubr.bf16.mxu0 0
        %2156 = vmatmul.mubr.bf16.gmra.mrb[0].mxu0 %v2046
        %v2157 = vpop.f32.mrb[0].mxu0
        %v2158 = vadd.f32 0.0, %v2157
        %v2159 = vpop.f32.mrb[0].mxu0
        %v2160 = vpop.f32.mrb[0].mxu0
        %v2161 = vadd.f32 0.0, %v2160
        %v2162 = vpop.f32.mrb[0].mxu0
        %2163 = vdwg.mxu0
        %v2164 = vadd.f32 %v2020, %v2086
        %v2165 = vadd.f32 %v2021, %v2089
        %v2166 = vadd.f32 %v2022, %v2094
        %v2167 = vadd.f32 %v2023, %v2097
        %v2168 = vadd.f32 %v2024, %v2102
        %v2169 = vadd.f32 %v2025, %v2105
        %v2170 = vadd.f32 %v2026, %v2110
        %v2171 = vadd.f32 %v2027, %v2113
        %v2172 = vadd.f32 %v2028, %v2118
        %v2173 = vadd.f32 %v2029, %v2121
        %v2174 = vadd.f32 %v2030, %v2126
        %v2175 = vadd.f32 %v2031, %v2129
        %v2176 = vadd.f32 %v2032, %v2134
        %v2177 = vadd.f32 %v2033, %v2137
        %v2178 = vadd.f32 %v2034, %v2142
        %v2179 = vadd.f32 %v2035, %v2145
        %v2180 = vadd.f32 %v2036, %v2150
        %v2181 = vadd.f32 %v2037, %v2153
        %v2182 = vadd.f32 %v2038, %v2158
        %v2183 = vadd.f32 %v2039, %v2161
        %s2184 = scalar_lea.vmem [#allocation8], 16
        %v2185 = vld [vmem:[%s2184] sm:$0x3]
        %v2186 = vunpack.c.l.b16 %v1838
        %v2187 = vunpack.c.l.b16 %v1841
        %v2188 = vpack.c.b16 %v2187, %v2186
        %v2190 = vsel %vm473, %v2188, 0
        %v2193 = vand.u32 %v2185, %v507
        %2195 = vmatprep.subr.bf16.mxu0 0
        %2196 = vmatpush1.bf16.msra.mxu0 %v2193
        %2197 = vmatprep.subr.bf16.mxu0 0
        %2198 = vmatpush1.bf16.msra.mxu0 0
        %2199 = vmatprep.subr.bf16.mxu0 0
        %2200 = vmatpush1.bf16.msra.mxu0 0
        %2201 = vmatprep.subr.bf16.mxu0 0
        %2202 = vmatpush1.bf16.msra.mxu0 0
        %2203 = vmatprep.subr.bf16.mxu0 0
        %2204 = vmatpush1.bf16.msra.mxu0 0
        %2205 = vmatprep.subr.bf16.mxu0 0
        %2206 = vmatpush1.bf16.msra.mxu0 0
        %2207 = vmatprep.subr.bf16.mxu0 0
        %2208 = vmatpush1.bf16.msra.mxu0 0
        %2209 = vmatprep.subr.bf16.mxu0 0
        %2210 = vmatpush1.bf16.msra.mxu0 0
        %2211 = vmatprep.subr.bf16.mxu0 0
        %2212 = vmatpush1.bf16.msra.mxu0 0
        %2213 = vmatprep.subr.bf16.mxu0 0
        %2214 = vmatpush1.bf16.msra.mxu0 0
        %2215 = vmatprep.subr.bf16.mxu0 0
        %2216 = vmatpush1.bf16.msra.mxu0 0
        %2217 = vmatprep.subr.bf16.mxu0 0
        %2218 = vmatpush1.bf16.msra.mxu0 0
        %2219 = vmatprep.subr.bf16.mxu0 0
        %2220 = vmatpush1.bf16.msra.mxu0 0
        %2221 = vmatprep.subr.bf16.mxu0 0
        %2222 = vmatpush1.bf16.msra.mxu0 0
        %2223 = vmatprep.subr.bf16.mxu0 0
        %2224 = vmatpush1.bf16.msra.mxu0 0
        %2225 = vmatprep.subr.bf16.mxu0 0
        %2226 = vmatpush1.bf16.msra.mxu0 0
        %2227 = vmatprep.mubr.bf16.mxu0 0
        %2228 = vmatmul.mubr.bf16.gmra.mrb[0].mxu0 %v1881
        %v2229 = vpop.f32.mrb[0].mxu0
        %v2230 = vadd.f32 0.0, %v2229
        %v2231 = vpop.f32.mrb[0].mxu0
        %v2232 = vpop.f32.mrb[0].mxu0
        %v2233 = vadd.f32 0.0, %v2232
        %v2234 = vpop.f32.mrb[0].mxu0
        %2235 = vmatprep.mubr.bf16.mxu0 0
        %2236 = vmatmul.mubr.bf16.gmra.mrb[0].mxu0 %v1884
        %v2237 = vpop.f32.mrb[0].mxu0
        %v2238 = vadd.f32 0.0, %v2237
        %v2239 = vpop.f32.mrb[0].mxu0
        %v2240 = vpop.f32.mrb[0].mxu0
        %v2241 = vadd.f32 0.0, %v2240
        %v2242 = vpop.f32.mrb[0].mxu0
        %2243 = vmatprep.mubr.bf16.mxu0 0
        %2244 = vmatmul.mubr.bf16.gmra.mrb[0].mxu0 %v1887
        %v2245 = vpop.f32.mrb[0].mxu0
        %v2246 = vadd.f32 0.0, %v2245
        %v2247 = vpop.f32.mrb[0].mxu0
        %v2248 = vpop.f32.mrb[0].mxu0
        %v2249 = vadd.f32 0.0, %v2248
        %v2250 = vpop.f32.mrb[0].mxu0
        %2251 = vmatprep.mubr.bf16.mxu0 0
        %2252 = vmatmul.mubr.bf16.gmra.mrb[0].mxu0 %v1890
        %v2253 = vpop.f32.mrb[0].mxu0
        %v2254 = vadd.f32 0.0, %v2253
        %v2255 = vpop.f32.mrb[0].mxu0
        %v2256 = vpop.f32.mrb[0].mxu0
        %v2257 = vadd.f32 0.0, %v2256
        %v2258 = vpop.f32.mrb[0].mxu0
        %2259 = vmatprep.mubr.bf16.mxu0 0
        %2260 = vmatmul.mubr.bf16.gmra.mrb[0].mxu0 %v1893
        %v2261 = vpop.f32.mrb[0].mxu0
        %v2262 = vadd.f32 0.0, %v2261
        %v2263 = vpop.f32.mrb[0].mxu0
        %v2264 = vpop.f32.mrb[0].mxu0
        %v2265 = vadd.f32 0.0, %v2264
        %v2266 = vpop.f32.mrb[0].mxu0
        %2267 = vmatprep.mubr.bf16.mxu0 0
        %2268 = vmatmul.mubr.bf16.gmra.mrb[0].mxu0 %v1896
        %v2269 = vpop.f32.mrb[0].mxu0
        %v2270 = vadd.f32 0.0, %v2269
        %v2271 = vpop.f32.mrb[0].mxu0
        %v2272 = vpop.f32.mrb[0].mxu0
        %v2273 = vadd.f32 0.0, %v2272
        %v2274 = vpop.f32.mrb[0].mxu0
        %2275 = vmatprep.mubr.bf16.mxu0 0
        %2276 = vmatmul.mubr.bf16.gmra.mrb[0].mxu0 %v1899
        %v2277 = vpop.f32.mrb[0].mxu0
        %v2278 = vadd.f32 0.0, %v2277
        %v2279 = vpop.f32.mrb[0].mxu0
        %v2280 = vpop.f32.mrb[0].mxu0
        %v2281 = vadd.f32 0.0, %v2280
        %v2282 = vpop.f32.mrb[0].mxu0
        %2283 = vmatprep.mubr.bf16.mxu0 0
        %2284 = vmatmul.mubr.bf16.gmra.mrb[0].mxu0 %v1902
        %v2285 = vpop.f32.mrb[0].mxu0
        %v2286 = vadd.f32 0.0, %v2285
        %v2287 = vpop.f32.mrb[0].mxu0
        %v2288 = vpop.f32.mrb[0].mxu0
        %v2289 = vadd.f32 0.0, %v2288
        %v2290 = vpop.f32.mrb[0].mxu0
        %2291 = vmatprep.mubr.bf16.mxu0 0
        %2292 = vmatmul.mubr.bf16.gmra.mrb[0].mxu0 %v2046
        %v2293 = vpop.f32.mrb[0].mxu0
        %v2294 = vadd.f32 0.0, %v2293
        %v2295 = vpop.f32.mrb[0].mxu0
        %v2296 = vpop.f32.mrb[0].mxu0
        %v2297 = vadd.f32 0.0, %v2296
        %v2298 = vpop.f32.mrb[0].mxu0
        %2299 = vmatprep.mubr.bf16.mxu0 0
        %2300 = vmatmul.mubr.bf16.gmra.mrb[0].mxu0 %v2190
        %v2301 = vpop.f32.mrb[0].mxu0
        %v2302 = vadd.f32 0.0, %v2301
        %v2303 = vpop.f32.mrb[0].mxu0
        %v2304 = vpop.f32.mrb[0].mxu0
        %v2305 = vadd.f32 0.0, %v2304
        %v2306 = vpop.f32.mrb[0].mxu0
        %2307 = vdwg.mxu0
        %v2308 = vadd.f32 %v2164, %v2230
        %v2309 = vadd.f32 %v2165, %v2233
        %v2310 = vadd.f32 %v2166, %v2238
        %v2311 = vadd.f32 %v2167, %v2241
        %v2312 = vadd.f32 %v2168, %v2246
        %v2313 = vadd.f32 %v2169, %v2249
        %v2314 = vadd.f32 %v2170, %v2254
        %v2315 = vadd.f32 %v2171, %v2257
        %v2316 = vadd.f32 %v2172, %v2262
        %v2317 = vadd.f32 %v2173, %v2265
        %v2318 = vadd.f32 %v2174, %v2270
        %v2319 = vadd.f32 %v2175, %v2273
        %v2320 = vadd.f32 %v2176, %v2278
        %v2321 = vadd.f32 %v2177, %v2281
        %v2322 = vadd.f32 %v2178, %v2286
        %v2323 = vadd.f32 %v2179, %v2289
        %v2324 = vadd.f32 %v2180, %v2294
        %v2325 = vadd.f32 %v2181, %v2297
        %v2326 = vadd.f32 %v2182, %v2302
        %v2327 = vadd.f32 %v2183, %v2305
        %v2328 = vld [vmem:[#allocation9] sm:$0x1]
        %v2330 = vlaneseq
        %v2331 = vshrl.u32 %v2330, 7
        %v2332 = vsub.s32 0, %v2331
        %v2333 = vrot.slane %v2328, %v2332
        %v2335 = vadd.f32 %v2308, %v2333
        %v2336 = vadd.f32 %v2309, %v2333
        %v2337 = vadd.f32 %v2310, %v2333
        %v2338 = vadd.f32 %v2311, %v2333
        %v2339 = vadd.f32 %v2312, %v2333
        %v2340 = vadd.f32 %v2313, %v2333
        %v2341 = vadd.f32 %v2314, %v2333
        %v2342 = vadd.f32 %v2315, %v2333
        %v2343 = vadd.f32 %v2316, %v2333
        %v2344 = vadd.f32 %v2317, %v2333
        %v2345 = vadd.f32 %v2318, %v2333
        %v2346 = vadd.f32 %v2319, %v2333
        %v2347 = vadd.f32 %v2320, %v2333
        %v2348 = vadd.f32 %v2321, %v2333
        %v2349 = vadd.f32 %v2322, %v2333
        %v2350 = vadd.f32 %v2323, %v2333
        %v2351 = vadd.f32 %v2324, %v2333
        %v2352 = vadd.f32 %v2325, %v2333
        %v2353 = vadd.f32 %v2326, %v2333
        %v2354 = vadd.f32 %v2327, %v2333
        %v2355 = vmax.f32 %v2335, 0.0
        %v2356 = vmax.f32 %v2336, 0.0
        %v2357 = vmax.f32 %v2337, 0.0
        %v2358 = vmax.f32 %v2338, 0.0
        %v2359 = vmax.f32 %v2339, 0.0
        %v2360 = vmax.f32 %v2340, 0.0
        %v2361 = vmax.f32 %v2341, 0.0
        %v2362 = vmax.f32 %v2342, 0.0
        %v2363 = vmax.f32 %v2343, 0.0
        %v2364 = vmax.f32 %v2344, 0.0
        %v2365 = vmax.f32 %v2345, 0.0
        %v2366 = vmax.f32 %v2346, 0.0
        %v2367 = vmax.f32 %v2347, 0.0
        %v2368 = vmax.f32 %v2348, 0.0
        %v2369 = vmax.f32 %v2349, 0.0
        %v2370 = vmax.f32 %v2350, 0.0
        %v2371 = vmax.f32 %v2351, 0.0
        %v2372 = vmax.f32 %v2352, 0.0
        %v2373 = vmax.f32 %v2353, 0.0
        %v2374 = vmax.f32 %v2354, 0.0
        %vm2375 = vcmask 1040384
        %vm2376 = vsmask.f32 256
        %vm2377 = vmand %vm2375, %vm2376
        %v2378 = vld [vmem:[#allocation2] sm:$0x1]
        %v2379 = vsel %vm2377, 0, %v2378
        %2380 = vst [vmem:[#allocation2] sm:$0x1] %v2379
        %v2381 = vld [vmem:[#allocation2 + $0xc] sm:$0x1]
        %v2382 = vsel %vm2377, 0, %v2381
        %2383 = vst [vmem:[#allocation2 + $0xc] sm:$0x1] %v2382
        %v2384 = vld [vmem:[#allocation2 + $0x18] sm:$0x1]
        %v2385 = vsel %vm2377, 0, %v2384
        %2386 = vst [vmem:[#allocation2 + $0x18] sm:$0x1] %v2385
        %v2387 = vld [vmem:[#allocation2 + $0x24] sm:$0x1]
        %v2388 = vsel %vm2377, 0, %v2387
        %2389 = vst [vmem:[#allocation2 + $0x24] sm:$0x1] %v2388
        %v2390 = vld [vmem:[#allocation2 + $0x30] sm:$0x1]
        %v2391 = vsel %vm2377, 0, %v2390
        %2392 = vst [vmem:[#allocation2 + $0x30] sm:$0x1] %v2391
        %v2393 = vld [vmem:[#allocation2 + $0x3c] sm:$0x1]
        %v2394 = vsel %vm2377, 0, %v2393
        %2395 = vst [vmem:[#allocation2 + $0x3c] sm:$0x1] %v2394
        %v2396 = vld [vmem:[#allocation2 + $0x48] sm:$0x1]
        %v2397 = vsel %vm2377, 0, %v2396
        %2398 = vst [vmem:[#allocation2 + $0x48] sm:$0x1] %v2397
        %v2399 = vld [vmem:[#allocation2 + $0x54] sm:$0x1]
        %v2400 = vsel %vm2377, 0, %v2399
        %2401 = vst [vmem:[#allocation2 + $0x54] sm:$0x1] %v2400
        %v2402 = vld [vmem:[#allocation2 + $0x60] sm:$0x1]
        %v2403 = vsel %vm2377, 0, %v2402
        %2404 = vst [vmem:[#allocation2 + $0x60] sm:$0x1] %v2403
        %v2405 = vld [vmem:[#allocation2 + $0x6c] sm:$0x1]
        %v2406 = vsel %vm2377, 0, %v2405
        %2407 = vst [vmem:[#allocation2 + $0x6c] sm:$0x1] %v2406
        %vm2408 = vsmask.f32 7938
        %vm2409 = vmand %vm2375, %vm2408
        %v2410 = vld [vmem:[#allocation2 + $0x8] sm:$0x1]
        %v2411 = vsel %vm2409, 0, %v2410
        %2412 = vst [vmem:[#allocation2 + $0x8] sm:$0x1] %v2411
        %v2413 = vld [vmem:[#allocation2 + $0x14] sm:$0x1]
        %v2414 = vsel %vm2409, 0, %v2413
        %2415 = vst [vmem:[#allocation2 + $0x14] sm:$0x1] %v2414
        %v2416 = vld [vmem:[#allocation2 + $0x20] sm:$0x1]
        %v2417 = vsel %vm2409, 0, %v2416
        %2418 = vst [vmem:[#allocation2 + $0x20] sm:$0x1] %v2417
        %v2419 = vld [vmem:[#allocation2 + $0x2c] sm:$0x1]
        %v2420 = vsel %vm2409, 0, %v2419
        %2421 = vst [vmem:[#allocation2 + $0x2c] sm:$0x1] %v2420
        %v2422 = vld [vmem:[#allocation2 + $0x38] sm:$0x1]
        %v2423 = vsel %vm2409, 0, %v2422
        %2424 = vst [vmem:[#allocation2 + $0x38] sm:$0x1] %v2423
        %v2425 = vld [vmem:[#allocation2 + $0x44] sm:$0x1]
        %v2426 = vsel %vm2409, 0, %v2425
        %2427 = vst [vmem:[#allocation2 + $0x44] sm:$0x1] %v2426
        %v2428 = vld [vmem:[#allocation2 + $0x50] sm:$0x1]
        %v2429 = vsel %vm2409, 0, %v2428
        %2430 = vst [vmem:[#allocation2 + $0x50] sm:$0x1] %v2429
        %v2431 = vld [vmem:[#allocation2 + $0x5c] sm:$0x1]
        %v2432 = vsel %vm2409, 0, %v2431
        %2433 = vst [vmem:[#allocation2 + $0x5c] sm:$0x1] %v2432
        %v2434 = vld [vmem:[#allocation2 + $0x68] sm:$0x1]
        %v2435 = vsel %vm2409, 0, %v2434
        %2436 = vst [vmem:[#allocation2 + $0x68] sm:$0x1] %v2435
        %v2437 = vld [vmem:[#allocation2 + $0x74] sm:$0x1]
        %v2438 = vsel %vm2409, 0, %v2437
        %2439 = vst [vmem:[#allocation2 + $0x74] sm:$0x1] %v2438
        %v2440 = vpack.c.bf16 %v2356, %v2355
        %v2441 = vpack.c.bf16 %v2358, %v2357
        %v2442 = vpack.c.bf16 %v2360, %v2359
        %v2443 = vpack.c.bf16 %v2362, %v2361
        %v2444 = vpack.c.bf16 %v2364, %v2363
        %v2445 = vpack.c.bf16 %v2366, %v2365
        %v2446 = vpack.c.bf16 %v2368, %v2367
        %v2447 = vpack.c.bf16 %v2370, %v2369
        %v2448 = vpack.c.bf16 %v2372, %v2371
        %v2449 = vpack.c.bf16 %v2374, %v2373
        %v2460 = vunpack.c.l.b16 %v2440
        %v2461 = vunpack.c.h.b16 %v2440
        %v2462 = vunpack.c.l.b16 %v2441
        %v2463 = vunpack.c.h.b16 %v2441
        %v2464 = vunpack.c.l.b16 %v2442
        %v2465 = vunpack.c.h.b16 %v2442
        %v2466 = vunpack.c.l.b16 %v2443
        %v2467 = vunpack.c.h.b16 %v2443
        %v2468 = vunpack.c.l.b16 %v2444
        %v2469 = vunpack.c.h.b16 %v2444
        %v2470 = vunpack.c.l.b16 %v2445
        %v2471 = vunpack.c.h.b16 %v2445
        %v2472 = vunpack.c.l.b16 %v2446
        %v2473 = vunpack.c.h.b16 %v2446
        %v2474 = vunpack.c.l.b16 %v2447
        %v2475 = vunpack.c.h.b16 %v2447
        %v2476 = vunpack.c.l.b16 %v2448
        %v2477 = vunpack.c.h.b16 %v2448
        %v2478 = vunpack.c.l.b16 %v2449
        %v2479 = vunpack.c.h.b16 %v2449
        %v2480 = vpack.c.b16 %v2460, %v2460
        %v2481 = vpack.c.b16 %v2461, %v2461
        %v2482 = vpack.c.b16 %v2462, %v2462
        %v2483 = vpack.c.b16 %v2463, %v2463
        %v2484 = vpack.c.b16 %v2464, %v2464
        %v2485 = vpack.c.b16 %v2465, %v2465
        %v2486 = vpack.c.b16 %v2466, %v2466
        %v2487 = vpack.c.b16 %v2467, %v2467
        %v2488 = vpack.c.b16 %v2468, %v2468
        %v2489 = vpack.c.b16 %v2469, %v2469
        %v2490 = vpack.c.b16 %v2470, %v2470
        %v2491 = vpack.c.b16 %v2471, %v2471
        %v2492 = vpack.c.b16 %v2472, %v2472
        %v2493 = vpack.c.b16 %v2473, %v2473
        %v2494 = vpack.c.b16 %v2474, %v2474
        %v2495 = vpack.c.b16 %v2475, %v2475
        %v2496 = vpack.c.b16 %v2476, %v2476
        %v2497 = vpack.c.b16 %v2477, %v2477
        %v2498 = vpack.c.b16 %v2478, %v2478
        %v2499 = vpack.c.b16 %v2479, %v2479
        %vm2500 = vsmask.f32 4368
        %vm2501 = vmor %vm2376, %vm2500
        %v2503 = vshrl.u32 %v2480, 16
        %v2505 = vrot.slane %v2503, 7
        %v2506 = vshll.u32 %v2480, 16
        %v2508 = vor.u32 %v2505, %v2506
        %v2509 = vrot.slane %v2505, 4
        %v2511 = vshrl.u32 %v2481, 16
        %v2513 = vrot.slane %v2511, 7
        %v2514 = vshll.u32 %v2481, 16
        %v2516 = vor.u32 %v2513, %v2514
        %v2517 = vsel %vm2501, %v2509, %v2516
        %v2518 = vrot.slane %v2513, 4
        %v2520 = vshrl.u32 %v2482, 16
        %v2522 = vrot.slane %v2520, 7
        %v2523 = vshll.u32 %v2482, 16
        %v2525 = vor.u32 %v2522, %v2523
        %v2526 = vrot.slane %v2522, 4
        %v2528 = vshrl.u32 %v2483, 16
        %v2530 = vrot.slane %v2528, 7
        %v2531 = vshll.u32 %v2483, 16
        %v2533 = vor.u32 %v2530, %v2531
        %v2534 = vsel %vm2501, %v2526, %v2533
        %v2535 = vrot.slane %v2530, 4
        %v2537 = vshrl.u32 %v2484, 16
        %v2539 = vrot.slane %v2537, 7
        %v2540 = vshll.u32 %v2484, 16
        %v2542 = vor.u32 %v2539, %v2540
        %v2543 = vrot.slane %v2539, 4
        %v2545 = vshrl.u32 %v2485, 16
        %v2547 = vrot.slane %v2545, 7
        %v2548 = vshll.u32 %v2485, 16
        %v2550 = vor.u32 %v2547, %v2548
        %v2551 = vsel %vm2501, %v2543, %v2550
        %v2552 = vrot.slane %v2547, 4
        %v2554 = vshrl.u32 %v2486, 16
        %v2556 = vrot.slane %v2554, 7
        %v2557 = vshll.u32 %v2486, 16
        %v2559 = vor.u32 %v2556, %v2557
        %v2560 = vrot.slane %v2556, 4
        %v2562 = vshrl.u32 %v2487, 16
        %v2564 = vrot.slane %v2562, 7
        %v2565 = vshll.u32 %v2487, 16
        %v2567 = vor.u32 %v2564, %v2565
        %v2568 = vsel %vm2501, %v2560, %v2567
        %v2569 = vrot.slane %v2564, 4
        %v2571 = vshrl.u32 %v2488, 16
        %v2573 = vrot.slane %v2571, 7
        %v2574 = vshll.u32 %v2488, 16
        %v2576 = vor.u32 %v2573, %v2574
        %v2577 = vrot.slane %v2573, 4
        %v2579 = vshrl.u32 %v2489, 16
        %v2581 = vrot.slane %v2579, 7
        %v2582 = vshll.u32 %v2489, 16
        %v2584 = vor.u32 %v2581, %v2582
        %v2585 = vsel %vm2501, %v2577, %v2584
        %v2586 = vrot.slane %v2581, 4
        %v2588 = vshrl.u32 %v2490, 16
        %v2590 = vrot.slane %v2588, 7
        %v2591 = vshll.u32 %v2490, 16
        %v2593 = vor.u32 %v2590, %v2591
        %v2594 = vrot.slane %v2590, 4
        %v2596 = vshrl.u32 %v2491, 16
        %v2598 = vrot.slane %v2596, 7
        %v2599 = vshll.u32 %v2491, 16
        %v2601 = vor.u32 %v2598, %v2599
        %v2602 = vsel %vm2501, %v2594, %v2601
        %v2603 = vrot.slane %v2598, 4
        %v2605 = vshrl.u32 %v2492, 16
        %v2607 = vrot.slane %v2605, 7
        %v2608 = vshll.u32 %v2492, 16
        %v2610 = vor.u32 %v2607, %v2608
        %v2611 = vrot.slane %v2607, 4
        %v2613 = vshrl.u32 %v2493, 16
        %v2615 = vrot.slane %v2613, 7
        %v2616 = vshll.u32 %v2493, 16
        %v2618 = vor.u32 %v2615, %v2616
        %v2619 = vsel %vm2501, %v2611, %v2618
        %v2620 = vrot.slane %v2615, 4
        %v2622 = vshrl.u32 %v2494, 16
        %v2624 = vrot.slane %v2622, 7
        %v2625 = vshll.u32 %v2494, 16
        %v2627 = vor.u32 %v2624, %v2625
        %v2628 = vrot.slane %v2624, 4
        %v2630 = vshrl.u32 %v2495, 16
        %v2632 = vrot.slane %v2630, 7
        %v2633 = vshll.u32 %v2495, 16
        %v2635 = vor.u32 %v2632, %v2633
        %v2636 = vsel %vm2501, %v2628, %v2635
        %v2637 = vrot.slane %v2632, 4
        %v2639 = vshrl.u32 %v2496, 16
        %v2641 = vrot.slane %v2639, 7
        %v2642 = vshll.u32 %v2496, 16
        %v2644 = vor.u32 %v2641, %v2642
        %v2645 = vrot.slane %v2641, 4
        %v2647 = vshrl.u32 %v2497, 16
        %v2649 = vrot.slane %v2647, 7
        %v2650 = vshll.u32 %v2497, 16
        %v2652 = vor.u32 %v2649, %v2650
        %v2653 = vsel %vm2501, %v2645, %v2652
        %v2654 = vrot.slane %v2649, 4
        %v2656 = vshrl.u32 %v2498, 16
        %v2658 = vrot.slane %v2656, 7
        %v2659 = vshll.u32 %v2498, 16
        %v2661 = vor.u32 %v2658, %v2659
        %v2662 = vrot.slane %v2658, 4
        %v2664 = vshrl.u32 %v2499, 16
        %v2666 = vrot.slane %v2664, 7
        %v2667 = vshll.u32 %v2499, 16
        %v2669 = vor.u32 %v2666, %v2667
        %v2670 = vsel %vm2501, %v2662, %v2669
        %v2671 = vrot.slane %v2666, 4
        %vm2702 = vcmask 1043456
        %vm2703 = vmand %vm2702, %vm2408
        %v2704 = vld [vmem:[#allocation2] sm:$0xf]
        %v2705 = vsel %vm2703, %v2508, %v2704
        %2706 = vst [vmem:[#allocation2] sm:$0xf] %v2705
        %2707 = vst [vmem:[#allocation2 + $0x4] sm:$0xf] %v2517
        %v2708 = vld [vmem:[#allocation2 + $0x8] sm:$0x1]
        %v2709 = vsel %vm2377, %v2518, %v2708
        %2710 = vst [vmem:[#allocation2 + $0x8] sm:$0x1] %v2709
        %v2711 = vld [vmem:[#allocation2 + $0xc] sm:$0xf]
        %v2712 = vsel %vm2703, %v2525, %v2711
        %2713 = vst [vmem:[#allocation2 + $0xc] sm:$0xf] %v2712
        %2714 = vst [vmem:[#allocation2 + $0x10] sm:$0xf] %v2534
        %v2715 = vld [vmem:[#allocation2 + $0x14] sm:$0x1]
        %v2716 = vsel %vm2377, %v2535, %v2715
        %2717 = vst [vmem:[#allocation2 + $0x14] sm:$0x1] %v2716
        %v2718 = vld [vmem:[#allocation2 + $0x18] sm:$0xf]
        %v2719 = vsel %vm2703, %v2542, %v2718
        %2720 = vst [vmem:[#allocation2 + $0x18] sm:$0xf] %v2719
        %2721 = vst [vmem:[#allocation2 + $0x1c] sm:$0xf] %v2551
        %v2722 = vld [vmem:[#allocation2 + $0x20] sm:$0x1]
        %v2723 = vsel %vm2377, %v2552, %v2722
        %2724 = vst [vmem:[#allocation2 + $0x20] sm:$0x1] %v2723
        %v2725 = vld [vmem:[#allocation2 + $0x24] sm:$0xf]
        %v2726 = vsel %vm2703, %v2559, %v2725
        %2727 = vst [vmem:[#allocation2 + $0x24] sm:$0xf] %v2726
        %2728 = vst [vmem:[#allocation2 + $0x28] sm:$0xf] %v2568
        %v2729 = vld [vmem:[#allocation2 + $0x2c] sm:$0x1]
        %v2730 = vsel %vm2377, %v2569, %v2729
        %2731 = vst [vmem:[#allocation2 + $0x2c] sm:$0x1] %v2730
        %v2732 = vld [vmem:[#allocation2 + $0x30] sm:$0xf]
        %v2733 = vsel %vm2703, %v2576, %v2732
        %2734 = vst [vmem:[#allocation2 + $0x30] sm:$0xf] %v2733
        %2735 = vst [vmem:[#allocation2 + $0x34] sm:$0xf] %v2585
        %v2736 = vld [vmem:[#allocation2 + $0x38] sm:$0x1]
        %v2737 = vsel %vm2377, %v2586, %v2736
        %2738 = vst [vmem:[#allocation2 + $0x38] sm:$0x1] %v2737
        %v2739 = vld [vmem:[#allocation2 + $0x3c] sm:$0xf]
        %v2740 = vsel %vm2703, %v2593, %v2739
        %2741 = vst [vmem:[#allocation2 + $0x3c] sm:$0xf] %v2740
        %2742 = vst [vmem:[#allocation2 + $0x40] sm:$0xf] %v2602
        %v2743 = vld [vmem:[#allocation2 + $0x44] sm:$0x1]
        %v2744 = vsel %vm2377, %v2603, %v2743
        %2745 = vst [vmem:[#allocation2 + $0x44] sm:$0x1] %v2744
        %v2746 = vld [vmem:[#allocation2 + $0x48] sm:$0xf]
        %v2747 = vsel %vm2703, %v2610, %v2746
        %2748 = vst [vmem:[#allocation2 + $0x48] sm:$0xf] %v2747
        %2749 = vst [vmem:[#allocation2 + $0x4c] sm:$0xf] %v2619
        %v2750 = vld [vmem:[#allocation2 + $0x50] sm:$0x1]
        %v2751 = vsel %vm2377, %v2620, %v2750
        %2752 = vst [vmem:[#allocation2 + $0x50] sm:$0x1] %v2751
        %v2753 = vld [vmem:[#allocation2 + $0x54] sm:$0xf]
        %v2754 = vsel %vm2703, %v2627, %v2753
        %2755 = vst [vmem:[#allocation2 + $0x54] sm:$0xf] %v2754
        %2756 = vst [vmem:[#allocation2 + $0x58] sm:$0xf] %v2636
        %v2757 = vld [vmem:[#allocation2 + $0x5c] sm:$0x1]
        %v2758 = vsel %vm2377, %v2637, %v2757
        %2759 = vst [vmem:[#allocation2 + $0x5c] sm:$0x1] %v2758
        %v2760 = vld [vmem:[#allocation2 + $0x60] sm:$0xf]
        %v2761 = vsel %vm2703, %v2644, %v2760
        %2762 = vst [vmem:[#allocation2 + $0x60] sm:$0xf] %v2761
        %2763 = vst [vmem:[#allocation2 + $0x64] sm:$0xf] %v2653
        %v2764 = vld [vmem:[#allocation2 + $0x68] sm:$0x1]
        %v2765 = vsel %vm2377, %v2654, %v2764
        %2766 = vst [vmem:[#allocation2 + $0x68] sm:$0x1] %v2765
        %v2767 = vld [vmem:[#allocation2 + $0x6c] sm:$0xf]
        %v2768 = vsel %vm2703, %v2661, %v2767
        %2769 = vst [vmem:[#allocation2 + $0x6c] sm:$0xf] %v2768
        %2770 = vst [vmem:[#allocation2 + $0x70] sm:$0xf] %v2670
        %v2771 = vld [vmem:[#allocation2 + $0x74] sm:$0x1]
        %v2772 = vsel %vm2377, %v2671, %v2771
        %2773 = vst [vmem:[#allocation2 + $0x74] sm:$0x1] %v2772
        %p2774 = scmp.eq.s32.totalorder %s33, 0
        // Predicated region
        $region69: #{tpu_custom_call.1} parent=43 // pred_check
          %p2775 = pneg %p2774
        $region70: #{tpu_custom_call.1} parent=43 // pred_check_branch
          %2777 = sbr.rel (%p2775) target = $region72
        $region71: #{tpu_custom_call.1} parent=43 // pred_region
          %2778 = vst [vmem:[#allocation2] sm:$0xf] 0
          %2779 = vst [vmem:[#allocation2 + $0x4] sm:$0xf] 0
          %2780 = vst [vmem:[#allocation2 + $0x8] sm:$0x1] 0
        $region72: #{tpu_custom_call.1} parent=43 // pred_fallthru
          _
        %p2781 = scmp.eq.s32.totalorder %s33, 1
        // Predicated region
        $region73: #{tpu_custom_call.1} parent=43 // pred_check
          %p2782 = pneg %p2781
        $region74: #{tpu_custom_call.1} parent=43 // pred_check_branch
          %2784 = sbr.rel (%p2782) target = $region76
        $region75: #{tpu_custom_call.1} parent=43 // pred_region
          %s2785 = scalar_lea.vmem [#allocation2], 108
          %2786 = vst [vmem:[%s2785] sm:$0xf] 0
          %2787 = vst [vmem:[%s2785 + $0x4] sm:$0xf] 0
          %2788 = vst [vmem:[%s2785 + $0x8] sm:$0x1] 0
        $region76: #{tpu_custom_call.1} parent=43 // pred_fallthru
          _
        %v2789 = vld [vmem:[#allocation2] sm:$0xf]
        %v2790 = vld [vmem:[#allocation2 + $0x4] sm:$0xf]
        %v2791 = vld [vmem:[#allocation2 + $0xc] sm:$0xf]
        %v2792 = vld [vmem:[#allocation2 + $0x10] sm:$0xf]
        %v2793 = vld [vmem:[#allocation2 + $0x18] sm:$0xf]
        %v2794 = vld [vmem:[#allocation2 + $0x1c] sm:$0xf]
        %v2795 = vld [vmem:[#allocation2 + $0x24] sm:$0xf]
        %v2796 = vld [vmem:[#allocation2 + $0x28] sm:$0xf]
        %v2797 = vld [vmem:[#allocation2 + $0x30] sm:$0xf]
        %v2798 = vld [vmem:[#allocation2 + $0x34] sm:$0xf]
        %v2799 = vld [vmem:[#allocation2 + $0x3c] sm:$0xf]
        %v2800 = vld [vmem:[#allocation2 + $0x40] sm:$0xf]
        %v2801 = vld [vmem:[#allocation2 + $0x48] sm:$0xf]
        %v2802 = vld [vmem:[#allocation2 + $0x4c] sm:$0xf]
        %v2803 = vld [vmem:[#allocation2 + $0x54] sm:$0xf]
        %v2804 = vld [vmem:[#allocation2 + $0x58] sm:$0xf]
        %v2805 = vld [vmem:[#allocation2 + $0x60] sm:$0xf]
        %v2806 = vld [vmem:[#allocation2 + $0x64] sm:$0xf]
        %v2807 = vld [vmem:[#allocation2 + $0x6c] sm:$0xf]
        %v2808 = vld [vmem:[#allocation2 + $0x70] sm:$0xf]
        %v2825 = vunpack.c.l.b16 %v2789
        %v2826 = vunpack.c.l.b16 %v2790
        %v2827 = vunpack.c.l.b16 %v2791
        %v2828 = vunpack.c.l.b16 %v2792
        %v2829 = vunpack.c.l.b16 %v2793
        %v2830 = vunpack.c.l.b16 %v2794
        %v2831 = vunpack.c.l.b16 %v2795
        %v2832 = vunpack.c.l.b16 %v2796
        %v2833 = vunpack.c.l.b16 %v2797
        %v2834 = vunpack.c.l.b16 %v2798
        %v2835 = vunpack.c.l.b16 %v2799
        %v2836 = vunpack.c.l.b16 %v2800
        %v2837 = vunpack.c.l.b16 %v2801
        %v2838 = vunpack.c.l.b16 %v2802
        %v2839 = vunpack.c.l.b16 %v2803
        %v2840 = vunpack.c.l.b16 %v2804
        %v2841 = vpack.c.b16 %v2826, %v2825
        %v2842 = vpack.c.b16 %v2828, %v2827
        %v2843 = vpack.c.b16 %v2830, %v2829
        %v2844 = vpack.c.b16 %v2832, %v2831
        %v2845 = vpack.c.b16 %v2834, %v2833
        %v2846 = vpack.c.b16 %v2836, %v2835
        %v2847 = vpack.c.b16 %v2838, %v2837
        %v2848 = vpack.c.b16 %v2840, %v2839
        %v2859 = vunpack.c.l.b16 %v2805
        %v2860 = vunpack.c.l.b16 %v2806
        %v2861 = vpack.c.b16 %v2860, %v2859
        %v2865 = vunpack.c.l.b16 %v2807
        %v2866 = vunpack.c.l.b16 %v2808
        %v2867 = vpack.c.b16 %v2866, %v2865
        %v2869 = vld [vmem:[#allocation11] sm:$0xf]
        %v2870 = vld [vmem:[#allocation11 + $0x4] sm:$0xf]
        %v2871 = vld [vmem:[#allocation11 + $0x8] sm:$0xf]
        %v2872 = vld [vmem:[#allocation11 + $0xc] sm:$0xf]
        %v2873 = vld [vmem:[#allocation11 + $0x10] sm:$0xf]
        %v2874 = vld [vmem:[#allocation11 + $0x14] sm:$0xf]
        %v2875 = vld [vmem:[#allocation11 + $0x18] sm:$0xf]
        %v2876 = vld [vmem:[#allocation11 + $0x1c] sm:$0xf]
        %v2877 = vld [vmem:[#allocation11 + $0x20] sm:$0xf]
        %v2878 = vld [vmem:[#allocation11 + $0x24] sm:$0xf]
        %v2879 = vld [vmem:[#allocation11 + $0x28] sm:$0xf]
        %v2880 = vld [vmem:[#allocation11 + $0x2c] sm:$0xf]
        %v2881 = vld [vmem:[#allocation11 + $0x30] sm:$0xf]
        %v2882 = vld [vmem:[#allocation11 + $0x34] sm:$0xf]
        %v2883 = vld [vmem:[#allocation11 + $0x38] sm:$0xf]
        %v2884 = vld [vmem:[#allocation11 + $0x3c] sm:$0xf]
        %v2885 = vld [vmem:[#allocation11 + $0x40] sm:$0xf]
        %v2886 = vld [vmem:[#allocation11 + $0x44] sm:$0xf]
        %v2887 = vld [vmem:[#allocation11 + $0x48] sm:$0xf]
        %v2888 = vld [vmem:[#allocation11 + $0x4c] sm:$0xf]
        %v2889 = vld [vmem:[#allocation11 + $0x50] sm:$0xf]
        %v2890 = vld [vmem:[#allocation11 + $0x54] sm:$0xf]
        %v2891 = vld [vmem:[#allocation11 + $0x58] sm:$0xf]
        %v2892 = vld [vmem:[#allocation11 + $0x5c] sm:$0xf]
        %v2893 = vld [vmem:[#allocation11 + $0x60] sm:$0xf]
        %v2894 = vld [vmem:[#allocation11 + $0x64] sm:$0xf]
        %v2895 = vld [vmem:[#allocation11 + $0x68] sm:$0xf]
        %v2896 = vld [vmem:[#allocation11 + $0x6c] sm:$0xf]
        %v2897 = vld [vmem:[#allocation11 + $0x70] sm:$0xf]
        %v2898 = vld [vmem:[#allocation11 + $0x74] sm:$0xf]
        %v2899 = vld [vmem:[#allocation11 + $0x78] sm:$0xf]
        %v2900 = vld [vmem:[#allocation11 + $0x7c] sm:$0xf]
        %v2901 = vld [vmem:[#allocation11 + $0x80] sm:$0xf]
        %v2902 = vld [vmem:[#allocation11 + $0x84] sm:$0xf]
        %v2903 = vld [vmem:[#allocation11 + $0x88] sm:$0xf]
        %v2904 = vld [vmem:[#allocation11 + $0x8c] sm:$0xf]
        %v2905 = vld [vmem:[#allocation11 + $0x90] sm:$0xf]
        %v2906 = vld [vmem:[#allocation11 + $0x94] sm:$0xf]
        %v2907 = vld [vmem:[#allocation11 + $0x98] sm:$0xf]
        %v2908 = vld [vmem:[#allocation11 + $0x9c] sm:$0xf]
        %v2909 = vld [vmem:[#allocation11 + $0xa0] sm:$0xf]
        %v2910 = vld [vmem:[#allocation11 + $0xa4] sm:$0xf]
        %v2911 = vld [vmem:[#allocation11 + $0xa8] sm:$0xf]
        %v2912 = vld [vmem:[#allocation11 + $0xac] sm:$0xf]
        %v2913 = vld [vmem:[#allocation11 + $0xb0] sm:$0xf]
        %v2914 = vld [vmem:[#allocation11 + $0xb4] sm:$0xf]
        %v2915 = vld [vmem:[#allocation11 + $0xb8] sm:$0xf]
        %v2916 = vld [vmem:[#allocation11 + $0xbc] sm:$0xf]
        %v2917 = vld [vmem:[#allocation2 + $0x8] sm:$0x1]
        %v2918 = vld [vmem:[#allocation2 + $0x14] sm:$0x1]
        %v2919 = vld [vmem:[#allocation2 + $0x20] sm:$0x1]
        %v2920 = vld [vmem:[#allocation2 + $0x2c] sm:$0x1]
        %v2921 = vld [vmem:[#allocation2 + $0x38] sm:$0x1]
        %v2922 = vld [vmem:[#allocation2 + $0x44] sm:$0x1]
        %v2923 = vld [vmem:[#allocation2 + $0x50] sm:$0x1]
        %v2924 = vld [vmem:[#allocation2 + $0x5c] sm:$0x1]
        %v2925 = vld [vmem:[#allocation2 + $0x68] sm:$0x1]
        %v2926 = vld [vmem:[#allocation2 + $0x74] sm:$0x1]
        %v2928 = vshrl.u32 %v2789, 16
        %v2930 = vrot.slane %v2928, 4
        %v2931 = vshll.u32 %v2789, 16
        %v2933 = vrot.slane %v2931, 5
        %v2934 = vor.u32 %v2930, %v2933
        %v2935 = vrot.slane %v2934, 4
        %v2937 = vshll.u32 %v2790, 16
        %v2939 = vrot.slane %v2937, 5
        %v2940 = vsel %vm932, %v2935, %v2939
        %v2941 = vshrl.u32 %v2790, 16
        %v2943 = vrot.slane %v2941, 4
        %v2944 = vor.u32 %v2943, %v2939
        %v2945 = vrot.slane %v2944, 4
        %v2947 = vshll.u32 %v2917, 16
        %v2949 = vrot.slane %v2947, 5
        %v2950 = vsel %vm932, %v2945, %v2949
        %v2952 = vshrl.u32 %v2791, 16
        %v2954 = vrot.slane %v2952, 4
        %v2955 = vshll.u32 %v2791, 16
        %v2957 = vrot.slane %v2955, 5
        %v2958 = vor.u32 %v2954, %v2957
        %v2959 = vrot.slane %v2958, 4
        %v2961 = vshll.u32 %v2792, 16
        %v2963 = vrot.slane %v2961, 5
        %v2964 = vsel %vm932, %v2959, %v2963
        %v2965 = vshrl.u32 %v2792, 16
        %v2967 = vrot.slane %v2965, 4
        %v2968 = vor.u32 %v2967, %v2963
        %v2969 = vrot.slane %v2968, 4
        %v2971 = vshll.u32 %v2918, 16
        %v2973 = vrot.slane %v2971, 5
        %v2974 = vsel %vm932, %v2969, %v2973
        %v2976 = vshrl.u32 %v2793, 16
        %v2978 = vrot.slane %v2976, 4
        %v2979 = vshll.u32 %v2793, 16
        %v2981 = vrot.slane %v2979, 5
        %v2982 = vor.u32 %v2978, %v2981
        %v2983 = vrot.slane %v2982, 4
        %v2985 = vshll.u32 %v2794, 16
        %v2987 = vrot.slane %v2985, 5
        %v2988 = vsel %vm932, %v2983, %v2987
        %v2989 = vshrl.u32 %v2794, 16
        %v2991 = vrot.slane %v2989, 4
        %v2992 = vor.u32 %v2991, %v2987
        %v2993 = vrot.slane %v2992, 4
        %v2995 = vshll.u32 %v2919, 16
        %v2997 = vrot.slane %v2995, 5
        %v2998 = vsel %vm932, %v2993, %v2997
        %v3000 = vshrl.u32 %v2795, 16
        %v3002 = vrot.slane %v3000, 4
        %v3003 = vshll.u32 %v2795, 16
        %v3005 = vrot.slane %v3003, 5
        %v3006 = vor.u32 %v3002, %v3005
        %v3007 = vrot.slane %v3006, 4
        %v3009 = vshll.u32 %v2796, 16
        %v3011 = vrot.slane %v3009, 5
        %v3012 = vsel %vm932, %v3007, %v3011
        %v3013 = vshrl.u32 %v2796, 16
        %v3015 = vrot.slane %v3013, 4
        %v3016 = vor.u32 %v3015, %v3011
        %v3017 = vrot.slane %v3016, 4
        %v3019 = vshll.u32 %v2920, 16
        %v3021 = vrot.slane %v3019, 5
        %v3022 = vsel %vm932, %v3017, %v3021
        %v3024 = vshrl.u32 %v2797, 16
        %v3026 = vrot.slane %v3024, 4
        %v3027 = vshll.u32 %v2797, 16
        %v3029 = vrot.slane %v3027, 5
        %v3030 = vor.u32 %v3026, %v3029
        %v3031 = vrot.slane %v3030, 4
        %v3033 = vshll.u32 %v2798, 16
        %v3035 = vrot.slane %v3033, 5
        %v3036 = vsel %vm932, %v3031, %v3035
        %v3037 = vshrl.u32 %v2798, 16
        %v3039 = vrot.slane %v3037, 4
        %v3040 = vor.u32 %v3039, %v3035
        %v3041 = vrot.slane %v3040, 4
        %v3043 = vshll.u32 %v2921, 16
        %v3045 = vrot.slane %v3043, 5
        %v3046 = vsel %vm932, %v3041, %v3045
        %v3048 = vshrl.u32 %v2799, 16
        %v3050 = vrot.slane %v3048, 4
        %v3051 = vshll.u32 %v2799, 16
        %v3053 = vrot.slane %v3051, 5
        %v3054 = vor.u32 %v3050, %v3053
        %v3055 = vrot.slane %v3054, 4
        %v3057 = vshll.u32 %v2800, 16
        %v3059 = vrot.slane %v3057, 5
        %v3060 = vsel %vm932, %v3055, %v3059
        %v3061 = vshrl.u32 %v2800, 16
        %v3063 = vrot.slane %v3061, 4
        %v3064 = vor.u32 %v3063, %v3059
        %v3065 = vrot.slane %v3064, 4
        %v3067 = vshll.u32 %v2922, 16
        %v3069 = vrot.slane %v3067, 5
        %v3070 = vsel %vm932, %v3065, %v3069
        %v3072 = vshrl.u32 %v2801, 16
        %v3074 = vrot.slane %v3072, 4
        %v3075 = vshll.u32 %v2801, 16
        %v3077 = vrot.slane %v3075, 5
        %v3078 = vor.u32 %v3074, %v3077
        %v3079 = vrot.slane %v3078, 4
        %v3081 = vshll.u32 %v2802, 16
        %v3083 = vrot.slane %v3081, 5
        %v3084 = vsel %vm932, %v3079, %v3083
        %v3085 = vshrl.u32 %v2802, 16
        %v3087 = vrot.slane %v3085, 4
        %v3088 = vor.u32 %v3087, %v3083
        %v3089 = vrot.slane %v3088, 4
        %v3091 = vshll.u32 %v2923, 16
        %v3093 = vrot.slane %v3091, 5
        %v3094 = vsel %vm932, %v3089, %v3093
        %v3096 = vshrl.u32 %v2803, 16
        %v3098 = vrot.slane %v3096, 4
        %v3099 = vshll.u32 %v2803, 16
        %v3101 = vrot.slane %v3099, 5
        %v3102 = vor.u32 %v3098, %v3101
        %v3103 = vrot.slane %v3102, 4
        %v3105 = vshll.u32 %v2804, 16
        %v3107 = vrot.slane %v3105, 5
        %v3108 = vsel %vm932, %v3103, %v3107
        %v3109 = vshrl.u32 %v2804, 16
        %v3111 = vrot.slane %v3109, 4
        %v3112 = vor.u32 %v3111, %v3107
        %v3113 = vrot.slane %v3112, 4
        %v3115 = vshll.u32 %v2924, 16
        %v3117 = vrot.slane %v3115, 5
        %v3118 = vsel %vm932, %v3113, %v3117
        %v3120 = vshrl.u32 %v2805, 16
        %v3122 = vrot.slane %v3120, 4
        %v3123 = vshll.u32 %v2805, 16
        %v3125 = vrot.slane %v3123, 5
        %v3126 = vor.u32 %v3122, %v3125
        %v3127 = vrot.slane %v3126, 4
        %v3129 = vshll.u32 %v2806, 16
        %v3131 = vrot.slane %v3129, 5
        %v3132 = vsel %vm932, %v3127, %v3131
        %v3133 = vshrl.u32 %v2806, 16
        %v3135 = vrot.slane %v3133, 4
        %v3136 = vor.u32 %v3135, %v3131
        %v3137 = vrot.slane %v3136, 4
        %v3139 = vshll.u32 %v2925, 16
        %v3141 = vrot.slane %v3139, 5
        %v3142 = vsel %vm932, %v3137, %v3141
        %v3144 = vshrl.u32 %v2807, 16
        %v3146 = vrot.slane %v3144, 4
        %v3147 = vshll.u32 %v2807, 16
        %v3149 = vrot.slane %v3147, 5
        %v3150 = vor.u32 %v3146, %v3149
        %v3151 = vrot.slane %v3150, 4
        %v3153 = vshll.u32 %v2808, 16
        %v3155 = vrot.slane %v3153, 5
        %v3156 = vsel %vm932, %v3151, %v3155
        %v3157 = vshrl.u32 %v2808, 16
        %v3159 = vrot.slane %v3157, 4
        %v3160 = vor.u32 %v3159, %v3155
        %v3161 = vrot.slane %v3160, 4
        %v3163 = vshll.u32 %v2926, 16
        %v3165 = vrot.slane %v3163, 5
        %v3166 = vsel %vm932, %v3161, %v3165
        %v3167 = vunpack.c.l.b16 %v2940
        %v3168 = vunpack.c.l.b16 %v2950
        %v3169 = vunpack.c.l.b16 %v2964
        %v3170 = vunpack.c.l.b16 %v2974
        %v3171 = vunpack.c.l.b16 %v2988
        %v3172 = vunpack.c.l.b16 %v2998
        %v3173 = vunpack.c.l.b16 %v3012
        %v3174 = vunpack.c.l.b16 %v3022
        %v3175 = vunpack.c.l.b16 %v3036
        %v3176 = vunpack.c.l.b16 %v3046
        %v3177 = vunpack.c.l.b16 %v3060
        %v3178 = vunpack.c.l.b16 %v3070
        %v3179 = vunpack.c.l.b16 %v3084
        %v3180 = vunpack.c.l.b16 %v3094
        %v3181 = vunpack.c.l.b16 %v3108
        %v3182 = vunpack.c.l.b16 %v3118
        %v3183 = vpack.c.b16 %v3168, %v3167
        %v3184 = vpack.c.b16 %v3170, %v3169
        %v3185 = vpack.c.b16 %v3172, %v3171
        %v3186 = vpack.c.b16 %v3174, %v3173
        %v3187 = vpack.c.b16 %v3176, %v3175
        %v3188 = vpack.c.b16 %v3178, %v3177
        %v3189 = vpack.c.b16 %v3180, %v3179
        %v3190 = vpack.c.b16 %v3182, %v3181
        %v3199 = vunpack.c.l.b16 %v3132
        %v3200 = vunpack.c.l.b16 %v3142
        %v3201 = vpack.c.b16 %v3200, %v3199
        %v3203 = vunpack.c.l.b16 %v3156
        %v3204 = vunpack.c.l.b16 %v3166
        %v3205 = vpack.c.b16 %v3204, %v3203
        %s3207 = scalar_lea.vmem [#allocation11], 192
        %v3208 = vld [vmem:[%s3207] sm:$0xf]
        %v3209 = vld [vmem:[%s3207 + $0x4] sm:$0xf]
        %v3210 = vld [vmem:[%s3207 + $0x8] sm:$0xf]
        %v3211 = vld [vmem:[%s3207 + $0xc] sm:$0xf]
        %v3212 = vld [vmem:[%s3207 + $0x10] sm:$0xf]
        %v3213 = vld [vmem:[%s3207 + $0x14] sm:$0xf]
        %v3214 = vld [vmem:[%s3207 + $0x18] sm:$0xf]
        %v3215 = vld [vmem:[%s3207 + $0x1c] sm:$0xf]
        %v3216 = vld [vmem:[%s3207 + $0x20] sm:$0xf]
        %v3217 = vld [vmem:[%s3207 + $0x24] sm:$0xf]
        %v3218 = vld [vmem:[%s3207 + $0x28] sm:$0xf]
        %v3219 = vld [vmem:[%s3207 + $0x2c] sm:$0xf]
        %v3220 = vld [vmem:[%s3207 + $0x30] sm:$0xf]
        %v3221 = vld [vmem:[%s3207 + $0x34] sm:$0xf]
        %v3222 = vld [vmem:[%s3207 + $0x38] sm:$0xf]
        %v3223 = vld [vmem:[%s3207 + $0x3c] sm:$0xf]
        %v3224 = vld [vmem:[%s3207 + $0x40] sm:$0xf]
        %v3225 = vld [vmem:[%s3207 + $0x44] sm:$0xf]
        %v3226 = vld [vmem:[%s3207 + $0x48] sm:$0xf]
        %v3227 = vld [vmem:[%s3207 + $0x4c] sm:$0xf]
        %v3228 = vld [vmem:[%s3207 + $0x50] sm:$0xf]
        %v3229 = vld [vmem:[%s3207 + $0x54] sm:$0xf]
        %v3230 = vld [vmem:[%s3207 + $0x58] sm:$0xf]
        %v3231 = vld [vmem:[%s3207 + $0x5c] sm:$0xf]
        %v3232 = vld [vmem:[%s3207 + $0x60] sm:$0xf]
        %v3233 = vld [vmem:[%s3207 + $0x64] sm:$0xf]
        %v3234 = vld [vmem:[%s3207 + $0x68] sm:$0xf]
        %v3235 = vld [vmem:[%s3207 + $0x6c] sm:$0xf]
        %v3236 = vld [vmem:[%s3207 + $0x70] sm:$0xf]
        %v3237 = vld [vmem:[%s3207 + $0x74] sm:$0xf]
        %v3238 = vld [vmem:[%s3207 + $0x78] sm:$0xf]
        %v3239 = vld [vmem:[%s3207 + $0x7c] sm:$0xf]
        %v3240 = vld [vmem:[%s3207 + $0x80] sm:$0xf]
        %v3241 = vld [vmem:[%s3207 + $0x84] sm:$0xf]
        %v3242 = vld [vmem:[%s3207 + $0x88] sm:$0xf]
        %v3243 = vld [vmem:[%s3207 + $0x8c] sm:$0xf]
        %v3244 = vld [vmem:[%s3207 + $0x90] sm:$0xf]
        %v3245 = vld [vmem:[%s3207 + $0x94] sm:$0xf]
        %v3246 = vld [vmem:[%s3207 + $0x98] sm:$0xf]
        %v3247 = vld [vmem:[%s3207 + $0x9c] sm:$0xf]
        %v3248 = vld [vmem:[%s3207 + $0xa0] sm:$0xf]
        %v3249 = vld [vmem:[%s3207 + $0xa4] sm:$0xf]
        %v3250 = vld [vmem:[%s3207 + $0xa8] sm:$0xf]
        %v3251 = vld [vmem:[%s3207 + $0xac] sm:$0xf]
        %v3252 = vld [vmem:[%s3207 + $0xb0] sm:$0xf]
        %v3253 = vld [vmem:[%s3207 + $0xb4] sm:$0xf]
        %v3254 = vld [vmem:[%s3207 + $0xb8] sm:$0xf]
        %v3255 = vld [vmem:[%s3207 + $0xbc] sm:$0xf]
        %v3304 = vunpack.c.l.b16 %v3208
        %v3305 = vunpack.c.l.b16 %v3209
        %v3306 = vunpack.c.l.b16 %v3210
        %v3307 = vunpack.c.l.b16 %v3211
        %v3308 = vunpack.c.l.b16 %v3212
        %v3309 = vunpack.c.l.b16 %v3213
        %v3310 = vunpack.c.l.b16 %v3214
        %v3311 = vunpack.c.l.b16 %v3215
        %v3312 = vunpack.c.l.b16 %v3216
        %v3313 = vunpack.c.l.b16 %v3217
        %v3314 = vunpack.c.l.b16 %v3218
        %v3315 = vunpack.c.l.b16 %v3219
        %v3316 = vunpack.c.l.b16 %v3220
        %v3317 = vunpack.c.l.b16 %v3221
        %v3318 = vunpack.c.l.b16 %v3222
        %v3319 = vunpack.c.l.b16 %v3223
        %v3320 = vunpack.c.l.b16 %v3224
        %v3321 = vunpack.c.l.b16 %v3225
        %v3322 = vunpack.c.l.b16 %v3226
        %v3323 = vunpack.c.l.b16 %v3227
        %v3324 = vunpack.c.l.b16 %v3228
        %v3325 = vunpack.c.l.b16 %v3229
        %v3326 = vunpack.c.l.b16 %v3230
        %v3327 = vunpack.c.l.b16 %v3231
        %v3328 = vunpack.c.l.b16 %v3232
        %v3329 = vunpack.c.l.b16 %v3233
        %v3330 = vunpack.c.l.b16 %v3234
        %v3331 = vunpack.c.l.b16 %v3235
        %v3332 = vunpack.c.l.b16 %v3236
        %v3333 = vunpack.c.l.b16 %v3237
        %v3334 = vunpack.c.l.b16 %v3238
        %v3335 = vunpack.c.l.b16 %v3239
        %v3336 = vunpack.c.l.b16 %v3240
        %v3337 = vunpack.c.l.b16 %v3241
        %v3338 = vunpack.c.l.b16 %v3242
        %v3339 = vunpack.c.l.b16 %v3243
        %v3340 = vunpack.c.l.b16 %v3244
        %v3341 = vunpack.c.l.b16 %v3245
        %v3342 = vunpack.c.l.b16 %v3246
        %v3343 = vunpack.c.l.b16 %v3247
        %v3344 = vunpack.c.l.b16 %v3248
        %v3345 = vunpack.c.l.b16 %v3249
        %v3346 = vunpack.c.l.b16 %v3250
        %v3347 = vunpack.c.l.b16 %v3251
        %v3348 = vunpack.c.l.b16 %v3252
        %v3349 = vunpack.c.l.b16 %v3253
        %v3350 = vunpack.c.l.b16 %v3254
        %v3351 = vunpack.c.l.b16 %v3255
        %v3352 = vpack.c.b16 %v3305, %v3304
        %v3353 = vpack.c.b16 %v3307, %v3306
        %v3354 = vpack.c.b16 %v3309, %v3308
        %v3355 = vpack.c.b16 %v3311, %v3310
        %v3356 = vpack.c.b16 %v3313, %v3312
        %v3357 = vpack.c.b16 %v3315, %v3314
        %v3358 = vpack.c.b16 %v3317, %v3316
        %v3359 = vpack.c.b16 %v3319, %v3318
        %v3360 = vpack.c.b16 %v3321, %v3320
        %v3361 = vpack.c.b16 %v3323, %v3322
        %v3362 = vpack.c.b16 %v3325, %v3324
        %v3363 = vpack.c.b16 %v3327, %v3326
        %v3364 = vpack.c.b16 %v3329, %v3328
        %v3365 = vpack.c.b16 %v3331, %v3330
        %v3366 = vpack.c.b16 %v3333, %v3332
        %v3367 = vpack.c.b16 %v3335, %v3334
        %v3368 = vpack.c.b16 %v3337, %v3336
        %v3369 = vpack.c.b16 %v3339, %v3338
        %v3370 = vpack.c.b16 %v3341, %v3340
        %v3371 = vpack.c.b16 %v3343, %v3342
        %v3372 = vpack.c.b16 %v3345, %v3344
        %v3373 = vpack.c.b16 %v3347, %v3346
        %v3374 = vpack.c.b16 %v3349, %v3348
        %v3375 = vpack.c.b16 %v3351, %v3350
        %3400 = vmatprep.subr.bf16.mxu0 0
        %3401 = vmatpush1.bf16.msra.mxu0 %v3352
        %3402 = vmatprep.subr.bf16.mxu0 0
        %3403 = vmatpush1.bf16.msra.mxu0 %v3353
        %3404 = vmatprep.subr.bf16.mxu0 0
        %3405 = vmatpush1.bf16.msra.mxu0 %v3354
        %3406 = vmatprep.subr.bf16.mxu0 0
        %3407 = vmatpush1.bf16.msra.mxu0 %v3355
        %3408 = vmatprep.subr.bf16.mxu0 0
        %3409 = vmatpush1.bf16.msra.mxu0 %v3356
        %3410 = vmatprep.subr.bf16.mxu0 0
        %3411 = vmatpush1.bf16.msra.mxu0 %v3357
        %3412 = vmatprep.subr.bf16.mxu0 0
        %3413 = vmatpush1.bf16.msra.mxu0 %v3358
        %3414 = vmatprep.subr.bf16.mxu0 0
        %3415 = vmatpush1.bf16.msra.mxu0 %v3359
        %3416 = vmatprep.subr.bf16.mxu0 0
        %3417 = vmatpush1.bf16.msra.mxu0 %v3360
        %3418 = vmatprep.subr.bf16.mxu0 0
        %3419 = vmatpush1.bf16.msra.mxu0 %v3361
        %3420 = vmatprep.subr.bf16.mxu0 0
        %3421 = vmatpush1.bf16.msra.mxu0 %v3362
        %3422 = vmatprep.subr.bf16.mxu0 0
        %3423 = vmatpush1.bf16.msra.mxu0 %v3363
        %3424 = vmatprep.subr.bf16.mxu0 0
        %3425 = vmatpush1.bf16.msra.mxu0 %v3364
        %3426 = vmatprep.subr.bf16.mxu0 0
        %3427 = vmatpush1.bf16.msra.mxu0 %v3365
        %3428 = vmatprep.subr.bf16.mxu0 0
        %3429 = vmatpush1.bf16.msra.mxu0 %v3366
        %3430 = vmatprep.subr.bf16.mxu0 0
        %3431 = vmatpush1.bf16.msra.mxu0 %v3367
        %3432 = vmatprep.mubr.bf16.mxu0 %v3184
        %3433 = vmatmul.mubr.bf16.gmra.mrb[0].mxu0 %v3183
        %v3434 = vpop.f32.mrb[0].mxu0
        %v3435 = vadd.f32 0.0, %v3434
        %v3436 = vpop.f32.mrb[0].mxu0
        %v3437 = vpop.f32.mrb[0].mxu0
        %v3438 = vadd.f32 0.0, %v3437
        %v3439 = vpop.f32.mrb[0].mxu0
        %3440 = vmatprep.mubr.bf16.mxu0 %v3185
        %3441 = vmatmul.mubr.bf16.gmra.mrb[0].mxu0 %v3184
        %v3442 = vpop.f32.mrb[0].mxu0
        %v3443 = vadd.f32 0.0, %v3442
        %v3444 = vpop.f32.mrb[0].mxu0
        %v3445 = vpop.f32.mrb[0].mxu0
        %v3446 = vadd.f32 0.0, %v3445
        %v3447 = vpop.f32.mrb[0].mxu0
        %3448 = vmatprep.mubr.bf16.mxu0 %v3186
        %3449 = vmatmul.mubr.bf16.gmra.mrb[0].mxu0 %v3185
        %v3450 = vpop.f32.mrb[0].mxu0
        %v3451 = vadd.f32 0.0, %v3450
        %v3452 = vpop.f32.mrb[0].mxu0
        %v3453 = vpop.f32.mrb[0].mxu0
        %v3454 = vadd.f32 0.0, %v3453
        %v3455 = vpop.f32.mrb[0].mxu0
        %3456 = vmatprep.mubr.bf16.mxu0 %v3187
        %3457 = vmatmul.mubr.bf16.gmra.mrb[0].mxu0 %v3186
        %v3458 = vpop.f32.mrb[0].mxu0
        %v3459 = vadd.f32 0.0, %v3458
        %v3460 = vpop.f32.mrb[0].mxu0
        %v3461 = vpop.f32.mrb[0].mxu0
        %v3462 = vadd.f32 0.0, %v3461
        %v3463 = vpop.f32.mrb[0].mxu0
        %3464 = vmatprep.mubr.bf16.mxu0 %v3188
        %3465 = vmatmul.mubr.bf16.gmra.mrb[0].mxu0 %v3187
        %v3466 = vpop.f32.mrb[0].mxu0
        %v3467 = vadd.f32 0.0, %v3466
        %v3468 = vpop.f32.mrb[0].mxu0
        %v3469 = vpop.f32.mrb[0].mxu0
        %v3470 = vadd.f32 0.0, %v3469
        %v3471 = vpop.f32.mrb[0].mxu0
        %3472 = vmatprep.mubr.bf16.mxu0 %v3189
        %3473 = vmatmul.mubr.bf16.gmra.mrb[0].mxu0 %v3188
        %v3474 = vpop.f32.mrb[0].mxu0
        %v3475 = vadd.f32 0.0, %v3474
        %v3476 = vpop.f32.mrb[0].mxu0
        %v3477 = vpop.f32.mrb[0].mxu0
        %v3478 = vadd.f32 0.0, %v3477
        %v3479 = vpop.f32.mrb[0].mxu0
        %3480 = vmatprep.mubr.bf16.mxu0 %v3190
        %3481 = vmatmul.mubr.bf16.gmra.mrb[0].mxu0 %v3189
        %v3482 = vpop.f32.mrb[0].mxu0
        %v3483 = vadd.f32 0.0, %v3482
        %v3484 = vpop.f32.mrb[0].mxu0
        %v3485 = vpop.f32.mrb[0].mxu0
        %v3486 = vadd.f32 0.0, %v3485
        %v3487 = vpop.f32.mrb[0].mxu0
        %3488 = vmatprep.mubr.bf16.mxu0 %v3201
        %3489 = vmatmul.mubr.bf16.gmra.mrb[0].mxu0 %v3190
        %v3490 = vpop.f32.mrb[0].mxu0
        %v3491 = vadd.f32 0.0, %v3490
        %v3492 = vpop.f32.mrb[0].mxu0
        %v3493 = vpop.f32.mrb[0].mxu0
        %v3494 = vadd.f32 0.0, %v3493
        %v3495 = vpop.f32.mrb[0].mxu0
        %3496 = vdwg.mxu0
        %3497 = vmatprep.subr.bf16.mxu0 0
        %3498 = vmatpush1.bf16.msra.mxu0 %v3368
        %3499 = vmatprep.subr.bf16.mxu0 0
        %3500 = vmatpush1.bf16.msra.mxu0 %v3369
        %3501 = vmatprep.subr.bf16.mxu0 0
        %3502 = vmatpush1.bf16.msra.mxu0 %v3370
        %3503 = vmatprep.subr.bf16.mxu0 0
        %3504 = vmatpush1.bf16.msra.mxu0 %v3371
        %3505 = vmatprep.subr.bf16.mxu0 0
        %3506 = vmatpush1.bf16.msra.mxu0 %v3372
        %3507 = vmatprep.subr.bf16.mxu0 0
        %3508 = vmatpush1.bf16.msra.mxu0 %v3373
        %3509 = vmatprep.subr.bf16.mxu0 0
        %3510 = vmatpush1.bf16.msra.mxu0 %v3374
        %3511 = vmatprep.subr.bf16.mxu0 0
        %3512 = vmatpush1.bf16.msra.mxu0 %v3375
        %3513 = vmatprep.subr.bf16.mxu0 0
        %3514 = vmatpush1.bf16.msra.mxu0 0
        %3515 = vmatprep.subr.bf16.mxu0 0
        %3516 = vmatpush1.bf16.msra.mxu0 0
        %3517 = vmatprep.subr.bf16.mxu0 0
        %3518 = vmatpush1.bf16.msra.mxu0 0
        %3519 = vmatprep.subr.bf16.mxu0 0
        %3520 = vmatpush1.bf16.msra.mxu0 0
        %3521 = vmatprep.subr.bf16.mxu0 0
        %3522 = vmatpush1.bf16.msra.mxu0 0
        %3523 = vmatprep.subr.bf16.mxu0 0
        %3524 = vmatpush1.bf16.msra.mxu0 0
        %3525 = vmatprep.subr.bf16.mxu0 0
        %3526 = vmatpush1.bf16.msra.mxu0 0
        %3527 = vmatprep.subr.bf16.mxu0 0
        %3528 = vmatpush1.bf16.msra.mxu0 0
        %3529 = vmatprep.mubr.bf16.mxu0 0
        %3530 = vmatmul.mubr.bf16.gmra.mrb[0].mxu0 %v3185
        %v3531 = vpop.f32.mrb[0].mxu0
        %v3532 = vadd.f32 %v3435, %v3531
        %v3533 = vpop.f32.mrb[0].mxu0
        %v3534 = vpop.f32.mrb[0].mxu0
        %v3535 = vadd.f32 %v3438, %v3534
        %v3536 = vpop.f32.mrb[0].mxu0
        %3537 = vmatprep.mubr.bf16.mxu0 0
        %3538 = vmatmul.mubr.bf16.gmra.mrb[0].mxu0 %v3186
        %v3539 = vpop.f32.mrb[0].mxu0
        %v3540 = vadd.f32 %v3443, %v3539
        %v3541 = vpop.f32.mrb[0].mxu0
        %v3542 = vpop.f32.mrb[0].mxu0
        %v3543 = vadd.f32 %v3446, %v3542
        %v3544 = vpop.f32.mrb[0].mxu0
        %3545 = vmatprep.mubr.bf16.mxu0 0
        %3546 = vmatmul.mubr.bf16.gmra.mrb[0].mxu0 %v3187
        %v3547 = vpop.f32.mrb[0].mxu0
        %v3548 = vadd.f32 %v3451, %v3547
        %v3549 = vpop.f32.mrb[0].mxu0
        %v3550 = vpop.f32.mrb[0].mxu0
        %v3551 = vadd.f32 %v3454, %v3550
        %v3552 = vpop.f32.mrb[0].mxu0
        %3553 = vmatprep.mubr.bf16.mxu0 0
        %3554 = vmatmul.mubr.bf16.gmra.mrb[0].mxu0 %v3188
        %v3555 = vpop.f32.mrb[0].mxu0
        %v3556 = vadd.f32 %v3459, %v3555
        %v3557 = vpop.f32.mrb[0].mxu0
        %v3558 = vpop.f32.mrb[0].mxu0
        %v3559 = vadd.f32 %v3462, %v3558
        %v3560 = vpop.f32.mrb[0].mxu0
        %3561 = vmatprep.mubr.bf16.mxu0 0
        %3562 = vmatmul.mubr.bf16.gmra.mrb[0].mxu0 %v3189
        %v3563 = vpop.f32.mrb[0].mxu0
        %v3564 = vadd.f32 %v3467, %v3563
        %v3565 = vpop.f32.mrb[0].mxu0
        %v3566 = vpop.f32.mrb[0].mxu0
        %v3567 = vadd.f32 %v3470, %v3566
        %v3568 = vpop.f32.mrb[0].mxu0
        %3569 = vmatprep.mubr.bf16.mxu0 0
        %3570 = vmatmul.mubr.bf16.gmra.mrb[0].mxu0 %v3190
        %v3571 = vpop.f32.mrb[0].mxu0
        %v3572 = vadd.f32 %v3475, %v3571
        %v3573 = vpop.f32.mrb[0].mxu0
        %v3574 = vpop.f32.mrb[0].mxu0
        %v3575 = vadd.f32 %v3478, %v3574
        %v3576 = vpop.f32.mrb[0].mxu0
        %3577 = vmatprep.mubr.bf16.mxu0 0
        %3578 = vmatmul.mubr.bf16.gmra.mrb[0].mxu0 %v3201
        %v3579 = vpop.f32.mrb[0].mxu0
        %v3580 = vadd.f32 %v3483, %v3579
        %v3581 = vpop.f32.mrb[0].mxu0
        %v3582 = vpop.f32.mrb[0].mxu0
        %v3583 = vadd.f32 %v3486, %v3582
        %v3584 = vpop.f32.mrb[0].mxu0
        %3585 = vmatprep.mubr.bf16.mxu0 0
        %3586 = vmatmul.mubr.bf16.gmra.mrb[0].mxu0 %v3205
        %v3587 = vpop.f32.mrb[0].mxu0
        %v3588 = vadd.f32 %v3491, %v3587
        %v3589 = vpop.f32.mrb[0].mxu0
        %v3590 = vpop.f32.mrb[0].mxu0
        %v3591 = vadd.f32 %v3494, %v3590
        %v3592 = vpop.f32.mrb[0].mxu0
        %3593 = vdwg.mxu0
        %v3642 = vunpack.c.l.b16 %v2869
        %v3643 = vunpack.c.l.b16 %v2870
        %v3644 = vunpack.c.l.b16 %v2871
        %v3645 = vunpack.c.l.b16 %v2872
        %v3646 = vunpack.c.l.b16 %v2873
        %v3647 = vunpack.c.l.b16 %v2874
        %v3648 = vunpack.c.l.b16 %v2875
        %v3649 = vunpack.c.l.b16 %v2876
        %v3650 = vunpack.c.l.b16 %v2877
        %v3651 = vunpack.c.l.b16 %v2878
        %v3652 = vunpack.c.l.b16 %v2879
        %v3653 = vunpack.c.l.b16 %v2880
        %v3654 = vunpack.c.l.b16 %v2881
        %v3655 = vunpack.c.l.b16 %v2882
        %v3656 = vunpack.c.l.b16 %v2883
        %v3657 = vunpack.c.l.b16 %v2884
        %v3658 = vunpack.c.l.b16 %v2885
        %v3659 = vunpack.c.l.b16 %v2886
        %v3660 = vunpack.c.l.b16 %v2887
        %v3661 = vunpack.c.l.b16 %v2888
        %v3662 = vunpack.c.l.b16 %v2889
        %v3663 = vunpack.c.l.b16 %v2890
        %v3664 = vunpack.c.l.b16 %v2891
        %v3665 = vunpack.c.l.b16 %v2892
        %v3666 = vunpack.c.l.b16 %v2893
        %v3667 = vunpack.c.l.b16 %v2894
        %v3668 = vunpack.c.l.b16 %v2895
        %v3669 = vunpack.c.l.b16 %v2896
        %v3670 = vunpack.c.l.b16 %v2897
        %v3671 = vunpack.c.l.b16 %v2898
        %v3672 = vunpack.c.l.b16 %v2899
        %v3673 = vunpack.c.l.b16 %v2900
        %v3674 = vunpack.c.l.b16 %v2901
        %v3675 = vunpack.c.l.b16 %v2902
        %v3676 = vunpack.c.l.b16 %v2903
        %v3677 = vunpack.c.l.b16 %v2904
        %v3678 = vunpack.c.l.b16 %v2905
        %v3679 = vunpack.c.l.b16 %v2906
        %v3680 = vunpack.c.l.b16 %v2907
        %v3681 = vunpack.c.l.b16 %v2908
        %v3682 = vunpack.c.l.b16 %v2909
        %v3683 = vunpack.c.l.b16 %v2910
        %v3684 = vunpack.c.l.b16 %v2911
        %v3685 = vunpack.c.l.b16 %v2912
        %v3686 = vunpack.c.l.b16 %v2913
        %v3687 = vunpack.c.l.b16 %v2914
        %v3688 = vunpack.c.l.b16 %v2915
        %v3689 = vunpack.c.l.b16 %v2916
        %v3690 = vpack.c.b16 %v3643, %v3642
        %v3691 = vpack.c.b16 %v3645, %v3644
        %v3692 = vpack.c.b16 %v3647, %v3646
        %v3693 = vpack.c.b16 %v3649, %v3648
        %v3694 = vpack.c.b16 %v3651, %v3650
        %v3695 = vpack.c.b16 %v3653, %v3652
        %v3696 = vpack.c.b16 %v3655, %v3654
        %v3697 = vpack.c.b16 %v3657, %v3656
        %v3698 = vpack.c.b16 %v3659, %v3658
        %v3699 = vpack.c.b16 %v3661, %v3660
        %v3700 = vpack.c.b16 %v3663, %v3662
        %v3701 = vpack.c.b16 %v3665, %v3664
        %v3702 = vpack.c.b16 %v3667, %v3666
        %v3703 = vpack.c.b16 %v3669, %v3668
        %v3704 = vpack.c.b16 %v3671, %v3670
        %v3705 = vpack.c.b16 %v3673, %v3672
        %v3706 = vpack.c.b16 %v3675, %v3674
        %v3707 = vpack.c.b16 %v3677, %v3676
        %v3708 = vpack.c.b16 %v3679, %v3678
        %v3709 = vpack.c.b16 %v3681, %v3680
        %v3710 = vpack.c.b16 %v3683, %v3682
        %v3711 = vpack.c.b16 %v3685, %v3684
        %v3712 = vpack.c.b16 %v3687, %v3686
        %v3713 = vpack.c.b16 %v3689, %v3688
        %3738 = vmatprep.subr.bf16.mxu0 0
        %3739 = vmatpush1.bf16.msra.mxu0 %v3690
        %3740 = vmatprep.subr.bf16.mxu0 0
        %3741 = vmatpush1.bf16.msra.mxu0 %v3691
        %3742 = vmatprep.subr.bf16.mxu0 0
        %3743 = vmatpush1.bf16.msra.mxu0 %v3692
        %3744 = vmatprep.subr.bf16.mxu0 0
        %3745 = vmatpush1.bf16.msra.mxu0 %v3693
        %3746 = vmatprep.subr.bf16.mxu0 0
        %3747 = vmatpush1.bf16.msra.mxu0 %v3694
        %3748 = vmatprep.subr.bf16.mxu0 0
        %3749 = vmatpush1.bf16.msra.mxu0 %v3695
        %3750 = vmatprep.subr.bf16.mxu0 0
        %3751 = vmatpush1.bf16.msra.mxu0 %v3696
        %3752 = vmatprep.subr.bf16.mxu0 0
        %3753 = vmatpush1.bf16.msra.mxu0 %v3697
        %3754 = vmatprep.subr.bf16.mxu0 0
        %3755 = vmatpush1.bf16.msra.mxu0 %v3698
        %3756 = vmatprep.subr.bf16.mxu0 0
        %3757 = vmatpush1.bf16.msra.mxu0 %v3699
        %3758 = vmatprep.subr.bf16.mxu0 0
        %3759 = vmatpush1.bf16.msra.mxu0 %v3700
        %3760 = vmatprep.subr.bf16.mxu0 0
        %3761 = vmatpush1.bf16.msra.mxu0 %v3701
        %3762 = vmatprep.subr.bf16.mxu0 0
        %3763 = vmatpush1.bf16.msra.mxu0 %v3702
        %3764 = vmatprep.subr.bf16.mxu0 0
        %3765 = vmatpush1.bf16.msra.mxu0 %v3703
        %3766 = vmatprep.subr.bf16.mxu0 0
        %3767 = vmatpush1.bf16.msra.mxu0 %v3704
        %3768 = vmatprep.subr.bf16.mxu0 0
        %3769 = vmatpush1.bf16.msra.mxu0 %v3705
        %3770 = vmatprep.mubr.bf16.mxu0 %v2842
        %3771 = vmatmul.mubr.bf16.gmra.mrb[0].mxu0 %v2841
        %v3772 = vpop.f32.mrb[0].mxu0
        %v3773 = vadd.f32 %v3532, %v3772
        %v3774 = vpop.f32.mrb[0].mxu0
        %v3775 = vpop.f32.mrb[0].mxu0
        %v3776 = vadd.f32 %v3535, %v3775
        %v3777 = vpop.f32.mrb[0].mxu0
        %3778 = vmatprep.mubr.bf16.mxu0 %v2843
        %3779 = vmatmul.mubr.bf16.gmra.mrb[0].mxu0 %v2842
        %v3780 = vpop.f32.mrb[0].mxu0
        %v3781 = vadd.f32 %v3540, %v3780
        %v3782 = vpop.f32.mrb[0].mxu0
        %v3783 = vpop.f32.mrb[0].mxu0
        %v3784 = vadd.f32 %v3543, %v3783
        %v3785 = vpop.f32.mrb[0].mxu0
        %3786 = vmatprep.mubr.bf16.mxu0 %v2844
        %3787 = vmatmul.mubr.bf16.gmra.mrb[0].mxu0 %v2843
        %v3788 = vpop.f32.mrb[0].mxu0
        %v3789 = vadd.f32 %v3548, %v3788
        %v3790 = vpop.f32.mrb[0].mxu0
        %v3791 = vpop.f32.mrb[0].mxu0
        %v3792 = vadd.f32 %v3551, %v3791
        %v3793 = vpop.f32.mrb[0].mxu0
        %3794 = vmatprep.mubr.bf16.mxu0 %v2845
        %3795 = vmatmul.mubr.bf16.gmra.mrb[0].mxu0 %v2844
        %v3796 = vpop.f32.mrb[0].mxu0
        %v3797 = vadd.f32 %v3556, %v3796
        %v3798 = vpop.f32.mrb[0].mxu0
        %v3799 = vpop.f32.mrb[0].mxu0
        %v3800 = vadd.f32 %v3559, %v3799
        %v3801 = vpop.f32.mrb[0].mxu0
        %3802 = vmatprep.mubr.bf16.mxu0 %v2846
        %3803 = vmatmul.mubr.bf16.gmra.mrb[0].mxu0 %v2845
        %v3804 = vpop.f32.mrb[0].mxu0
        %v3805 = vadd.f32 %v3564, %v3804
        %v3806 = vpop.f32.mrb[0].mxu0
        %v3807 = vpop.f32.mrb[0].mxu0
        %v3808 = vadd.f32 %v3567, %v3807
        %v3809 = vpop.f32.mrb[0].mxu0
        %3810 = vmatprep.mubr.bf16.mxu0 %v2847
        %3811 = vmatmul.mubr.bf16.gmra.mrb[0].mxu0 %v2846
        %v3812 = vpop.f32.mrb[0].mxu0
        %v3813 = vadd.f32 %v3572, %v3812
        %v3814 = vpop.f32.mrb[0].mxu0
        %v3815 = vpop.f32.mrb[0].mxu0
        %v3816 = vadd.f32 %v3575, %v3815
        %v3817 = vpop.f32.mrb[0].mxu0
        %3818 = vmatprep.mubr.bf16.mxu0 %v2848
        %3819 = vmatmul.mubr.bf16.gmra.mrb[0].mxu0 %v2847
        %v3820 = vpop.f32.mrb[0].mxu0
        %v3821 = vadd.f32 %v3580, %v3820
        %v3822 = vpop.f32.mrb[0].mxu0
        %v3823 = vpop.f32.mrb[0].mxu0
        %v3824 = vadd.f32 %v3583, %v3823
        %v3825 = vpop.f32.mrb[0].mxu0
        %3826 = vmatprep.mubr.bf16.mxu0 %v2861
        %3827 = vmatmul.mubr.bf16.gmra.mrb[0].mxu0 %v2848
        %v3828 = vpop.f32.mrb[0].mxu0
        %v3829 = vadd.f32 %v3588, %v3828
        %v3830 = vpop.f32.mrb[0].mxu0
        %v3831 = vpop.f32.mrb[0].mxu0
        %v3832 = vadd.f32 %v3591, %v3831
        %v3833 = vpop.f32.mrb[0].mxu0
        %3834 = vdwg.mxu0
        %3835 = vmatprep.subr.bf16.mxu0 0
        %3836 = vmatpush1.bf16.msra.mxu0 %v3706
        %3837 = vmatprep.subr.bf16.mxu0 0
        %3838 = vmatpush1.bf16.msra.mxu0 %v3707
        %3839 = vmatprep.subr.bf16.mxu0 0
        %3840 = vmatpush1.bf16.msra.mxu0 %v3708
        %3841 = vmatprep.subr.bf16.mxu0 0
        %3842 = vmatpush1.bf16.msra.mxu0 %v3709
        %3843 = vmatprep.subr.bf16.mxu0 0
        %3844 = vmatpush1.bf16.msra.mxu0 %v3710
        %3845 = vmatprep.subr.bf16.mxu0 0
        %3846 = vmatpush1.bf16.msra.mxu0 %v3711
        %3847 = vmatprep.subr.bf16.mxu0 0
        %3848 = vmatpush1.bf16.msra.mxu0 %v3712
        %3849 = vmatprep.subr.bf16.mxu0 0
        %3850 = vmatpush1.bf16.msra.mxu0 %v3713
        %3851 = vmatprep.subr.bf16.mxu0 0
        %3852 = vmatpush1.bf16.msra.mxu0 0
        %3853 = vmatprep.subr.bf16.mxu0 0
        %3854 = vmatpush1.bf16.msra.mxu0 0
        %3855 = vmatprep.subr.bf16.mxu0 0
        %3856 = vmatpush1.bf16.msra.mxu0 0
        %3857 = vmatprep.subr.bf16.mxu0 0
        %3858 = vmatpush1.bf16.msra.mxu0 0
        %3859 = vmatprep.subr.bf16.mxu0 0
        %3860 = vmatpush1.bf16.msra.mxu0 0
        %3861 = vmatprep.subr.bf16.mxu0 0
        %3862 = vmatpush1.bf16.msra.mxu0 0
        %3863 = vmatprep.subr.bf16.mxu0 0
        %3864 = vmatpush1.bf16.msra.mxu0 0
        %3865 = vmatprep.subr.bf16.mxu0 0
        %3866 = vmatpush1.bf16.msra.mxu0 0
        %3867 = vmatprep.mubr.bf16.mxu0 0
        %3868 = vmatmul.mubr.bf16.gmra.mrb[0].mxu0 %v2843
        %v3869 = vpop.f32.mrb[0].mxu0
        %v3870 = vadd.f32 %v3773, %v3869
        %v3871 = vpop.f32.mrb[0].mxu0
        %v3872 = vpop.f32.mrb[0].mxu0
        %v3873 = vadd.f32 %v3776, %v3872
        %v3874 = vpop.f32.mrb[0].mxu0
        %3875 = vmatprep.mubr.bf16.mxu0 0
        %3876 = vmatmul.mubr.bf16.gmra.mrb[0].mxu0 %v2844
        %v3877 = vpop.f32.mrb[0].mxu0
        %v3878 = vadd.f32 %v3781, %v3877
        %v3879 = vpop.f32.mrb[0].mxu0
        %v3880 = vpop.f32.mrb[0].mxu0
        %v3881 = vadd.f32 %v3784, %v3880
        %v3882 = vpop.f32.mrb[0].mxu0
        %3883 = vmatprep.mubr.bf16.mxu0 0
        %3884 = vmatmul.mubr.bf16.gmra.mrb[0].mxu0 %v2845
        %v3885 = vpop.f32.mrb[0].mxu0
        %v3886 = vadd.f32 %v3789, %v3885
        %v3887 = vpop.f32.mrb[0].mxu0
        %v3888 = vpop.f32.mrb[0].mxu0
        %v3889 = vadd.f32 %v3792, %v3888
        %v3890 = vpop.f32.mrb[0].mxu0
        %3891 = vmatprep.mubr.bf16.mxu0 0
        %3892 = vmatmul.mubr.bf16.gmra.mrb[0].mxu0 %v2846
        %v3893 = vpop.f32.mrb[0].mxu0
        %v3894 = vadd.f32 %v3797, %v3893
        %v3895 = vpop.f32.mrb[0].mxu0
        %v3896 = vpop.f32.mrb[0].mxu0
        %v3897 = vadd.f32 %v3800, %v3896
        %v3898 = vpop.f32.mrb[0].mxu0
        %3899 = vmatprep.mubr.bf16.mxu0 0
        %3900 = vmatmul.mubr.bf16.gmra.mrb[0].mxu0 %v2847
        %v3901 = vpop.f32.mrb[0].mxu0
        %v3902 = vadd.f32 %v3805, %v3901
        %v3903 = vpop.f32.mrb[0].mxu0
        %v3904 = vpop.f32.mrb[0].mxu0
        %v3905 = vadd.f32 %v3808, %v3904
        %v3906 = vpop.f32.mrb[0].mxu0
        %3907 = vmatprep.mubr.bf16.mxu0 0
        %3908 = vmatmul.mubr.bf16.gmra.mrb[0].mxu0 %v2848
        %v3909 = vpop.f32.mrb[0].mxu0
        %v3910 = vadd.f32 %v3813, %v3909
        %v3911 = vpop.f32.mrb[0].mxu0
        %v3912 = vpop.f32.mrb[0].mxu0
        %v3913 = vadd.f32 %v3816, %v3912
        %v3914 = vpop.f32.mrb[0].mxu0
        %3915 = vmatprep.mubr.bf16.mxu0 0
        %3916 = vmatmul.mubr.bf16.gmra.mrb[0].mxu0 %v2861
        %v3917 = vpop.f32.mrb[0].mxu0
        %v3918 = vadd.f32 %v3821, %v3917
        %v3919 = vpop.f32.mrb[0].mxu0
        %v3920 = vpop.f32.mrb[0].mxu0
        %v3921 = vadd.f32 %v3824, %v3920
        %v3922 = vpop.f32.mrb[0].mxu0
        %3923 = vmatprep.mubr.bf16.mxu0 0
        %3924 = vmatmul.mubr.bf16.gmra.mrb[0].mxu0 %v2867
        %v3925 = vpop.f32.mrb[0].mxu0
        %v3926 = vadd.f32 %v3829, %v3925
        %v3927 = vpop.f32.mrb[0].mxu0
        %v3928 = vpop.f32.mrb[0].mxu0
        %v3929 = vadd.f32 %v3832, %v3928
        %v3930 = vpop.f32.mrb[0].mxu0
        %3931 = vdwg.mxu0
        %v3932 = vld [vmem:[#allocation2] sm:$0xe]
        %v3933 = vld [vmem:[#allocation2 + $0xc] sm:$0xe]
        %v3934 = vld [vmem:[#allocation2 + $0x18] sm:$0xe]
        %v3935 = vld [vmem:[#allocation2 + $0x24] sm:$0xe]
        %v3936 = vld [vmem:[#allocation2 + $0x30] sm:$0xe]
        %v3937 = vld [vmem:[#allocation2 + $0x3c] sm:$0xe]
        %v3938 = vld [vmem:[#allocation2 + $0x48] sm:$0xe]
        %v3939 = vld [vmem:[#allocation2 + $0x54] sm:$0xe]
        %v3940 = vld [vmem:[#allocation2 + $0x60] sm:$0xe]
        %v3941 = vld [vmem:[#allocation2 + $0x6c] sm:$0xe]
        %v3962 = vrot.slane %v3932, 5
        %v3963 = vrot.slane %v3962, 4
        %v3964 = vrot.slane %v2790, 5
        %v3965 = vsel %vm1757, %v3963, %v3964
        %v3966 = vrot.slane %v3964, 4
        %v3967 = vrot.slane %v2917, 5
        %v3968 = vsel %vm1757, %v3966, %v3967
        %v3969 = vrot.slane %v3933, 5
        %v3970 = vrot.slane %v3969, 4
        %v3971 = vrot.slane %v2792, 5
        %v3972 = vsel %vm1757, %v3970, %v3971
        %v3973 = vrot.slane %v3971, 4
        %v3974 = vrot.slane %v2918, 5
        %v3975 = vsel %vm1757, %v3973, %v3974
        %v3976 = vrot.slane %v3934, 5
        %v3977 = vrot.slane %v3976, 4
        %v3978 = vrot.slane %v2794, 5
        %v3979 = vsel %vm1757, %v3977, %v3978
        %v3980 = vrot.slane %v3978, 4
        %v3981 = vrot.slane %v2919, 5
        %v3982 = vsel %vm1757, %v3980, %v3981
        %v3983 = vrot.slane %v3935, 5
        %v3984 = vrot.slane %v3983, 4
        %v3985 = vrot.slane %v2796, 5
        %v3986 = vsel %vm1757, %v3984, %v3985
        %v3987 = vrot.slane %v3985, 4
        %v3988 = vrot.slane %v2920, 5
        %v3989 = vsel %vm1757, %v3987, %v3988
        %v3990 = vrot.slane %v3936, 5
        %v3991 = vrot.slane %v3990, 4
        %v3992 = vrot.slane %v2798, 5
        %v3993 = vsel %vm1757, %v3991, %v3992
        %v3994 = vrot.slane %v3992, 4
        %v3995 = vrot.slane %v2921, 5
        %v3996 = vsel %vm1757, %v3994, %v3995
        %v3997 = vrot.slane %v3937, 5
        %v3998 = vrot.slane %v3997, 4
        %v3999 = vrot.slane %v2800, 5
        %v4000 = vsel %vm1757, %v3998, %v3999
        %v4001 = vrot.slane %v3999, 4
        %v4002 = vrot.slane %v2922, 5
        %v4003 = vsel %vm1757, %v4001, %v4002
        %v4004 = vrot.slane %v3938, 5
        %v4005 = vrot.slane %v4004, 4
        %v4006 = vrot.slane %v2802, 5
        %v4007 = vsel %vm1757, %v4005, %v4006
        %v4008 = vrot.slane %v4006, 4
        %v4009 = vrot.slane %v2923, 5
        %v4010 = vsel %vm1757, %v4008, %v4009
        %v4011 = vrot.slane %v3939, 5
        %v4012 = vrot.slane %v4011, 4
        %v4013 = vrot.slane %v2804, 5
        %v4014 = vsel %vm1757, %v4012, %v4013
        %v4015 = vrot.slane %v4013, 4
        %v4016 = vrot.slane %v2924, 5
        %v4017 = vsel %vm1757, %v4015, %v4016
        %v4018 = vrot.slane %v3940, 5
        %v4019 = vrot.slane %v4018, 4
        %v4020 = vrot.slane %v2806, 5
        %v4021 = vsel %vm1757, %v4019, %v4020
        %v4022 = vrot.slane %v4020, 4
        %v4023 = vrot.slane %v2925, 5
        %v4024 = vsel %vm1757, %v4022, %v4023
        %v4025 = vrot.slane %v3941, 5
        %v4026 = vrot.slane %v4025, 4
        %v4027 = vrot.slane %v2808, 5
        %v4028 = vsel %vm1757, %v4026, %v4027
        %v4029 = vrot.slane %v4027, 4
        %v4030 = vrot.slane %v2926, 5
        %v4031 = vsel %vm1757, %v4029, %v4030
        %v4032 = vunpack.c.l.b16 %v3965
        %v4033 = vunpack.c.l.b16 %v3968
        %v4034 = vunpack.c.l.b16 %v3972
        %v4035 = vunpack.c.l.b16 %v3975
        %v4036 = vunpack.c.l.b16 %v3979
        %v4037 = vunpack.c.l.b16 %v3982
        %v4038 = vunpack.c.l.b16 %v3986
        %v4039 = vunpack.c.l.b16 %v3989
        %v4040 = vunpack.c.l.b16 %v3993
        %v4041 = vunpack.c.l.b16 %v3996
        %v4042 = vunpack.c.l.b16 %v4000
        %v4043 = vunpack.c.l.b16 %v4003
        %v4044 = vunpack.c.l.b16 %v4007
        %v4045 = vunpack.c.l.b16 %v4010
        %v4046 = vunpack.c.l.b16 %v4014
        %v4047 = vunpack.c.l.b16 %v4017
        %v4048 = vpack.c.b16 %v4033, %v4032
        %v4049 = vpack.c.b16 %v4035, %v4034
        %v4050 = vpack.c.b16 %v4037, %v4036
        %v4051 = vpack.c.b16 %v4039, %v4038
        %v4052 = vpack.c.b16 %v4041, %v4040
        %v4053 = vpack.c.b16 %v4043, %v4042
        %v4054 = vpack.c.b16 %v4045, %v4044
        %v4055 = vpack.c.b16 %v4047, %v4046
        %v4064 = vunpack.c.l.b16 %v4021
        %v4065 = vunpack.c.l.b16 %v4024
        %v4066 = vpack.c.b16 %v4065, %v4064
        %v4068 = vunpack.c.l.b16 %v4028
        %v4069 = vunpack.c.l.b16 %v4031
        %v4070 = vpack.c.b16 %v4069, %v4068
        %s4072 = scalar_lea.vmem [#allocation11], 384
        %v4073 = vld [vmem:[%s4072] sm:$0xf]
        %v4074 = vld [vmem:[%s4072 + $0x4] sm:$0xf]
        %v4075 = vld [vmem:[%s4072 + $0x8] sm:$0xf]
        %v4076 = vld [vmem:[%s4072 + $0xc] sm:$0xf]
        %v4077 = vld [vmem:[%s4072 + $0x10] sm:$0xf]
        %v4078 = vld [vmem:[%s4072 + $0x14] sm:$0xf]
        %v4079 = vld [vmem:[%s4072 + $0x18] sm:$0xf]
        %v4080 = vld [vmem:[%s4072 + $0x1c] sm:$0xf]
        %v4081 = vld [vmem:[%s4072 + $0x20] sm:$0xf]
        %v4082 = vld [vmem:[%s4072 + $0x24] sm:$0xf]
        %v4083 = vld [vmem:[%s4072 + $0x28] sm:$0xf]
        %v4084 = vld [vmem:[%s4072 + $0x2c] sm:$0xf]
        %v4085 = vld [vmem:[%s4072 + $0x30] sm:$0xf]
        %v4086 = vld [vmem:[%s4072 + $0x34] sm:$0xf]
        %v4087 = vld [vmem:[%s4072 + $0x38] sm:$0xf]
        %v4088 = vld [vmem:[%s4072 + $0x3c] sm:$0xf]
        %v4089 = vld [vmem:[%s4072 + $0x40] sm:$0xf]
        %v4090 = vld [vmem:[%s4072 + $0x44] sm:$0xf]
        %v4091 = vld [vmem:[%s4072 + $0x48] sm:$0xf]
        %v4092 = vld [vmem:[%s4072 + $0x4c] sm:$0xf]
        %v4093 = vld [vmem:[%s4072 + $0x50] sm:$0xf]
        %v4094 = vld [vmem:[%s4072 + $0x54] sm:$0xf]
        %v4095 = vld [vmem:[%s4072 + $0x58] sm:$0xf]
        %v4096 = vld [vmem:[%s4072 + $0x5c] sm:$0xf]
        %v4097 = vld [vmem:[%s4072 + $0x60] sm:$0xf]
        %v4098 = vld [vmem:[%s4072 + $0x64] sm:$0xf]
        %v4099 = vld [vmem:[%s4072 + $0x68] sm:$0xf]
        %v4100 = vld [vmem:[%s4072 + $0x6c] sm:$0xf]
        %v4101 = vld [vmem:[%s4072 + $0x70] sm:$0xf]
        %v4102 = vld [vmem:[%s4072 + $0x74] sm:$0xf]
        %v4103 = vld [vmem:[%s4072 + $0x78] sm:$0xf]
        %v4104 = vld [vmem:[%s4072 + $0x7c] sm:$0xf]
        %v4105 = vld [vmem:[%s4072 + $0x80] sm:$0xf]
        %v4106 = vld [vmem:[%s4072 + $0x84] sm:$0xf]
        %v4107 = vld [vmem:[%s4072 + $0x88] sm:$0xf]
        %v4108 = vld [vmem:[%s4072 + $0x8c] sm:$0xf]
        %v4109 = vld [vmem:[%s4072 + $0x90] sm:$0xf]
        %v4110 = vld [vmem:[%s4072 + $0x94] sm:$0xf]
        %v4111 = vld [vmem:[%s4072 + $0x98] sm:$0xf]
        %v4112 = vld [vmem:[%s4072 + $0x9c] sm:$0xf]
        %v4113 = vld [vmem:[%s4072 + $0xa0] sm:$0xf]
        %v4114 = vld [vmem:[%s4072 + $0xa4] sm:$0xf]
        %v4115 = vld [vmem:[%s4072 + $0xa8] sm:$0xf]
        %v4116 = vld [vmem:[%s4072 + $0xac] sm:$0xf]
        %v4117 = vld [vmem:[%s4072 + $0xb0] sm:$0xf]
        %v4118 = vld [vmem:[%s4072 + $0xb4] sm:$0xf]
        %v4119 = vld [vmem:[%s4072 + $0xb8] sm:$0xf]
        %v4120 = vld [vmem:[%s4072 + $0xbc] sm:$0xf]
        %v4169 = vunpack.c.l.b16 %v4073
        %v4170 = vunpack.c.l.b16 %v4074
        %v4171 = vunpack.c.l.b16 %v4075
        %v4172 = vunpack.c.l.b16 %v4076
        %v4173 = vunpack.c.l.b16 %v4077
        %v4174 = vunpack.c.l.b16 %v4078
        %v4175 = vunpack.c.l.b16 %v4079
        %v4176 = vunpack.c.l.b16 %v4080
        %v4177 = vunpack.c.l.b16 %v4081
        %v4178 = vunpack.c.l.b16 %v4082
        %v4179 = vunpack.c.l.b16 %v4083
        %v4180 = vunpack.c.l.b16 %v4084
        %v4181 = vunpack.c.l.b16 %v4085
        %v4182 = vunpack.c.l.b16 %v4086
        %v4183 = vunpack.c.l.b16 %v4087
        %v4184 = vunpack.c.l.b16 %v4088
        %v4185 = vunpack.c.l.b16 %v4089
        %v4186 = vunpack.c.l.b16 %v4090
        %v4187 = vunpack.c.l.b16 %v4091
        %v4188 = vunpack.c.l.b16 %v4092
        %v4189 = vunpack.c.l.b16 %v4093
        %v4190 = vunpack.c.l.b16 %v4094
        %v4191 = vunpack.c.l.b16 %v4095
        %v4192 = vunpack.c.l.b16 %v4096
        %v4193 = vunpack.c.l.b16 %v4097
        %v4194 = vunpack.c.l.b16 %v4098
        %v4195 = vunpack.c.l.b16 %v4099
        %v4196 = vunpack.c.l.b16 %v4100
        %v4197 = vunpack.c.l.b16 %v4101
        %v4198 = vunpack.c.l.b16 %v4102
        %v4199 = vunpack.c.l.b16 %v4103
        %v4200 = vunpack.c.l.b16 %v4104
        %v4201 = vunpack.c.l.b16 %v4105
        %v4202 = vunpack.c.l.b16 %v4106
        %v4203 = vunpack.c.l.b16 %v4107
        %v4204 = vunpack.c.l.b16 %v4108
        %v4205 = vunpack.c.l.b16 %v4109
        %v4206 = vunpack.c.l.b16 %v4110
        %v4207 = vunpack.c.l.b16 %v4111
        %v4208 = vunpack.c.l.b16 %v4112
        %v4209 = vunpack.c.l.b16 %v4113
        %v4210 = vunpack.c.l.b16 %v4114
        %v4211 = vunpack.c.l.b16 %v4115
        %v4212 = vunpack.c.l.b16 %v4116
        %v4213 = vunpack.c.l.b16 %v4117
        %v4214 = vunpack.c.l.b16 %v4118
        %v4215 = vunpack.c.l.b16 %v4119
        %v4216 = vunpack.c.l.b16 %v4120
        %v4217 = vpack.c.b16 %v4170, %v4169
        %v4218 = vpack.c.b16 %v4172, %v4171
        %v4219 = vpack.c.b16 %v4174, %v4173
        %v4220 = vpack.c.b16 %v4176, %v4175
        %v4221 = vpack.c.b16 %v4178, %v4177
        %v4222 = vpack.c.b16 %v4180, %v4179
        %v4223 = vpack.c.b16 %v4182, %v4181
        %v4224 = vpack.c.b16 %v4184, %v4183
        %v4225 = vpack.c.b16 %v4186, %v4185
        %v4226 = vpack.c.b16 %v4188, %v4187
        %v4227 = vpack.c.b16 %v4190, %v4189
        %v4228 = vpack.c.b16 %v4192, %v4191
        %v4229 = vpack.c.b16 %v4194, %v4193
        %v4230 = vpack.c.b16 %v4196, %v4195
        %v4231 = vpack.c.b16 %v4198, %v4197
        %v4232 = vpack.c.b16 %v4200, %v4199
        %v4233 = vpack.c.b16 %v4202, %v4201
        %v4234 = vpack.c.b16 %v4204, %v4203
        %v4235 = vpack.c.b16 %v4206, %v4205
        %v4236 = vpack.c.b16 %v4208, %v4207
        %v4237 = vpack.c.b16 %v4210, %v4209
        %v4238 = vpack.c.b16 %v4212, %v4211
        %v4239 = vpack.c.b16 %v4214, %v4213
        %v4240 = vpack.c.b16 %v4216, %v4215
        %4265 = vmatprep.subr.bf16.mxu0 0
        %4266 = vmatpush1.bf16.msra.mxu0 %v4217
        %4267 = vmatprep.subr.bf16.mxu0 0
        %4268 = vmatpush1.bf16.msra.mxu0 %v4218
        %4269 = vmatprep.subr.bf16.mxu0 0
        %4270 = vmatpush1.bf16.msra.mxu0 %v4219
        %4271 = vmatprep.subr.bf16.mxu0 0
        %4272 = vmatpush1.bf16.msra.mxu0 %v4220
        %4273 = vmatprep.subr.bf16.mxu0 0
        %4274 = vmatpush1.bf16.msra.mxu0 %v4221
        %4275 = vmatprep.subr.bf16.mxu0 0
        %4276 = vmatpush1.bf16.msra.mxu0 %v4222
        %4277 = vmatprep.subr.bf16.mxu0 0
        %4278 = vmatpush1.bf16.msra.mxu0 %v4223
        %4279 = vmatprep.subr.bf16.mxu0 0
        %4280 = vmatpush1.bf16.msra.mxu0 %v4224
        %4281 = vmatprep.subr.bf16.mxu0 0
        %4282 = vmatpush1.bf16.msra.mxu0 %v4225
        %4283 = vmatprep.subr.bf16.mxu0 0
        %4284 = vmatpush1.bf16.msra.mxu0 %v4226
        %4285 = vmatprep.subr.bf16.mxu0 0
        %4286 = vmatpush1.bf16.msra.mxu0 %v4227
        %4287 = vmatprep.subr.bf16.mxu0 0
        %4288 = vmatpush1.bf16.msra.mxu0 %v4228
        %4289 = vmatprep.subr.bf16.mxu0 0
        %4290 = vmatpush1.bf16.msra.mxu0 %v4229
        %4291 = vmatprep.subr.bf16.mxu0 0
        %4292 = vmatpush1.bf16.msra.mxu0 %v4230
        %4293 = vmatprep.subr.bf16.mxu0 0
        %4294 = vmatpush1.bf16.msra.mxu0 %v4231
        %4295 = vmatprep.subr.bf16.mxu0 0
        %4296 = vmatpush1.bf16.msra.mxu0 %v4232
        %4297 = vmatprep.mubr.bf16.mxu0 %v4049
        %4298 = vmatmul.mubr.bf16.gmra.mrb[0].mxu0 %v4048
        %v4299 = vpop.f32.mrb[0].mxu0
        %v4300 = vadd.f32 0.0, %v4299
        %v4301 = vpop.f32.mrb[0].mxu0
        %v4302 = vpop.f32.mrb[0].mxu0
        %v4303 = vadd.f32 0.0, %v4302
        %v4304 = vpop.f32.mrb[0].mxu0
        %4305 = vmatprep.mubr.bf16.mxu0 %v4050
        %4306 = vmatmul.mubr.bf16.gmra.mrb[0].mxu0 %v4049
        %v4307 = vpop.f32.mrb[0].mxu0
        %v4308 = vadd.f32 0.0, %v4307
        %v4309 = vpop.f32.mrb[0].mxu0
        %v4310 = vpop.f32.mrb[0].mxu0
        %v4311 = vadd.f32 0.0, %v4310
        %v4312 = vpop.f32.mrb[0].mxu0
        %4313 = vmatprep.mubr.bf16.mxu0 %v4051
        %4314 = vmatmul.mubr.bf16.gmra.mrb[0].mxu0 %v4050
        %v4315 = vpop.f32.mrb[0].mxu0
        %v4316 = vadd.f32 0.0, %v4315
        %v4317 = vpop.f32.mrb[0].mxu0
        %v4318 = vpop.f32.mrb[0].mxu0
        %v4319 = vadd.f32 0.0, %v4318
        %v4320 = vpop.f32.mrb[0].mxu0
        %4321 = vmatprep.mubr.bf16.mxu0 %v4052
        %4322 = vmatmul.mubr.bf16.gmra.mrb[0].mxu0 %v4051
        %v4323 = vpop.f32.mrb[0].mxu0
        %v4324 = vadd.f32 0.0, %v4323
        %v4325 = vpop.f32.mrb[0].mxu0
        %v4326 = vpop.f32.mrb[0].mxu0
        %v4327 = vadd.f32 0.0, %v4326
        %v4328 = vpop.f32.mrb[0].mxu0
        %4329 = vmatprep.mubr.bf16.mxu0 %v4053
        %4330 = vmatmul.mubr.bf16.gmra.mrb[0].mxu0 %v4052
        %v4331 = vpop.f32.mrb[0].mxu0
        %v4332 = vadd.f32 0.0, %v4331
        %v4333 = vpop.f32.mrb[0].mxu0
        %v4334 = vpop.f32.mrb[0].mxu0
        %v4335 = vadd.f32 0.0, %v4334
        %v4336 = vpop.f32.mrb[0].mxu0
        %4337 = vmatprep.mubr.bf16.mxu0 %v4054
        %4338 = vmatmul.mubr.bf16.gmra.mrb[0].mxu0 %v4053
        %v4339 = vpop.f32.mrb[0].mxu0
        %v4340 = vadd.f32 0.0, %v4339
        %v4341 = vpop.f32.mrb[0].mxu0
        %v4342 = vpop.f32.mrb[0].mxu0
        %v4343 = vadd.f32 0.0, %v4342
        %v4344 = vpop.f32.mrb[0].mxu0
        %4345 = vmatprep.mubr.bf16.mxu0 %v4055
        %4346 = vmatmul.mubr.bf16.gmra.mrb[0].mxu0 %v4054
        %v4347 = vpop.f32.mrb[0].mxu0
        %v4348 = vadd.f32 0.0, %v4347
        %v4349 = vpop.f32.mrb[0].mxu0
        %v4350 = vpop.f32.mrb[0].mxu0
        %v4351 = vadd.f32 0.0, %v4350
        %v4352 = vpop.f32.mrb[0].mxu0
        %4353 = vmatprep.mubr.bf16.mxu0 %v4066
        %4354 = vmatmul.mubr.bf16.gmra.mrb[0].mxu0 %v4055
        %v4355 = vpop.f32.mrb[0].mxu0
        %v4356 = vadd.f32 0.0, %v4355
        %v4357 = vpop.f32.mrb[0].mxu0
        %v4358 = vpop.f32.mrb[0].mxu0
        %v4359 = vadd.f32 0.0, %v4358
        %v4360 = vpop.f32.mrb[0].mxu0
        %4361 = vdwg.mxu0
        %4362 = vmatprep.subr.bf16.mxu0 0
        %4363 = vmatpush1.bf16.msra.mxu0 %v4233
        %4364 = vmatprep.subr.bf16.mxu0 0
        %4365 = vmatpush1.bf16.msra.mxu0 %v4234
        %4366 = vmatprep.subr.bf16.mxu0 0
        %4367 = vmatpush1.bf16.msra.mxu0 %v4235
        %4368 = vmatprep.subr.bf16.mxu0 0
        %4369 = vmatpush1.bf16.msra.mxu0 %v4236
        %4370 = vmatprep.subr.bf16.mxu0 0
        %4371 = vmatpush1.bf16.msra.mxu0 %v4237
        %4372 = vmatprep.subr.bf16.mxu0 0
        %4373 = vmatpush1.bf16.msra.mxu0 %v4238
        %4374 = vmatprep.subr.bf16.mxu0 0
        %4375 = vmatpush1.bf16.msra.mxu0 %v4239
        %4376 = vmatprep.subr.bf16.mxu0 0
        %4377 = vmatpush1.bf16.msra.mxu0 %v4240
        %4378 = vmatprep.subr.bf16.mxu0 0
        %4379 = vmatpush1.bf16.msra.mxu0 0
        %4380 = vmatprep.subr.bf16.mxu0 0
        %4381 = vmatpush1.bf16.msra.mxu0 0
        %4382 = vmatprep.subr.bf16.mxu0 0
        %4383 = vmatpush1.bf16.msra.mxu0 0
        %4384 = vmatprep.subr.bf16.mxu0 0
        %4385 = vmatpush1.bf16.msra.mxu0 0
        %4386 = vmatprep.subr.bf16.mxu0 0
        %4387 = vmatpush1.bf16.msra.mxu0 0
        %4388 = vmatprep.subr.bf16.mxu0 0
        %4389 = vmatpush1.bf16.msra.mxu0 0
        %4390 = vmatprep.subr.bf16.mxu0 0
        %4391 = vmatpush1.bf16.msra.mxu0 0
        %4392 = vmatprep.subr.bf16.mxu0 0
        %4393 = vmatpush1.bf16.msra.mxu0 0
        %4394 = vmatprep.mubr.bf16.mxu0 0
        %4395 = vmatmul.mubr.bf16.gmra.mrb[0].mxu0 %v4050
        %v4396 = vpop.f32.mrb[0].mxu0
        %v4397 = vadd.f32 %v4300, %v4396
        %v4398 = vpop.f32.mrb[0].mxu0
        %v4399 = vpop.f32.mrb[0].mxu0
        %v4400 = vadd.f32 %v4303, %v4399
        %v4401 = vpop.f32.mrb[0].mxu0
        %4402 = vmatprep.mubr.bf16.mxu0 0
        %4403 = vmatmul.mubr.bf16.gmra.mrb[0].mxu0 %v4051
        %v4404 = vpop.f32.mrb[0].mxu0
        %v4405 = vadd.f32 %v4308, %v4404
        %v4406 = vpop.f32.mrb[0].mxu0
        %v4407 = vpop.f32.mrb[0].mxu0
        %v4408 = vadd.f32 %v4311, %v4407
        %v4409 = vpop.f32.mrb[0].mxu0
        %4410 = vmatprep.mubr.bf16.mxu0 0
        %4411 = vmatmul.mubr.bf16.gmra.mrb[0].mxu0 %v4052
        %v4412 = vpop.f32.mrb[0].mxu0
        %v4413 = vadd.f32 %v4316, %v4412
        %v4414 = vpop.f32.mrb[0].mxu0
        %v4415 = vpop.f32.mrb[0].mxu0
        %v4416 = vadd.f32 %v4319, %v4415
        %v4417 = vpop.f32.mrb[0].mxu0
        %4418 = vmatprep.mubr.bf16.mxu0 0
        %4419 = vmatmul.mubr.bf16.gmra.mrb[0].mxu0 %v4053
        %v4420 = vpop.f32.mrb[0].mxu0
        %v4421 = vadd.f32 %v4324, %v4420
        %v4422 = vpop.f32.mrb[0].mxu0
        %v4423 = vpop.f32.mrb[0].mxu0
        %v4424 = vadd.f32 %v4327, %v4423
        %v4425 = vpop.f32.mrb[0].mxu0
        %4426 = vmatprep.mubr.bf16.mxu0 0
        %4427 = vmatmul.mubr.bf16.gmra.mrb[0].mxu0 %v4054
        %v4428 = vpop.f32.mrb[0].mxu0
        %v4429 = vadd.f32 %v4332, %v4428
        %v4430 = vpop.f32.mrb[0].mxu0
        %v4431 = vpop.f32.mrb[0].mxu0
        %v4432 = vadd.f32 %v4335, %v4431
        %v4433 = vpop.f32.mrb[0].mxu0
        %4434 = vmatprep.mubr.bf16.mxu0 0
        %4435 = vmatmul.mubr.bf16.gmra.mrb[0].mxu0 %v4055
        %v4436 = vpop.f32.mrb[0].mxu0
        %v4437 = vadd.f32 %v4340, %v4436
        %v4438 = vpop.f32.mrb[0].mxu0
        %v4439 = vpop.f32.mrb[0].mxu0
        %v4440 = vadd.f32 %v4343, %v4439
        %v4441 = vpop.f32.mrb[0].mxu0
        %4442 = vmatprep.mubr.bf16.mxu0 0
        %4443 = vmatmul.mubr.bf16.gmra.mrb[0].mxu0 %v4066
        %v4444 = vpop.f32.mrb[0].mxu0
        %v4445 = vadd.f32 %v4348, %v4444
        %v4446 = vpop.f32.mrb[0].mxu0
        %v4447 = vpop.f32.mrb[0].mxu0
        %v4448 = vadd.f32 %v4351, %v4447
        %v4449 = vpop.f32.mrb[0].mxu0
        %4450 = vmatprep.mubr.bf16.mxu0 0
        %4451 = vmatmul.mubr.bf16.gmra.mrb[0].mxu0 %v4070
        %v4452 = vpop.f32.mrb[0].mxu0
        %v4453 = vadd.f32 %v4356, %v4452
        %v4454 = vpop.f32.mrb[0].mxu0
        %v4455 = vpop.f32.mrb[0].mxu0
        %v4456 = vadd.f32 %v4359, %v4455
        %v4457 = vpop.f32.mrb[0].mxu0
        %4458 = vdwg.mxu0
        %v4459 = vadd.f32 %v3870, %v4397
        %v4460 = vadd.f32 %v3873, %v4400
        %v4461 = vadd.f32 %v3878, %v4405
        %v4462 = vadd.f32 %v3881, %v4408
        %v4463 = vadd.f32 %v3886, %v4413
        %v4464 = vadd.f32 %v3889, %v4416
        %v4465 = vadd.f32 %v3894, %v4421
        %v4466 = vadd.f32 %v3897, %v4424
        %v4467 = vadd.f32 %v3902, %v4429
        %v4468 = vadd.f32 %v3905, %v4432
        %v4469 = vadd.f32 %v3910, %v4437
        %v4470 = vadd.f32 %v3913, %v4440
        %v4471 = vadd.f32 %v3918, %v4445
        %v4472 = vadd.f32 %v3921, %v4448
        %v4473 = vadd.f32 %v3926, %v4453
        %v4474 = vadd.f32 %v3929, %v4456
        %v4475 = vld [vmem:[#allocation12] sm:$0x1]
        %v4477 = vlaneseq
        %v4478 = vshrl.u32 %v4477, 7
        %v4479 = vsub.s32 0, %v4478
        %v4480 = vrot.slane %v4475, %v4479
        %v4482 = vadd.f32 %v4459, %v4480
        %v4483 = vadd.f32 %v4460, %v4480
        %v4484 = vadd.f32 %v4461, %v4480
        %v4485 = vadd.f32 %v4462, %v4480
        %v4486 = vadd.f32 %v4463, %v4480
        %v4487 = vadd.f32 %v4464, %v4480
        %v4488 = vadd.f32 %v4465, %v4480
        %v4489 = vadd.f32 %v4466, %v4480
        %v4490 = vadd.f32 %v4467, %v4480
        %v4491 = vadd.f32 %v4468, %v4480
        %v4492 = vadd.f32 %v4469, %v4480
        %v4493 = vadd.f32 %v4470, %v4480
        %v4494 = vadd.f32 %v4471, %v4480
        %v4495 = vadd.f32 %v4472, %v4480
        %v4496 = vadd.f32 %v4473, %v4480
        %v4497 = vadd.f32 %v4474, %v4480
        %v4498 = vld [vmem:[%s331] sm:$0xff]
        %v4499 = vld [vmem:[%s331 + $0x8] sm:$0xff]
        %v4500 = vld [vmem:[%s331 + $0x10] sm:$0xff]
        %v4501 = vld [vmem:[%s331 + $0x18] sm:$0xff]
        %v4502 = vld [vmem:[%s331 + $0x20] sm:$0xff]
        %v4503 = vld [vmem:[%s331 + $0x28] sm:$0xff]
        %v4504 = vld [vmem:[%s331 + $0x30] sm:$0xff]
        %v4505 = vld [vmem:[%s331 + $0x38] sm:$0xff]
        %v4506 = vld [vmem:[%s331 + $0x40] sm:$0xff]
        %v4507 = vld [vmem:[%s331 + $0x48] sm:$0xff]
        %v4508 = vld [vmem:[%s331 + $0x50] sm:$0xff]
        %v4509 = vld [vmem:[%s331 + $0x58] sm:$0xff]
        %v4510 = vld [vmem:[%s331 + $0x60] sm:$0xff]
        %v4511 = vld [vmem:[%s331 + $0x68] sm:$0xff]
        %v4512 = vld [vmem:[%s331 + $0x70] sm:$0xff]
        %v4513 = vld [vmem:[%s331 + $0x78] sm:$0xff]
        %vm4514 = vcmask 31744
        %v4515 = vsel %vm4514, %v4498, 0.0
        %4516 = vadd.xlane.f32.xlu0 %v4515
        %v4517 = vpop.xlane.xlu0 %4516
        %v4518 = vsel %vm4514, %v4499, 0.0
        %4519 = vadd.xlane.f32.xlu0 %v4518
        %v4520 = vpop.xlane.xlu0 %4519
        %v4521 = vsel %vm4514, %v4500, 0.0
        %4522 = vadd.xlane.f32.xlu0 %v4521
        %v4523 = vpop.xlane.xlu0 %4522
        %v4524 = vsel %vm4514, %v4501, 0.0
        %4525 = vadd.xlane.f32.xlu0 %v4524
        %v4526 = vpop.xlane.xlu0 %4525
        %v4527 = vsel %vm4514, %v4502, 0.0
        %4528 = vadd.xlane.f32.xlu0 %v4527
        %v4529 = vpop.xlane.xlu0 %4528
        %v4530 = vsel %vm4514, %v4503, 0.0
        %4531 = vadd.xlane.f32.xlu0 %v4530
        %v4532 = vpop.xlane.xlu0 %4531
        %v4533 = vsel %vm4514, %v4504, 0.0
        %4534 = vadd.xlane.f32.xlu0 %v4533
        %v4535 = vpop.xlane.xlu0 %4534
        %v4536 = vsel %vm4514, %v4505, 0.0
        %4537 = vadd.xlane.f32.xlu0 %v4536
        %v4538 = vpop.xlane.xlu0 %4537
        %v4539 = vsel %vm4514, %v4506, 0.0
        %4540 = vadd.xlane.f32.xlu0 %v4539
        %v4541 = vpop.xlane.xlu0 %4540
        %v4542 = vsel %vm4514, %v4507, 0.0
        %4543 = vadd.xlane.f32.xlu0 %v4542
        %v4544 = vpop.xlane.xlu0 %4543
        %v4545 = vsel %vm4514, %v4508, 0.0
        %4546 = vadd.xlane.f32.xlu0 %v4545
        %v4547 = vpop.xlane.xlu0 %4546
        %v4548 = vsel %vm4514, %v4509, 0.0
        %4549 = vadd.xlane.f32.xlu0 %v4548
        %v4550 = vpop.xlane.xlu0 %4549
        %v4551 = vsel %vm4514, %v4510, 0.0
        %4552 = vadd.xlane.f32.xlu0 %v4551
        %v4553 = vpop.xlane.xlu0 %4552
        %v4554 = vsel %vm4514, %v4511, 0.0
        %4555 = vadd.xlane.f32.xlu0 %v4554
        %v4556 = vpop.xlane.xlu0 %4555
        %v4557 = vsel %vm4514, %v4512, 0.0
        %4558 = vadd.xlane.f32.xlu0 %v4557
        %v4559 = vpop.xlane.xlu0 %4558
        %v4560 = vsel %vm4514, %v4513, 0.0
        %4561 = vadd.xlane.f32.xlu0 %v4560
        %v4562 = vpop.xlane.xlu0 %4561
        %v4563 = vrcp.pop 4.0
        %v4564 = vmul.f32 %v4517, %v4563
        %v4565 = vmul.f32 %v4520, %v4563
        %v4566 = vmul.f32 %v4523, %v4563
        %v4567 = vmul.f32 %v4526, %v4563
        %v4568 = vmul.f32 %v4529, %v4563
        %v4569 = vmul.f32 %v4532, %v4563
        %v4570 = vmul.f32 %v4535, %v4563
        %v4571 = vmul.f32 %v4538, %v4563
        %v4572 = vmul.f32 %v4541, %v4563
        %v4573 = vmul.f32 %v4544, %v4563
        %v4574 = vmul.f32 %v4547, %v4563
        %v4575 = vmul.f32 %v4550, %v4563
        %v4576 = vmul.f32 %v4553, %v4563
        %v4577 = vmul.f32 %v4556, %v4563
        %v4578 = vmul.f32 %v4559, %v4563
        %v4579 = vmul.f32 %v4562, %v4563
        %v4580 = vsub.f32 %v4498, %v4564
        %v4581 = vsub.f32 %v4499, %v4565
        %v4582 = vsub.f32 %v4500, %v4566
        %v4583 = vsub.f32 %v4501, %v4567
        %v4584 = vsub.f32 %v4502, %v4568
        %v4585 = vsub.f32 %v4503, %v4569
        %v4586 = vsub.f32 %v4504, %v4570
        %v4587 = vsub.f32 %v4505, %v4571
        %v4588 = vsub.f32 %v4506, %v4572
        %v4589 = vsub.f32 %v4507, %v4573
        %v4590 = vsub.f32 %v4508, %v4574
        %v4591 = vsub.f32 %v4509, %v4575
        %v4592 = vsub.f32 %v4510, %v4576
        %v4593 = vsub.f32 %v4511, %v4577
        %v4594 = vsub.f32 %v4512, %v4578
        %v4595 = vsub.f32 %v4513, %v4579
        %v4596 = vmul.f32 %v4580, %v4580
        %v4597 = vmul.f32 %v4581, %v4581
        %v4598 = vmul.f32 %v4582, %v4582
        %v4599 = vmul.f32 %v4583, %v4583
        %v4600 = vmul.f32 %v4584, %v4584
        %v4601 = vmul.f32 %v4585, %v4585
        %v4602 = vmul.f32 %v4586, %v4586
        %v4603 = vmul.f32 %v4587, %v4587
        %v4604 = vmul.f32 %v4588, %v4588
        %v4605 = vmul.f32 %v4589, %v4589
        %v4606 = vmul.f32 %v4590, %v4590
        %v4607 = vmul.f32 %v4591, %v4591
        %v4608 = vmul.f32 %v4592, %v4592
        %v4609 = vmul.f32 %v4593, %v4593
        %v4610 = vmul.f32 %v4594, %v4594
        %v4611 = vmul.f32 %v4595, %v4595
        %v4612 = vsel %vm4514, %v4596, 0.0
        %4613 = vadd.xlane.f32.xlu0 %v4612
        %v4614 = vpop.xlane.xlu0 %4613
        %v4615 = vsel %vm4514, %v4597, 0.0
        %4616 = vadd.xlane.f32.xlu0 %v4615
        %v4617 = vpop.xlane.xlu0 %4616
        %v4618 = vsel %vm4514, %v4598, 0.0
        %4619 = vadd.xlane.f32.xlu0 %v4618
        %v4620 = vpop.xlane.xlu0 %4619
        %v4621 = vsel %vm4514, %v4599, 0.0
        %4622 = vadd.xlane.f32.xlu0 %v4621
        %v4623 = vpop.xlane.xlu0 %4622
        %v4624 = vsel %vm4514, %v4600, 0.0
        %4625 = vadd.xlane.f32.xlu0 %v4624
        %v4626 = vpop.xlane.xlu0 %4625
        %v4627 = vsel %vm4514, %v4601, 0.0
        %4628 = vadd.xlane.f32.xlu0 %v4627
        %v4629 = vpop.xlane.xlu0 %4628
        %v4630 = vsel %vm4514, %v4602, 0.0
        %4631 = vadd.xlane.f32.xlu0 %v4630
        %v4632 = vpop.xlane.xlu0 %4631
        %v4633 = vsel %vm4514, %v4603, 0.0
        %4634 = vadd.xlane.f32.xlu0 %v4633
        %v4635 = vpop.xlane.xlu0 %4634
        %v4636 = vsel %vm4514, %v4604, 0.0
        %4637 = vadd.xlane.f32.xlu0 %v4636
        %v4638 = vpop.xlane.xlu0 %4637
        %v4639 = vsel %vm4514, %v4605, 0.0
        %4640 = vadd.xlane.f32.xlu0 %v4639
        %v4641 = vpop.xlane.xlu0 %4640
        %v4642 = vsel %vm4514, %v4606, 0.0
        %4643 = vadd.xlane.f32.xlu0 %v4642
        %v4644 = vpop.xlane.xlu0 %4643
        %v4645 = vsel %vm4514, %v4607, 0.0
        %4646 = vadd.xlane.f32.xlu0 %v4645
        %v4647 = vpop.xlane.xlu0 %4646
        %v4648 = vsel %vm4514, %v4608, 0.0
        %4649 = vadd.xlane.f32.xlu0 %v4648
        %v4650 = vpop.xlane.xlu0 %4649
        %v4651 = vsel %vm4514, %v4609, 0.0
        %4652 = vadd.xlane.f32.xlu0 %v4651
        %v4653 = vpop.xlane.xlu0 %4652
        %v4654 = vsel %vm4514, %v4610, 0.0
        %4655 = vadd.xlane.f32.xlu0 %v4654
        %v4656 = vpop.xlane.xlu0 %4655
        %v4657 = vsel %vm4514, %v4611, 0.0
        %4658 = vadd.xlane.f32.xlu0 %v4657
        %v4659 = vpop.xlane.xlu0 %4658
        %v4660 = vrsqrt.pop %v4614
        %v4661 = vmul.f32 %v4614, %v4660
        %vm4662 = vcmp.eq.f32.partialorder %v4614, inf
        %v4663 = vsel %vm4662, %v4614, %v4661
        %vm4664 = vcmp.eq.f32.partialorder %v4614, 0.0
        %v4665 = vand.u32 %v4614, 2147483648
        %v4666 = vsel %vm4664, %v4665, %v4663
        %v4667 = vrsqrt.pop %v4617
        %v4668 = vmul.f32 %v4617, %v4667
        %vm4669 = vcmp.eq.f32.partialorder %v4617, inf
        %v4670 = vsel %vm4669, %v4617, %v4668
        %vm4671 = vcmp.eq.f32.partialorder %v4617, 0.0
        %v4672 = vand.u32 %v4617, 2147483648
        %v4673 = vsel %vm4671, %v4672, %v4670
        %v4674 = vrsqrt.pop %v4620
        %v4675 = vmul.f32 %v4620, %v4674
        %vm4676 = vcmp.eq.f32.partialorder %v4620, inf
        %v4677 = vsel %vm4676, %v4620, %v4675
        %vm4678 = vcmp.eq.f32.partialorder %v4620, 0.0
        %v4679 = vand.u32 %v4620, 2147483648
        %v4680 = vsel %vm4678, %v4679, %v4677
        %v4681 = vrsqrt.pop %v4623
        %v4682 = vmul.f32 %v4623, %v4681
        %vm4683 = vcmp.eq.f32.partialorder %v4623, inf
        %v4684 = vsel %vm4683, %v4623, %v4682
        %vm4685 = vcmp.eq.f32.partialorder %v4623, 0.0
        %v4686 = vand.u32 %v4623, 2147483648
        %v4687 = vsel %vm4685, %v4686, %v4684
        %v4688 = vrsqrt.pop %v4626
        %v4689 = vmul.f32 %v4626, %v4688
        %vm4690 = vcmp.eq.f32.partialorder %v4626, inf
        %v4691 = vsel %vm4690, %v4626, %v4689
        %vm4692 = vcmp.eq.f32.partialorder %v4626, 0.0
        %v4693 = vand.u32 %v4626, 2147483648
        %v4694 = vsel %vm4692, %v4693, %v4691
        %v4695 = vrsqrt.pop %v4629
        %v4696 = vmul.f32 %v4629, %v4695
        %vm4697 = vcmp.eq.f32.partialorder %v4629, inf
        %v4698 = vsel %vm4697, %v4629, %v4696
        %vm4699 = vcmp.eq.f32.partialorder %v4629, 0.0
        %v4700 = vand.u32 %v4629, 2147483648
        %v4701 = vsel %vm4699, %v4700, %v4698
        %v4702 = vrsqrt.pop %v4632
        %v4703 = vmul.f32 %v4632, %v4702
        %vm4704 = vcmp.eq.f32.partialorder %v4632, inf
        %v4705 = vsel %vm4704, %v4632, %v4703
        %vm4706 = vcmp.eq.f32.partialorder %v4632, 0.0
        %v4707 = vand.u32 %v4632, 2147483648
        %v4708 = vsel %vm4706, %v4707, %v4705
        %v4709 = vrsqrt.pop %v4635
        %v4710 = vmul.f32 %v4635, %v4709
        %vm4711 = vcmp.eq.f32.partialorder %v4635, inf
        %v4712 = vsel %vm4711, %v4635, %v4710
        %vm4713 = vcmp.eq.f32.partialorder %v4635, 0.0
        %v4714 = vand.u32 %v4635, 2147483648
        %v4715 = vsel %vm4713, %v4714, %v4712
        %v4716 = vrsqrt.pop %v4638
        %v4717 = vmul.f32 %v4638, %v4716
        %vm4718 = vcmp.eq.f32.partialorder %v4638, inf
        %v4719 = vsel %vm4718, %v4638, %v4717
        %vm4720 = vcmp.eq.f32.partialorder %v4638, 0.0
        %v4721 = vand.u32 %v4638, 2147483648
        %v4722 = vsel %vm4720, %v4721, %v4719
        %v4723 = vrsqrt.pop %v4641
        %v4724 = vmul.f32 %v4641, %v4723
        %vm4725 = vcmp.eq.f32.partialorder %v4641, inf
        %v4726 = vsel %vm4725, %v4641, %v4724
        %vm4727 = vcmp.eq.f32.partialorder %v4641, 0.0
        %v4728 = vand.u32 %v4641, 2147483648
        %v4729 = vsel %vm4727, %v4728, %v4726
        %v4730 = vrsqrt.pop %v4644
        %v4731 = vmul.f32 %v4644, %v4730
        %vm4732 = vcmp.eq.f32.partialorder %v4644, inf
        %v4733 = vsel %vm4732, %v4644, %v4731
        %vm4734 = vcmp.eq.f32.partialorder %v4644, 0.0
        %v4735 = vand.u32 %v4644, 2147483648
        %v4736 = vsel %vm4734, %v4735, %v4733
        %v4737 = vrsqrt.pop %v4647
        %v4738 = vmul.f32 %v4647, %v4737
        %vm4739 = vcmp.eq.f32.partialorder %v4647, inf
        %v4740 = vsel %vm4739, %v4647, %v4738
        %vm4741 = vcmp.eq.f32.partialorder %v4647, 0.0
        %v4742 = vand.u32 %v4647, 2147483648
        %v4743 = vsel %vm4741, %v4742, %v4740
        %v4744 = vrsqrt.pop %v4650
        %v4745 = vmul.f32 %v4650, %v4744
        %vm4746 = vcmp.eq.f32.partialorder %v4650, inf
        %v4747 = vsel %vm4746, %v4650, %v4745
        %vm4748 = vcmp.eq.f32.partialorder %v4650, 0.0
        %v4749 = vand.u32 %v4650, 2147483648
        %v4750 = vsel %vm4748, %v4749, %v4747
        %v4751 = vrsqrt.pop %v4653
        %v4752 = vmul.f32 %v4653, %v4751
        %vm4753 = vcmp.eq.f32.partialorder %v4653, inf
        %v4754 = vsel %vm4753, %v4653, %v4752
        %vm4755 = vcmp.eq.f32.partialorder %v4653, 0.0
        %v4756 = vand.u32 %v4653, 2147483648
        %v4757 = vsel %vm4755, %v4756, %v4754
        %v4758 = vrsqrt.pop %v4656
        %v4759 = vmul.f32 %v4656, %v4758
        %vm4760 = vcmp.eq.f32.partialorder %v4656, inf
        %v4761 = vsel %vm4760, %v4656, %v4759
        %vm4762 = vcmp.eq.f32.partialorder %v4656, 0.0
        %v4763 = vand.u32 %v4656, 2147483648
        %v4764 = vsel %vm4762, %v4763, %v4761
        %v4765 = vrsqrt.pop %v4659
        %v4766 = vmul.f32 %v4659, %v4765
        %vm4767 = vcmp.eq.f32.partialorder %v4659, inf
        %v4768 = vsel %vm4767, %v4659, %v4766
        %vm4769 = vcmp.eq.f32.partialorder %v4659, 0.0
        %v4770 = vand.u32 %v4659, 2147483648
        %v4771 = vsel %vm4769, %v4770, %v4768
        %v4772 = vadd.f32 %v4666, 1e-06
        %v4773 = vadd.f32 %v4673, 1e-06
        %v4774 = vadd.f32 %v4680, 1e-06
        %v4775 = vadd.f32 %v4687, 1e-06
        %v4776 = vadd.f32 %v4694, 1e-06
        %v4777 = vadd.f32 %v4701, 1e-06
        %v4778 = vadd.f32 %v4708, 1e-06
        %v4779 = vadd.f32 %v4715, 1e-06
        %v4780 = vadd.f32 %v4722, 1e-06
        %v4781 = vadd.f32 %v4729, 1e-06
        %v4782 = vadd.f32 %v4736, 1e-06
        %v4783 = vadd.f32 %v4743, 1e-06
        %v4784 = vadd.f32 %v4750, 1e-06
        %v4785 = vadd.f32 %v4757, 1e-06
        %v4786 = vadd.f32 %v4764, 1e-06
        %v4787 = vadd.f32 %v4771, 1e-06
        %v4788 = vrcp.pop %v4772
        %v4789 = vmul.f32 %v4580, %v4788
        %v4790 = vrcp.pop %v4773
        %v4791 = vmul.f32 %v4581, %v4790
        %v4792 = vrcp.pop %v4774
        %v4793 = vmul.f32 %v4582, %v4792
        %v4794 = vrcp.pop %v4775
        %v4795 = vmul.f32 %v4583, %v4794
        %v4796 = vrcp.pop %v4776
        %v4797 = vmul.f32 %v4584, %v4796
        %v4798 = vrcp.pop %v4777
        %v4799 = vmul.f32 %v4585, %v4798
        %v4800 = vrcp.pop %v4778
        %v4801 = vmul.f32 %v4586, %v4800
        %v4802 = vrcp.pop %v4779
        %v4803 = vmul.f32 %v4587, %v4802
        %v4804 = vrcp.pop %v4780
        %v4805 = vmul.f32 %v4588, %v4804
        %v4806 = vrcp.pop %v4781
        %v4807 = vmul.f32 %v4589, %v4806
        %v4808 = vrcp.pop %v4782
        %v4809 = vmul.f32 %v4590, %v4808
        %v4810 = vrcp.pop %v4783
        %v4811 = vmul.f32 %v4591, %v4810
        %v4812 = vrcp.pop %v4784
        %v4813 = vmul.f32 %v4592, %v4812
        %v4814 = vrcp.pop %v4785
        %v4815 = vmul.f32 %v4593, %v4814
        %v4816 = vrcp.pop %v4786
        %v4817 = vmul.f32 %v4594, %v4816
        %v4818 = vrcp.pop %v4787
        %v4819 = vmul.f32 %v4595, %v4818
        %v4820 = vmul.f32 %v4789, %v4482
        %v4821 = vmul.f32 %v4791, %v4483
        %v4822 = vmul.f32 %v4793, %v4484
        %v4823 = vmul.f32 %v4795, %v4485
        %v4824 = vmul.f32 %v4797, %v4486
        %v4825 = vmul.f32 %v4799, %v4487
        %v4826 = vmul.f32 %v4801, %v4488
        %v4827 = vmul.f32 %v4803, %v4489
        %v4828 = vmul.f32 %v4805, %v4490
        %v4829 = vmul.f32 %v4807, %v4491
        %v4830 = vmul.f32 %v4809, %v4492
        %v4831 = vmul.f32 %v4811, %v4493
        %v4832 = vmul.f32 %v4813, %v4494
        %v4833 = vmul.f32 %v4815, %v4495
        %v4834 = vmul.f32 %v4817, %v4496
        %v4835 = vmul.f32 %v4819, %v4497
        %4852 = vrot.lane.b32.xlu0 %v4482, 124
        %v4853 = vpop.permute.xlu0 %4852
        %4854 = vrot.lane.b32.xlu0 %v4483, 124
        %v4855 = vpop.permute.xlu0 %4854
        %4856 = vrot.lane.b32.xlu0 %v4484, 124
        %v4857 = vpop.permute.xlu0 %4856
        %4858 = vrot.lane.b32.xlu0 %v4485, 124
        %v4859 = vpop.permute.xlu0 %4858
        %4860 = vrot.lane.b32.xlu0 %v4486, 124
        %v4861 = vpop.permute.xlu0 %4860
        %4862 = vrot.lane.b32.xlu0 %v4487, 124
        %v4863 = vpop.permute.xlu0 %4862
        %4864 = vrot.lane.b32.xlu0 %v4488, 124
        %v4865 = vpop.permute.xlu0 %4864
        %4866 = vrot.lane.b32.xlu0 %v4489, 124
        %v4867 = vpop.permute.xlu0 %4866
        %4868 = vrot.lane.b32.xlu0 %v4490, 124
        %v4869 = vpop.permute.xlu0 %4868
        %4870 = vrot.lane.b32.xlu0 %v4491, 124
        %v4871 = vpop.permute.xlu0 %4870
        %4872 = vrot.lane.b32.xlu0 %v4492, 124
        %v4873 = vpop.permute.xlu0 %4872
        %4874 = vrot.lane.b32.xlu0 %v4493, 124
        %v4875 = vpop.permute.xlu0 %4874
        %4876 = vrot.lane.b32.xlu0 %v4494, 124
        %v4877 = vpop.permute.xlu0 %4876
        %4878 = vrot.lane.b32.xlu0 %v4495, 124
        %v4879 = vpop.permute.xlu0 %4878
        %4880 = vrot.lane.b32.xlu0 %v4496, 124
        %v4881 = vpop.permute.xlu0 %4880
        %4882 = vrot.lane.b32.xlu0 %v4497, 124
        %v4883 = vpop.permute.xlu0 %4882
        %v4900 = vadd.f32 %v4820, %v4853
        %v4901 = vadd.f32 %v4821, %v4855
        %v4902 = vadd.f32 %v4822, %v4857
        %v4903 = vadd.f32 %v4823, %v4859
        %v4904 = vadd.f32 %v4824, %v4861
        %v4905 = vadd.f32 %v4825, %v4863
        %v4906 = vadd.f32 %v4826, %v4865
        %v4907 = vadd.f32 %v4827, %v4867
        %v4908 = vadd.f32 %v4828, %v4869
        %v4909 = vadd.f32 %v4829, %v4871
        %v4910 = vadd.f32 %v4830, %v4873
        %v4911 = vadd.f32 %v4831, %v4875
        %v4912 = vadd.f32 %v4832, %v4877
        %v4913 = vadd.f32 %v4833, %v4879
        %v4914 = vadd.f32 %v4834, %v4881
        %v4915 = vadd.f32 %v4835, %v4883
        %4916 = vst.msk [vmem:[%s389] sm:$0xff] %vm4514, %v4900
        %4917 = vst.msk [vmem:[%s389 + $0x8] sm:$0xff] %vm4514, %v4901
        %4918 = vst.msk [vmem:[%s389 + $0x10] sm:$0xff] %vm4514, %v4902
        %4919 = vst.msk [vmem:[%s389 + $0x18] sm:$0xff] %vm4514, %v4903
        %4920 = vst.msk [vmem:[%s389 + $0x20] sm:$0xff] %vm4514, %v4904
        %4921 = vst.msk [vmem:[%s389 + $0x28] sm:$0xff] %vm4514, %v4905
        %4922 = vst.msk [vmem:[%s389 + $0x30] sm:$0xff] %vm4514, %v4906
        %4923 = vst.msk [vmem:[%s389 + $0x38] sm:$0xff] %vm4514, %v4907
        %4924 = vst.msk [vmem:[%s389 + $0x40] sm:$0xff] %vm4514, %v4908
        %4925 = vst.msk [vmem:[%s389 + $0x48] sm:$0xff] %vm4514, %v4909
        %4926 = vst.msk [vmem:[%s389 + $0x50] sm:$0xff] %vm4514, %v4910
        %4927 = vst.msk [vmem:[%s389 + $0x58] sm:$0xff] %vm4514, %v4911
        %4928 = vst.msk [vmem:[%s389 + $0x60] sm:$0xff] %vm4514, %v4912
        %4929 = vst.msk [vmem:[%s389 + $0x68] sm:$0xff] %vm4514, %v4913
        %4930 = vst.msk [vmem:[%s389 + $0x70] sm:$0xff] %vm4514, %v4914
        %4931 = vst.msk [vmem:[%s389 + $0x78] sm:$0xff] %vm4514, %v4915
        %s4932 = sand.u32 %s192, 1
        %s4933 = scalar_lea.sflag [#allocation5], %s4932
        %s4934 = sand.u32 %s192, 1
        %s4935 = smul.addr %s4934, 128
        %s4936 = scalar_lea.vmem [#allocation14], %s4935
        // Predicated region
        $region77: #{tpu_custom_call.1} parent=43 // pred_check
          %p4937 = pneg %p202
        $region78: #{tpu_custom_call.1} parent=43 // pred_check_branch
          %4939 = sbr.rel (%p4937) target = $region80
        $region79: #{tpu_custom_call.1} parent=43 // pred_region
          %s4940 = smul.u32 8, %s33
          %s4942 = ssub.s32 2048, 2048
          %4943 = vsyncadd %s4933, %s4942
          %s4944 = smul.addr %s4940, 2
          %s4945 = smul.addr %s32, 32
          %s4946 = sadd.s32 %s4944, %s4945
          %s4947 = smul.addr %s4946, 128
          %s4948 = scalar_lea.hbm %s6, %s4947
          %s4949 = sshll.u32 %s4936, 4
          %s4950 = int_to_ptr.vmem [resolvable:$true] %s4949
          %4955 = dma.vmem_to_hbm [thread:$0]  %s4950, 2048, %s4948, %s4933, 128, 128, 8
        $region80: #{tpu_custom_call.1} parent=43 // pred_fallthru
          _
      $region44: #{tpu_custom_call.1} parent=5 // pred_fallthru
        _
      %p4956 = scmp.le.s32.totalorder 2, %s23
      // Predicated region
      $region81: #{tpu_custom_call.1} parent=5 // pred_check
        %p4957 = pneg %p4956
      $region82: #{tpu_custom_call.1} parent=5 // pred_check_branch
        %4959 = sbr.rel (%p4957) target = $region84
      $region83: #{tpu_custom_call.1} parent=5 // pred_region
        %s4960 = ssub.s32 %s23, 2
        // Predicated region
        $region85: #{tpu_custom_call.1} parent=83 // pred_check
          %p4961 = pneg %p208
        $region86: #{tpu_custom_call.1} parent=83 // pred_check_branch
          %4963 = sbr.rel (%p4961) target = $region88
        $region87: #{tpu_custom_call.1} parent=83 // pred_region
          %s4964 = sand.u32 %s193, 1
          %s4965 = scalar_lea.sflag [#allocation5], %s4964
          %s4966 = sand.u32 %s193, 1
          %s4967 = smul.addr %s4966, 128
          %s4968 = scalar_lea.vmem [#allocation14], %s4967
          %4969 = dma.done %s4965, 2048
        $region88: #{tpu_custom_call.1} parent=83 // pred_fallthru
          _
      $region84: #{tpu_custom_call.1} parent=5 // pred_fallthru
        _
    $region6: #{tpu_custom_call.1} parent=1 // loop_footer
      %s27 = sadd.s32 1, %s23
    $region7: #{tpu_custom_call.1} parent=1 // loop_footer_branch
      %22 = sbr.rel target = $region3
    $region8: #{tpu_custom_call.1} parent=1 // loop_exit
      _
    %4970 = vsyncpa [#allocation4], 1
    %s4971 = scalar_lea.sflag [#allocation4], 1
    %4972 = vsyncpa %s4971, 1
    %4973 = vsyncpa [#allocation7], 1
    %s4974 = scalar_lea.sflag [#allocation7], 1
    %4975 = vsyncpa %s4974, 1
    %4976 = vsyncpa [#allocation10], 1
    %4977 = vsyncpa [#allocation13], 1
    %4978 = vsyncpa [#allocation5], 1
    %s4979 = scalar_lea.sflag [#allocation5], 1
    %4980 = vsyncpa %s4979, 1

</llo_original>
